<compile_context>
chip_gen: v6e
topology: v6e:2x2x1
jax: 0.10.0
libtpu: 0.0.40
codegen_flags: <defaults>
</compile_context>

<pallas_src>
import functools

import jax
import jax.numpy as jnp
import numpy as np
from jax.experimental import pallas as pl
from jax.experimental.pallas import tpu as pltpu

# --- model hyper-parameters (small, consistent with the module) ---
D_MODEL    = 32
NHEAD      = 4
DIM_FF     = 64
NUM_LAYERS = 2
SEQ        = 8
BATCH      = 2
HEAD_DIM   = D_MODEL // NHEAD
EPS        = 1e-5

D_PAD     = 128                    # lane-padded feature width
ONES_LANE = D_MODEL                # lane 32 carries a constant 1.0 (bias lane)
SCALE     = 1.0 / (HEAD_DIM ** 0.5)
NEG_INF   = -1e30


# ----------------------------------------------------------------------------
# Kernel
# ----------------------------------------------------------------------------
def _layer_norm(x, w, b, feat_mask, inv_d):
    # LayerNorm over the *real* D_MODEL lanes only (biased variance, eps=1e-5).
    # Pad lanes stay 0; the bias lane is re-created by `b` (its lane 32 == 1).
    mu = jnp.sum(x * feat_mask, axis=-1, keepdims=True) * inv_d
    xc = (x - mu) * feat_mask
    var = jnp.sum(xc * xc, axis=-1, keepdims=True) * inv_d
    return xc * jax.lax.rsqrt(var + EPS) * w + b


def encoder_stack_kernel(x_ref, pos_ref, m_ref, vo_ref, w1_ref, w2_ref,
                         vec_ref, fn_ref, out_ref,
                         *, batch, nhead, nlayers, d_model):
    """Whole TransformerEncoder (all layers + final norm), full batch, one call.

    x_ref / pos_ref / out_ref : (T=S*B, 128) seq-major, lane-padded tokens
    m_ref  : (L, H, 128, 128)  scale * Wq_h_aug @ Wk_h_aug^T   (bias-augmented)
    vo_ref : (L, H, 128, 128)  Wv_h_aug @ Wo_h                 (bias-augmented)
    w1_ref : (L, 128, 128)     W1 (+ b1 row, + bias-lane column for b2)
    w2_ref : (L, 128, 128)     W2 (+ b2 row)
    vec_ref: (L, 8, 128)       rows: bo | n1w | n1b | n2w | n2b | 0 | 0 | 0
    fn_ref : (2, 128)          final LayerNorm weight / bias
    """
    t, dp = x_ref.shape
    inv_d = 1.0 / d_model

    # Constants, hoisted out of the layer loop.
    lane = jax.lax.broadcasted_iota(jnp.int32, (1, dp), 1)
    feat_mask = (lane < d_model).astype(jnp.float32)     # 1 on real feature lanes
    ones_lane = (lane == d_model).astype(jnp.float32)    # 1 on the bias lane

    tq = jax.lax.broadcasted_iota(jnp.int32, (t, t), 0)
    tk = jax.lax.broadcasted_iota(jnp.int32, (t, t), 1)
    attn_bias = jnp.where((tq % batch) == (tk % batch), 0.0, NEG_INF)
    attn_bias = attn_bias.astype(jnp.float32)            # additive same-batch mask

    x = x_ref[...] + ones_lane          # (T,128): features | 1 | zeros
    pos = pos_ref[...]                  # (T,128): features | 0 | zeros

    for l in range(nlayers):            # static unroll; weights stay in VMEM
        vec = vec_ref[l]                # (8, 128)
        bo  = vec[0:1, :]
        n1w = vec[1:2, :]
        n1b = vec[2:3, :]
        n2w = vec[3:4, :]
        n2b = vec[4:5, :]

        # --- self-attention (q = k = src + pos, v = src) -------------------
        xqp = x + pos                   # bias lane stays 1, pads stay 0

        attn = bo                       # start accumulator with out-proj bias
        for h in range(nhead):
            # scores: xqp @ (scale * Wq_h Wk_h^T) @ xqp^T, q/k biases folded in
            p_h = jnp.dot(xqp, m_ref[l, h],
                          preferred_element_type=jnp.float32)          # (T,128)
            s = jnp.einsum('qd,kd->qk', p_h, xqp,
                           preferred_element_type=jnp.float32) + attn_bias
            s = s - jnp.max(s, axis=-1, keepdims=True)
            e = jnp.exp(s)
            a = e * pl.reciprocal(jnp.sum(e, axis=-1, keepdims=True),
                                  approx=True)                         # (T,T)
            # value + out-proj folded: x @ (Wv_h Wo_h); attend; accumulate
            xv_h = jnp.dot(x, vo_ref[l, h],
                           preferred_element_type=jnp.float32)         # (T,128)
            attn = attn + jnp.dot(a, xv_h,
                                  preferred_element_type=jnp.float32)  # (T,128)

        # --- residual + norm1, FFN (b1/b2 folded into W1/W2), residual + norm2
        x1 = _layer_norm(x + attn, n1w, n1b, feat_mask, inv_d)
        h1 = jnp.maximum(jnp.dot(x1, w1_ref[l],
                                 preferred_element_type=jnp.float32), 0.0)
        ffo = jnp.dot(h1, w2_ref[l], preferred_element_type=jnp.float32)
        x = _layer_norm(x1 + ffo, n2w, n2b, feat_mask, inv_d)

    # final TransformerEncoder norm
    out_ref[...] = _layer_norm(x, fn_ref[0:1, :], fn_ref[1:2, :], feat_mask, inv_d)


# ----------------------------------------------------------------------------
# Host-side parameter packing (PyTorch-convention shapes in, folded slabs out)
# ----------------------------------------------------------------------------
def _pad_row(v):
    v = jnp.asarray(v, jnp.float32).ravel()
    return jnp.pad(v, (0, D_PAD - v.shape[0]))


def _pad_ln_bias(v):
    # LayerNorm bias: lane D_MODEL = 1.0 re-creates the constant bias lane.
    return _pad_row(v).at[ONES_LANE].set(1.0)


def _pad_mat(m):
    m = jnp.asarray(m, jnp.float32)
    return jnp.pad(m, ((0, D_PAD - m.shape[0]), (0, D_PAD - m.shape[1])))


def _aug(w_t_head, b_head):
    # Append the bias as one extra input row, consumed by the constant-1 lane.
    return jnp.concatenate([jnp.asarray(w_t_head, jnp.float32),
                            jnp.asarray(b_head, jnp.float32)[None, :]], axis=0)


def pack_params(layer_params, final_norm):
    m_l, vo_l, w1_l, w2_l, vec_l = [], [], [], [], []
    for p in layer_params:
        wq_t, wk_t = p["wq"].T, p["wk"].T          # pre-transposed (in, out)
        wv_t, wo_t = p["wv"].T, p["wo"].T
        m_h, vo_h = [], []
        for h in range(NHEAD):
            sl = slice(h * HEAD_DIM, (h + 1) * HEAD_DIM)
            q_aug = _aug(wq_t[:, sl], p["bq"][sl])             # (D+1, hd)
            k_aug = _aug(wk_t[:, sl], p["bk"][sl])
            v_aug = _aug(wv_t[:, sl], p["bv"][sl])
            m_h.append(_pad_mat(SCALE * (q_aug @ k_aug.T)))    # (128, 128)
            vo_h.append(_pad_mat(v_aug @ wo_t[sl, :]))         # (128, 128)
        m_l.append(jnp.stack(m_h))
        vo_l.append(jnp.stack(vo_h))

        w1a = jnp.zeros((D_PAD, D_PAD), jnp.float32)
        w1a = w1a.at[:D_MODEL, :DIM_FF].set(p["w1"].T)
        w1a = w1a.at[D_MODEL, :DIM_FF].set(p["b1"])            # b1 via bias lane
        w1a = w1a.at[D_MODEL, DIM_FF].set(1.0)                 # bias lane for h1
        w2a = jnp.zeros((D_PAD, D_PAD), jnp.float32)
        w2a = w2a.at[:DIM_FF, :D_MODEL].set(p["w2"].T)
        w2a = w2a.at[DIM_FF, :D_MODEL].set(p["b2"])            # b2 via h1 bias lane
        w1_l.append(w1a)
        w2_l.append(w2a)

        vec_l.append(jnp.stack([
            _pad_row(p["bo"]),
            _pad_row(p["n1w"]), _pad_ln_bias(p["n1b"]),
            _pad_row(p["n2w"]), _pad_ln_bias(p["n2b"]),
            jnp.zeros((D_PAD,), jnp.float32),
            jnp.zeros((D_PAD,), jnp.float32),
            jnp.zeros((D_PAD,), jnp.float32),
        ]))

    if final_norm is None:
        fw = jnp.ones((D_MODEL,), jnp.float32)
        fb = jnp.zeros((D_MODEL,), jnp.float32)
    else:
        fw, fb = final_norm
    fn = jnp.stack([_pad_row(fw), _pad_row(fb)])
    return (jnp.stack(m_l), jnp.stack(vo_l), jnp.stack(w1_l),
            jnp.stack(w2_l), jnp.stack(vec_l), fn)


@jax.jit
def _encoder_jit(src_sbd, pos_sbd, m, vo, w1, w2, vec, fn):
    s, b, d = src_sbd.shape
    t = s * b
    # seq-major flatten (no transposes) + zero lane-padding to 128
    x = jnp.pad(src_sbd.reshape(t, d), ((0, 0), (0, D_PAD - d)))
    p = jnp.pad(pos_sbd.reshape(t, d), ((0, 0), (0, D_PAD - d)))
    kernel = functools.partial(encoder_stack_kernel, batch=b, nhead=NHEAD,
                               nlayers=m.shape[0], d_model=d)
    vmem = pl.BlockSpec(memory_space=pltpu.MemorySpace.VMEM)
    out = pl.pallas_call(
        kernel,
        out_shape=jax.ShapeDtypeStruct((t, D_PAD), jnp.float32),
        in_specs=[vmem] * 8,
        out_specs=vmem,
    )(x, p, m, vo, w1, w2, vec, fn)
    return out[:, :d].reshape(s, b, d)


def transformer_encoder(src_sbd, pos_sbd, packed_params):
    """src/pos: (S, B, D) seq-first, like the PyTorch module."""
    return _encoder_jit(src_sbd, pos_sbd, *packed_params)


# ----------------------------------------------------------------------------
# Pure-JAX reference (mirrors the PyTorch module) for a built-in sanity check
# ----------------------------------------------------------------------------
def reference_encoder(src, pos, layer_params, final_norm):
    def ln(x, w, b):
        mu = x.mean(-1, keepdims=True)
        var = ((x - mu) ** 2).mean(-1, keepdims=True)
        return (x - mu) / jnp.sqrt(var + EPS) * w + b

    x = src
    s, bsz, d = x.shape
    hd = d // NHEAD
    for p in layer_params:
        qk_in = x + pos
        q = qk_in @ p["wq"].T + p["bq"]
        k = qk_in @ p["wk"].T + p["bk"]
        v = x @ p["wv"].T + p["bv"]
        qh = q.reshape(s, bsz, NHEAD, hd)
        kh = k.reshape(s, bsz, NHEAD, hd)
        vh = v.reshape(s, bsz, NHEAD, hd)
        sc = jnp.einsum('qbhd,kbhd->bhqk', qh, kh) / (hd ** 0.5)
        a = jax.nn.softmax(sc, axis=-1)
        o = jnp.einsum('bhqk,kbhd->qbhd', a, vh).reshape(s, bsz, d)
        attn = o @ p["wo"].T + p["bo"]
        x1 = ln(x + attn, p["n1w"], p["n1b"])
        h1 = jax.nn.relu(x1 @ p["w1"].T + p["b1"])
        ffo = h1 @ p["w2"].T + p["b2"]
        x = ln(x1 + ffo, p["n2w"], p["n2b"])
    if final_norm is not None:
        x = ln(x, final_norm[0], final_norm[1])
    return x


def init_layer_params(key):
    ks = jax.random.split(key, 12)
    w = 0.05
    b = 0.01
    return {
        "wq": w * jax.random.normal(ks[0], (D_MODEL, D_MODEL), jnp.float32),
        "wk": w * jax.random.normal(ks[1], (D_MODEL, D_MODEL), jnp.float32),
        "wv": w * jax.random.normal(ks[2], (D_MODEL, D_MODEL), jnp.float32),
        "wo": w * jax.random.normal(ks[3], (D_MODEL, D_MODEL), jnp.float32),
        "w1": w * jax.random.normal(ks[4], (DIM_FF, D_MODEL), jnp.float32),
        "w2": w * jax.random.normal(ks[5], (D_MODEL, DIM_FF), jnp.float32),
        "bq": b * jax.random.normal(ks[6], (D_MODEL,), jnp.float32),
        "bk": b * jax.random.normal(ks[7], (D_MODEL,), jnp.float32),
        "bv": b * jax.random.normal(ks[8], (D_MODEL,), jnp.float32),
        "bo": b * jax.random.normal(ks[9], (D_MODEL,), jnp.float32),
        "b1": b * jax.random.normal(ks[10], (DIM_FF,), jnp.float32),
        "b2": b * jax.random.normal(ks[11], (D_MODEL,), jnp.float32),
        "n1w": jnp.ones((D_MODEL,), jnp.float32),
        "n1b": jnp.zeros((D_MODEL,), jnp.float32),
        "n2w": jnp.ones((D_MODEL,), jnp.float32),
        "n2b": jnp.zeros((D_MODEL,), jnp.float32),
    }


if __name__ == "__main__":
    root = jax.random.PRNGKey(0)
    k_src, k_pos, k_layers = jax.random.split(root, 3)

    # PyTorch layout: (seq, batch, d_model)
    src = jax.random.normal(k_src, (SEQ, BATCH, D_MODEL), jnp.float32)
    pos = jax.random.normal(k_pos, (SEQ, BATCH, D_MODEL), jnp.float32)

    layer_keys = jax.random.split(k_layers, NUM_LAYERS)
    layer_params = [init_layer_params(k) for k in layer_keys]
    final_norm = (jnp.ones((D_MODEL,), jnp.float32),
                  jnp.zeros((D_MODEL,), jnp.float32))

    packed = pack_params(layer_params, final_norm)
    out = transformer_encoder(src, pos, packed)
    out = jax.block_until_ready(out)
    assert out.shape == (SEQ, BATCH, D_MODEL)
    assert bool(jnp.all(jnp.isfinite(out)))

    # Tolerance relaxed to 2e-3: pl.reciprocal(approx=True) in the softmax and
    # the host-side weight folding change rounding order slightly.
    ref = reference_encoder(src, pos, layer_params, final_norm)
    assert np.allclose(np.asarray(out), np.asarray(ref), rtol=2e-3, atol=2e-3)
    print("KERNEL_OK")
</pallas_src>

<mosaic_0001>
module attributes {stable_mosaic.version = 11 : i64} {
  func.func @encoder_stack_kernel(%arg0: memref<16x128xf32, #tpu.memory_space<vmem>>, %arg1: memref<16x128xf32, #tpu.memory_space<vmem>>, %arg2: memref<2x4x128x128xf32, #tpu.memory_space<vmem>>, %arg3: memref<2x4x128x128xf32, #tpu.memory_space<vmem>>, %arg4: memref<2x128x128xf32, #tpu.memory_space<vmem>>, %arg5: memref<2x128x128xf32, #tpu.memory_space<vmem>>, %arg6: memref<2x8x128xf32, #tpu.memory_space<vmem>>, %arg7: memref<2x128xf32, #tpu.memory_space<vmem>>, %arg8: memref<16x128xf32, #tpu.memory_space<vmem>>) attributes {dimension_semantics = [], scalar_prefetch = 0 : i64, scratch_operands = 0 : i64, tpu.core_type = #tpu.core_type<tc>} {
    %0 = tpu.iota {dimensions = array<i32: 1>} : vector<1x128xi32>
    %c32_i32 = arith.constant 32 : i32
    %1 = vector.broadcast %c32_i32 : i32 to vector<1x128xi32>
    %2 = arith.cmpi slt, %0, %1 : vector<1x128xi32>
    %3 = arith.extui %2 : vector<1x128xi1> to vector<1x128xi32>
    %4 = arith.sitofp %3 : vector<1x128xi32> to vector<1x128xf32>
    %c32_i32_0 = arith.constant 32 : i32
    %5 = vector.broadcast %c32_i32_0 : i32 to vector<1x128xi32>
    %6 = arith.cmpi eq, %0, %5 : vector<1x128xi32>
    %7 = arith.extui %6 : vector<1x128xi1> to vector<1x128xi32>
    %8 = arith.sitofp %7 : vector<1x128xi32> to vector<1x128xf32>
    %9 = tpu.iota {dimensions = array<i32: 0>} : vector<16x16xi32>
    %10 = tpu.iota {dimensions = array<i32: 1>} : vector<16x16xi32>
    %c2_i32 = arith.constant 2 : i32
    %c0_i32 = arith.constant 0 : i32
    %11 = arith.cmpi eq, %c2_i32, %c0_i32 : i32
    %c1_i32 = arith.constant 1 : i32
    %12 = arith.select %11, %c1_i32, %c2_i32 : i32
    %13 = vector.broadcast %12 : i32 to vector<16x16xi32>
    %14 = arith.remsi %9, %13 : vector<16x16xi32>
    %c0_i32_1 = arith.constant 0 : i32
    %15 = vector.broadcast %c0_i32_1 : i32 to vector<16x16xi32>
    %16 = arith.cmpi ne, %14, %15 : vector<16x16xi32>
    %c0_i32_2 = arith.constant 0 : i32
    %17 = vector.broadcast %c0_i32_2 : i32 to vector<16x16xi32>
    %18 = arith.cmpi slt, %14, %17 : vector<16x16xi32>
    %c0_i32_3 = arith.constant 0 : i32
    %19 = arith.cmpi slt, %12, %c0_i32_3 : i32
    %20 = vector.broadcast %19 : i1 to vector<16x16xi1>
    %21 = vector.broadcast %20 : vector<16x16xi1> to vector<16x16xi1>
    %22 = arith.xori %18, %21 : vector<16x16xi1>
    %23 = arith.andi %22, %16 : vector<16x16xi1>
    %24 = vector.broadcast %12 : i32 to vector<16x16xi32>
    %25 = arith.addi %14, %24 : vector<16x16xi32>
    %26 = arith.select %23, %25, %14 : vector<16x16xi1>, vector<16x16xi32>
    %c2_i32_4 = arith.constant 2 : i32
    %c0_i32_5 = arith.constant 0 : i32
    %27 = arith.cmpi eq, %c2_i32_4, %c0_i32_5 : i32
    %c1_i32_6 = arith.constant 1 : i32
    %28 = arith.select %27, %c1_i32_6, %c2_i32_4 : i32
    %29 = vector.broadcast %28 : i32 to vector<16x16xi32>
    %30 = arith.remsi %10, %29 : vector<16x16xi32>
    %c0_i32_7 = arith.constant 0 : i32
    %31 = vector.broadcast %c0_i32_7 : i32 to vector<16x16xi32>
    %32 = arith.cmpi ne, %30, %31 : vector<16x16xi32>
    %c0_i32_8 = arith.constant 0 : i32
    %33 = vector.broadcast %c0_i32_8 : i32 to vector<16x16xi32>
    %34 = arith.cmpi slt, %30, %33 : vector<16x16xi32>
    %c0_i32_9 = arith.constant 0 : i32
    %35 = arith.cmpi slt, %28, %c0_i32_9 : i32
    %36 = vector.broadcast %35 : i1 to vector<16x16xi1>
    %37 = vector.broadcast %36 : vector<16x16xi1> to vector<16x16xi1>
    %38 = arith.xori %34, %37 : vector<16x16xi1>
    %39 = arith.andi %38, %32 : vector<16x16xi1>
    %40 = vector.broadcast %28 : i32 to vector<16x16xi32>
    %41 = arith.addi %30, %40 : vector<16x16xi32>
    %42 = arith.select %39, %41, %30 : vector<16x16xi1>, vector<16x16xi32>
    %43 = arith.cmpi eq, %26, %42 : vector<16x16xi32>
    %cst = arith.constant 0.000000e+00 : f32
    %cst_10 = arith.constant -1.000000e+30 : f32
    %44 = vector.broadcast %cst : f32 to vector<16x16xf32>
    %45 = vector.broadcast %cst_10 : f32 to vector<16x16xf32>
    %46 = arith.select %43, %44, %45 : vector<16x16xi1>, vector<16x16xf32>
    %c0 = arith.constant 0 : index
    %c0_11 = arith.constant 0 : index
    %47 = vector.load %arg0[%c0, %c0_11] : memref<16x128xf32, #tpu.memory_space<vmem>>, vector<16x128xf32>
    %48 = vector.broadcast %8 : vector<1x128xf32> to vector<16x128xf32>
    %49 = arith.addf %47, %48 : vector<16x128xf32>
    %c0_12 = arith.constant 0 : index
    %c0_13 = arith.constant 0 : index
    %50 = vector.load %arg1[%c0_12, %c0_13] : memref<16x128xf32, #tpu.memory_space<vmem>>, vector<16x128xf32>
    %c0_14 = arith.constant 0 : index
    %c0_15 = arith.constant 0 : index
    %c0_16 = arith.constant 0 : index
    %51 = vector.load %arg6[%c0_14, %c0_15, %c0_16] : memref<2x8x128xf32, #tpu.memory_space<vmem>>, vector<1x8x128xf32>
    %52 = vector.shape_cast %51 : vector<1x8x128xf32> to vector<8x128xf32>
    %53 = vector.extract_strided_slice %52 {offsets = [0, 0], sizes = [1, 128], strides = [1, 1]} : vector<8x128xf32> to vector<1x128xf32>
    %54 = vector.extract_strided_slice %52 {offsets = [1, 0], sizes = [1, 128], strides = [1, 1]} : vector<8x128xf32> to vector<1x128xf32>
    %55 = vector.extract_strided_slice %52 {offsets = [2, 0], sizes = [1, 128], strides = [1, 1]} : vector<8x128xf32> to vector<1x128xf32>
    %56 = vector.extract_strided_slice %52 {offsets = [3, 0], sizes = [1, 128], strides = [1, 1]} : vector<8x128xf32> to vector<1x128xf32>
    %57 = vector.extract_strided_slice %52 {offsets = [4, 0], sizes = [1, 128], strides = [1, 1]} : vector<8x128xf32> to vector<1x128xf32>
    %58 = arith.addf %49, %50 : vector<16x128xf32>
    %c0_17 = arith.constant 0 : index
    %c0_18 = arith.constant 0 : index
    %c0_19 = arith.constant 0 : index
    %c0_20 = arith.constant 0 : index
    %59 = vector.load %arg2[%c0_17, %c0_18, %c0_19, %c0_20] : memref<2x4x128x128xf32, #tpu.memory_space<vmem>>, vector<1x1x128x128xf32>
    %60 = vector.shape_cast %59 : vector<1x1x128x128xf32> to vector<128x128xf32>
    %cst_21 = arith.constant dense<0.000000e+00> : vector<16x128xf32>
    %61 = tpu.matmul %58, %60, %cst_21 {dimension_numbers = #tpu.dot_dimension_numbers<[1], [0], [0], [1], [0, 0, 1, 1], [], []>} : vector<16x128xf32>, vector<128x128xf32>, vector<16x128xf32> -> vector<16x128xf32>
    "tpu.trace_start"() <{level = 10 : i32, message = "qd,kd->qk"}> : () -> ()
    %cst_22 = arith.constant dense<0.000000e+00> : vector<16x16xf32>
    %62 = tpu.matmul %61, %58, %cst_22 {dimension_numbers = #tpu.dot_dimension_numbers<[1], [1], [0], [0], [0, 0, 1, 0], [], []>} : vector<16x128xf32>, vector<16x128xf32>, vector<16x16xf32> -> vector<16x16xf32>
    "tpu.trace_stop"() : () -> ()
    %63 = arith.addf %62, %46 : vector<16x16xf32>
    %cst_23 = arith.constant dense<0xFF800000> : vector<16xf32>
    %64 = vector.multi_reduction <maximumf>, %63, %cst_23 [1] : vector<16x16xf32> to vector<16xf32>
    %65 = vector.shape_cast %64 : vector<16xf32> to vector<16x1xf32>
    %66 = vector.broadcast %65 : vector<16x1xf32> to vector<16x16xf32>
    %67 = arith.subf %63, %66 : vector<16x16xf32>
    %68 = math.exp %67 : vector<16x16xf32>
    %cst_24 = arith.constant dense<0.000000e+00> : vector<16xf32>
    %69 = vector.multi_reduction <add>, %68, %cst_24 [1] : vector<16x16xf32> to vector<16xf32>
    %70 = vector.shape_cast %69 : vector<16xf32> to vector<16x1xf32>
    %71 = tpu.reciprocal %70 {approx = true} : vector<16x1xf32> -> vector<16x1xf32>
    %72 = vector.broadcast %71 : vector<16x1xf32> to vector<16x16xf32>
    %73 = arith.mulf %68, %72 : vector<16x16xf32>
    %c0_25 = arith.constant 0 : index
    %c0_26 = arith.constant 0 : index
    %c0_27 = arith.constant 0 : index
    %c0_28 = arith.constant 0 : index
    %74 = vector.load %arg3[%c0_25, %c0_26, %c0_27, %c0_28] : memref<2x4x128x128xf32, #tpu.memory_space<vmem>>, vector<1x1x128x128xf32>
    %75 = vector.shape_cast %74 : vector<1x1x128x128xf32> to vector<128x128xf32>
    %cst_29 = arith.constant dense<0.000000e+00> : vector<16x128xf32>
    %76 = tpu.matmul %49, %75, %cst_29 {dimension_numbers = #tpu.dot_dimension_numbers<[1], [0], [0], [1], [0, 0, 1, 1], [], []>} : vector<16x128xf32>, vector<128x128xf32>, vector<16x128xf32> -> vector<16x128xf32>
    %cst_30 = arith.constant dense<0.000000e+00> : vector<16x128xf32>
    %77 = tpu.matmul %73, %76, %cst_30 {dimension_numbers = #tpu.dot_dimension_numbers<[1], [0], [0], [1], [0, 0, 1, 1], [], []>} : vector<16x16xf32>, vector<16x128xf32>, vector<16x128xf32> -> vector<16x128xf32>
    %78 = vector.broadcast %53 : vector<1x128xf32> to vector<16x128xf32>
    %79 = arith.addf %78, %77 : vector<16x128xf32>
    %c0_31 = arith.constant 0 : index
    %c1 = arith.constant 1 : index
    %c0_32 = arith.constant 0 : index
    %c0_33 = arith.constant 0 : index
    %80 = vector.load %arg2[%c0_31, %c1, %c0_32, %c0_33] : memref<2x4x128x128xf32, #tpu.memory_space<vmem>>, vector<1x1x128x128xf32>
    %81 = vector.shape_cast %80 : vector<1x1x128x128xf32> to vector<128x128xf32>
    %cst_34 = arith.constant dense<0.000000e+00> : vector<16x128xf32>
    %82 = tpu.matmul %58, %81, %cst_34 {dimension_numbers = #tpu.dot_dimension_numbers<[1], [0], [0], [1], [0, 0, 1, 1], [], []>} : vector<16x128xf32>, vector<128x128xf32>, vector<16x128xf32> -> vector<16x128xf32>
    "tpu.trace_start"() <{level = 10 : i32, message = "qd,kd->qk"}> : () -> ()
    %cst_35 = arith.constant dense<0.000000e+00> : vector<16x16xf32>
    %83 = tpu.matmul %82, %58, %cst_35 {dimension_numbers = #tpu.dot_dimension_numbers<[1], [1], [0], [0], [0, 0, 1, 0], [], []>} : vector<16x128xf32>, vector<16x128xf32>, vector<16x16xf32> -> vector<16x16xf32>
    "tpu.trace_stop"() : () -> ()
    %84 = arith.addf %83, %46 : vector<16x16xf32>
    %cst_36 = arith.constant dense<0xFF800000> : vector<16xf32>
    %85 = vector.multi_reduction <maximumf>, %84, %cst_36 [1] : vector<16x16xf32> to vector<16xf32>
    %86 = vector.shape_cast %85 : vector<16xf32> to vector<16x1xf32>
    %87 = vector.broadcast %86 : vector<16x1xf32> to vector<16x16xf32>
    %88 = arith.subf %84, %87 : vector<16x16xf32>
    %89 = math.exp %88 : vector<16x16xf32>
    %cst_37 = arith.constant dense<0.000000e+00> : vector<16xf32>
    %90 = vector.multi_reduction <add>, %89, %cst_37 [1] : vector<16x16xf32> to vector<16xf32>
    %91 = vector.shape_cast %90 : vector<16xf32> to vector<16x1xf32>
    %92 = tpu.reciprocal %91 {approx = true} : vector<16x1xf32> -> vector<16x1xf32>
    %93 = vector.broadcast %92 : vector<16x1xf32> to vector<16x16xf32>
    %94 = arith.mulf %89, %93 : vector<16x16xf32>
    %c0_38 = arith.constant 0 : index
    %c1_39 = arith.constant 1 : index
    %c0_40 = arith.constant 0 : index
    %c0_41 = arith.constant 0 : index
    %95 = vector.load %arg3[%c0_38, %c1_39, %c0_40, %c0_41] : memref<2x4x128x128xf32, #tpu.memory_space<vmem>>, vector<1x1x128x128xf32>
    %96 = vector.shape_cast %95 : vector<1x1x128x128xf32> to vector<128x128xf32>
    %cst_42 = arith.constant dense<0.000000e+00> : vector<16x128xf32>
    %97 = tpu.matmul %49, %96, %cst_42 {dimension_numbers = #tpu.dot_dimension_numbers<[1], [0], [0], [1], [0, 0, 1, 1], [], []>} : vector<16x128xf32>, vector<128x128xf32>, vector<16x128xf32> -> vector<16x128xf32>
    %cst_43 = arith.constant dense<0.000000e+00> : vector<16x128xf32>
    %98 = tpu.matmul %94, %97, %cst_43 {dimension_numbers = #tpu.dot_dimension_numbers<[1], [0], [0], [1], [0, 0, 1, 1], [], []>} : vector<16x16xf32>, vector<16x128xf32>, vector<16x128xf32> -> vector<16x128xf32>
    %99 = arith.addf %79, %98 : vector<16x128xf32>
    %c0_44 = arith.constant 0 : index
    %c2 = arith.constant 2 : index
    %c0_45 = arith.constant 0 : index
    %c0_46 = arith.constant 0 : index
    %100 = vector.load %arg2[%c0_44, %c2, %c0_45, %c0_46] : memref<2x4x128x128xf32, #tpu.memory_space<vmem>>, vector<1x1x128x128xf32>
    %101 = vector.shape_cast %100 : vector<1x1x128x128xf32> to vector<128x128xf32>
    %cst_47 = arith.constant dense<0.000000e+00> : vector<16x128xf32>
    %102 = tpu.matmul %58, %101, %cst_47 {dimension_numbers = #tpu.dot_dimension_numbers<[1], [0], [0], [1], [0, 0, 1, 1], [], []>} : vector<16x128xf32>, vector<128x128xf32>, vector<16x128xf32> -> vector<16x128xf32>
    "tpu.trace_start"() <{level = 10 : i32, message = "qd,kd->qk"}> : () -> ()
    %cst_48 = arith.constant dense<0.000000e+00> : vector<16x16xf32>
    %103 = tpu.matmul %102, %58, %cst_48 {dimension_numbers = #tpu.dot_dimension_numbers<[1], [1], [0], [0], [0, 0, 1, 0], [], []>} : vector<16x128xf32>, vector<16x128xf32>, vector<16x16xf32> -> vector<16x16xf32>
    "tpu.trace_stop"() : () -> ()
    %104 = arith.addf %103, %46 : vector<16x16xf32>
    %cst_49 = arith.constant dense<0xFF800000> : vector<16xf32>
    %105 = vector.multi_reduction <maximumf>, %104, %cst_49 [1] : vector<16x16xf32> to vector<16xf32>
    %106 = vector.shape_cast %105 : vector<16xf32> to vector<16x1xf32>
    %107 = vector.broadcast %106 : vector<16x1xf32> to vector<16x16xf32>
    %108 = arith.subf %104, %107 : vector<16x16xf32>
    %109 = math.exp %108 : vector<16x16xf32>
    %cst_50 = arith.constant dense<0.000000e+00> : vector<16xf32>
    %110 = vector.multi_reduction <add>, %109, %cst_50 [1] : vector<16x16xf32> to vector<16xf32>
    %111 = vector.shape_cast %110 : vector<16xf32> to vector<16x1xf32>
    %112 = tpu.reciprocal %111 {approx = true} : vector<16x1xf32> -> vector<16x1xf32>
    %113 = vector.broadcast %112 : vector<16x1xf32> to vector<16x16xf32>
    %114 = arith.mulf %109, %113 : vector<16x16xf32>
    %c0_51 = arith.constant 0 : index
    %c2_52 = arith.constant 2 : index
    %c0_53 = arith.constant 0 : index
    %c0_54 = arith.constant 0 : index
    %115 = vector.load %arg3[%c0_51, %c2_52, %c0_53, %c0_54] : memref<2x4x128x128xf32, #tpu.memory_space<vmem>>, vector<1x1x128x128xf32>
    %116 = vector.shape_cast %115 : vector<1x1x128x128xf32> to vector<128x128xf32>
    %cst_55 = arith.constant dense<0.000000e+00> : vector<16x128xf32>
    %117 = tpu.matmul %49, %116, %cst_55 {dimension_numbers = #tpu.dot_dimension_numbers<[1], [0], [0], [1], [0, 0, 1, 1], [], []>} : vector<16x128xf32>, vector<128x128xf32>, vector<16x128xf32> -> vector<16x128xf32>
    %cst_56 = arith.constant dense<0.000000e+00> : vector<16x128xf32>
    %118 = tpu.matmul %114, %117, %cst_56 {dimension_numbers = #tpu.dot_dimension_numbers<[1], [0], [0], [1], [0, 0, 1, 1], [], []>} : vector<16x16xf32>, vector<16x128xf32>, vector<16x128xf32> -> vector<16x128xf32>
    %119 = arith.addf %99, %118 : vector<16x128xf32>
    %c0_57 = arith.constant 0 : index
    %c3 = arith.constant 3 : index
    %c0_58 = arith.constant 0 : index
    %c0_59 = arith.constant 0 : index
    %120 = vector.load %arg2[%c0_57, %c3, %c0_58, %c0_59] : memref<2x4x128x128xf32, #tpu.memory_space<vmem>>, vector<1x1x128x128xf32>
    %121 = vector.shape_cast %120 : vector<1x1x128x128xf32> to vector<128x128xf32>
    %cst_60 = arith.constant dense<0.000000e+00> : vector<16x128xf32>
    %122 = tpu.matmul %58, %121, %cst_60 {dimension_numbers = #tpu.dot_dimension_numbers<[1], [0], [0], [1], [0, 0, 1, 1], [], []>} : vector<16x128xf32>, vector<128x128xf32>, vector<16x128xf32> -> vector<16x128xf32>
    "tpu.trace_start"() <{level = 10 : i32, message = "qd,kd->qk"}> : () -> ()
    %cst_61 = arith.constant dense<0.000000e+00> : vector<16x16xf32>
    %123 = tpu.matmul %122, %58, %cst_61 {dimension_numbers = #tpu.dot_dimension_numbers<[1], [1], [0], [0], [0, 0, 1, 0], [], []>} : vector<16x128xf32>, vector<16x128xf32>, vector<16x16xf32> -> vector<16x16xf32>
    "tpu.trace_stop"() : () -> ()
    %124 = arith.addf %123, %46 : vector<16x16xf32>
    %cst_62 = arith.constant dense<0xFF800000> : vector<16xf32>
    %125 = vector.multi_reduction <maximumf>, %124, %cst_62 [1] : vector<16x16xf32> to vector<16xf32>
    %126 = vector.shape_cast %125 : vector<16xf32> to vector<16x1xf32>
    %127 = vector.broadcast %126 : vector<16x1xf32> to vector<16x16xf32>
    %128 = arith.subf %124, %127 : vector<16x16xf32>
    %129 = math.exp %128 : vector<16x16xf32>
    %cst_63 = arith.constant dense<0.000000e+00> : vector<16xf32>
    %130 = vector.multi_reduction <add>, %129, %cst_63 [1] : vector<16x16xf32> to vector<16xf32>
    %131 = vector.shape_cast %130 : vector<16xf32> to vector<16x1xf32>
    %132 = tpu.reciprocal %131 {approx = true} : vector<16x1xf32> -> vector<16x1xf32>
    %133 = vector.broadcast %132 : vector<16x1xf32> to vector<16x16xf32>
    %134 = arith.mulf %129, %133 : vector<16x16xf32>
    %c0_64 = arith.constant 0 : index
    %c3_65 = arith.constant 3 : index
    %c0_66 = arith.constant 0 : index
    %c0_67 = arith.constant 0 : index
    %135 = vector.load %arg3[%c0_64, %c3_65, %c0_66, %c0_67] : memref<2x4x128x128xf32, #tpu.memory_space<vmem>>, vector<1x1x128x128xf32>
    %136 = vector.shape_cast %135 : vector<1x1x128x128xf32> to vector<128x128xf32>
    %cst_68 = arith.constant dense<0.000000e+00> : vector<16x128xf32>
    %137 = tpu.matmul %49, %136, %cst_68 {dimension_numbers = #tpu.dot_dimension_numbers<[1], [0], [0], [1], [0, 0, 1, 1], [], []>} : vector<16x128xf32>, vector<128x128xf32>, vector<16x128xf32> -> vector<16x128xf32>
    %cst_69 = arith.constant dense<0.000000e+00> : vector<16x128xf32>
    %138 = tpu.matmul %134, %137, %cst_69 {dimension_numbers = #tpu.dot_dimension_numbers<[1], [0], [0], [1], [0, 0, 1, 1], [], []>} : vector<16x16xf32>, vector<16x128xf32>, vector<16x128xf32> -> vector<16x128xf32>
    %139 = arith.addf %119, %138 : vector<16x128xf32>
    %140 = arith.addf %49, %139 : vector<16x128xf32>
    %141 = vector.broadcast %4 : vector<1x128xf32> to vector<16x128xf32>
    %142 = arith.mulf %140, %141 : vector<16x128xf32>
    %cst_70 = arith.constant dense<0.000000e+00> : vector<16xf32>
    %143 = vector.multi_reduction <add>, %142, %cst_70 [1] : vector<16x128xf32> to vector<16xf32>
    %144 = vector.shape_cast %143 : vector<16xf32> to vector<16x1xf32>
    %cst_71 = arith.constant 3.125000e-02 : f32
    %145 = vector.broadcast %cst_71 : f32 to vector<16x1xf32>
    %146 = arith.mulf %144, %145 : vector<16x1xf32>
    %147 = vector.broadcast %146 : vector<16x1xf32> to vector<16x128xf32>
    %148 = arith.subf %140, %147 : vector<16x128xf32>
    %149 = vector.broadcast %4 : vector<1x128xf32> to vector<16x128xf32>
    %150 = arith.mulf %148, %149 : vector<16x128xf32>
    %151 = arith.mulf %150, %150 : vector<16x128xf32>
    %cst_72 = arith.constant dense<0.000000e+00> : vector<16xf32>
    %152 = vector.multi_reduction <add>, %151, %cst_72 [1] : vector<16x128xf32> to vector<16xf32>
    %153 = vector.shape_cast %152 : vector<16xf32> to vector<16x1xf32>
    %cst_73 = arith.constant 3.125000e-02 : f32
    %154 = vector.broadcast %cst_73 : f32 to vector<16x1xf32>
    %155 = arith.mulf %153, %154 : vector<16x1xf32>
    %cst_74 = arith.constant 9.99999974E-6 : f32
    %156 = vector.broadcast %cst_74 : f32 to vector<16x1xf32>
    %157 = arith.addf %155, %156 : vector<16x1xf32>
    %158 = math.rsqrt %157 : vector<16x1xf32>
    %159 = vector.broadcast %158 : vector<16x1xf32> to vector<16x128xf32>
    %160 = arith.mulf %150, %159 : vector<16x128xf32>
    %161 = vector.broadcast %54 : vector<1x128xf32> to vector<16x128xf32>
    %162 = arith.mulf %160, %161 : vector<16x128xf32>
    %163 = vector.broadcast %55 : vector<1x128xf32> to vector<16x128xf32>
    %164 = arith.addf %162, %163 : vector<16x128xf32>
    %c0_75 = arith.constant 0 : index
    %c0_76 = arith.constant 0 : index
    %c0_77 = arith.constant 0 : index
    %165 = vector.load %arg4[%c0_75, %c0_76, %c0_77] : memref<2x128x128xf32, #tpu.memory_space<vmem>>, vector<1x128x128xf32>
    %166 = vector.shape_cast %165 : vector<1x128x128xf32> to vector<128x128xf32>
    %cst_78 = arith.constant dense<0.000000e+00> : vector<16x128xf32>
    %167 = tpu.matmul %164, %166, %cst_78 {dimension_numbers = #tpu.dot_dimension_numbers<[1], [0], [0], [1], [0, 0, 1, 1], [], []>} : vector<16x128xf32>, vector<128x128xf32>, vector<16x128xf32> -> vector<16x128xf32>
    %cst_79 = arith.constant 0.000000e+00 : f32
    %168 = vector.broadcast %cst_79 : f32 to vector<16x128xf32>
    %169 = arith.maximumf %167, %168 : vector<16x128xf32>
    %c0_80 = arith.constant 0 : index
    %c0_81 = arith.constant 0 : index
    %c0_82 = arith.constant 0 : index
    %170 = vector.load %arg5[%c0_80, %c0_81, %c0_82] : memref<2x128x128xf32, #tpu.memory_space<vmem>>, vector<1x128x128xf32>
    %171 = vector.shape_cast %170 : vector<1x128x128xf32> to vector<128x128xf32>
    %cst_83 = arith.constant dense<0.000000e+00> : vector<16x128xf32>
    %172 = tpu.matmul %169, %171, %cst_83 {dimension_numbers = #tpu.dot_dimension_numbers<[1], [0], [0], [1], [0, 0, 1, 1], [], []>} : vector<16x128xf32>, vector<128x128xf32>, vector<16x128xf32> -> vector<16x128xf32>
    %173 = arith.addf %164, %172 : vector<16x128xf32>
    %174 = vector.broadcast %4 : vector<1x128xf32> to vector<16x128xf32>
    %175 = arith.mulf %173, %174 : vector<16x128xf32>
    %cst_84 = arith.constant dense<0.000000e+00> : vector<16xf32>
    %176 = vector.multi_reduction <add>, %175, %cst_84 [1] : vector<16x128xf32> to vector<16xf32>
    %177 = vector.shape_cast %176 : vector<16xf32> to vector<16x1xf32>
    %cst_85 = arith.constant 3.125000e-02 : f32
    %178 = vector.broadcast %cst_85 : f32 to vector<16x1xf32>
    %179 = arith.mulf %177, %178 : vector<16x1xf32>
    %180 = vector.broadcast %179 : vector<16x1xf32> to vector<16x128xf32>
    %181 = arith.subf %173, %180 : vector<16x128xf32>
    %182 = vector.broadcast %4 : vector<1x128xf32> to vector<16x128xf32>
    %183 = arith.mulf %181, %182 : vector<16x128xf32>
    %184 = arith.mulf %183, %183 : vector<16x128xf32>
    %cst_86 = arith.constant dense<0.000000e+00> : vector<16xf32>
    %185 = vector.multi_reduction <add>, %184, %cst_86 [1] : vector<16x128xf32> to vector<16xf32>
    %186 = vector.shape_cast %185 : vector<16xf32> to vector<16x1xf32>
    %cst_87 = arith.constant 3.125000e-02 : f32
    %187 = vector.broadcast %cst_87 : f32 to vector<16x1xf32>
    %188 = arith.mulf %186, %187 : vector<16x1xf32>
    %cst_88 = arith.constant 9.99999974E-6 : f32
    %189 = vector.broadcast %cst_88 : f32 to vector<16x1xf32>
    %190 = arith.addf %188, %189 : vector<16x1xf32>
    %191 = math.rsqrt %190 : vector<16x1xf32>
    %192 = vector.broadcast %191 : vector<16x1xf32> to vector<16x128xf32>
    %193 = arith.mulf %183, %192 : vector<16x128xf32>
    %194 = vector.broadcast %56 : vector<1x128xf32> to vector<16x128xf32>
    %195 = arith.mulf %193, %194 : vector<16x128xf32>
    %196 = vector.broadcast %57 : vector<1x128xf32> to vector<16x128xf32>
    %197 = arith.addf %195, %196 : vector<16x128xf32>
    %c1_89 = arith.constant 1 : index
    %c0_90 = arith.constant 0 : index
    %c0_91 = arith.constant 0 : index
    %198 = vector.load %arg6[%c1_89, %c0_90, %c0_91] : memref<2x8x128xf32, #tpu.memory_space<vmem>>, vector<1x8x128xf32>
    %199 = vector.shape_cast %198 : vector<1x8x128xf32> to vector<8x128xf32>
    %200 = vector.extract_strided_slice %199 {offsets = [0, 0], sizes = [1, 128], strides = [1, 1]} : vector<8x128xf32> to vector<1x128xf32>
    %201 = vector.extract_strided_slice %199 {offsets = [1, 0], sizes = [1, 128], strides = [1, 1]} : vector<8x128xf32> to vector<1x128xf32>
    %202 = vector.extract_strided_slice %199 {offsets = [2, 0], sizes = [1, 128], strides = [1, 1]} : vector<8x128xf32> to vector<1x128xf32>
    %203 = vector.extract_strided_slice %199 {offsets = [3, 0], sizes = [1, 128], strides = [1, 1]} : vector<8x128xf32> to vector<1x128xf32>
    %204 = vector.extract_strided_slice %199 {offsets = [4, 0], sizes = [1, 128], strides = [1, 1]} : vector<8x128xf32> to vector<1x128xf32>
    %205 = arith.addf %197, %50 : vector<16x128xf32>
    %c1_92 = arith.constant 1 : index
    %c0_93 = arith.constant 0 : index
    %c0_94 = arith.constant 0 : index
    %c0_95 = arith.constant 0 : index
    %206 = vector.load %arg2[%c1_92, %c0_93, %c0_94, %c0_95] : memref<2x4x128x128xf32, #tpu.memory_space<vmem>>, vector<1x1x128x128xf32>
    %207 = vector.shape_cast %206 : vector<1x1x128x128xf32> to vector<128x128xf32>
    %cst_96 = arith.constant dense<0.000000e+00> : vector<16x128xf32>
    %208 = tpu.matmul %205, %207, %cst_96 {dimension_numbers = #tpu.dot_dimension_numbers<[1], [0], [0], [1], [0, 0, 1, 1], [], []>} : vector<16x128xf32>, vector<128x128xf32>, vector<16x128xf32> -> vector<16x128xf32>
    "tpu.trace_start"() <{level = 10 : i32, message = "qd,kd->qk"}> : () -> ()
    %cst_97 = arith.constant dense<0.000000e+00> : vector<16x16xf32>
    %209 = tpu.matmul %208, %205, %cst_97 {dimension_numbers = #tpu.dot_dimension_numbers<[1], [1], [0], [0], [0, 0, 1, 0], [], []>} : vector<16x128xf32>, vector<16x128xf32>, vector<16x16xf32> -> vector<16x16xf32>
    "tpu.trace_stop"() : () -> ()
    %210 = arith.addf %209, %46 : vector<16x16xf32>
    %cst_98 = arith.constant dense<0xFF800000> : vector<16xf32>
    %211 = vector.multi_reduction <maximumf>, %210, %cst_98 [1] : vector<16x16xf32> to vector<16xf32>
    %212 = vector.shape_cast %211 : vector<16xf32> to vector<16x1xf32>
    %213 = vector.broadcast %212 : vector<16x1xf32> to vector<16x16xf32>
    %214 = arith.subf %210, %213 : vector<16x16xf32>
    %215 = math.exp %214 : vector<16x16xf32>
    %cst_99 = arith.constant dense<0.000000e+00> : vector<16xf32>
    %216 = vector.multi_reduction <add>, %215, %cst_99 [1] : vector<16x16xf32> to vector<16xf32>
    %217 = vector.shape_cast %216 : vector<16xf32> to vector<16x1xf32>
    %218 = tpu.reciprocal %217 {approx = true} : vector<16x1xf32> -> vector<16x1xf32>
    %219 = vector.broadcast %218 : vector<16x1xf32> to vector<16x16xf32>
    %220 = arith.mulf %215, %219 : vector<16x16xf32>
    %c1_100 = arith.constant 1 : index
    %c0_101 = arith.constant 0 : index
    %c0_102 = arith.constant 0 : index
    %c0_103 = arith.constant 0 : index
    %221 = vector.load %arg3[%c1_100, %c0_101, %c0_102, %c0_103] : memref<2x4x128x128xf32, #tpu.memory_space<vmem>>, vector<1x1x128x128xf32>
    %222 = vector.shape_cast %221 : vector<1x1x128x128xf32> to vector<128x128xf32>
    %cst_104 = arith.constant dense<0.000000e+00> : vector<16x128xf32>
    %223 = tpu.matmul %197, %222, %cst_104 {dimension_numbers = #tpu.dot_dimension_numbers<[1], [0], [0], [1], [0, 0, 1, 1], [], []>} : vector<16x128xf32>, vector<128x128xf32>, vector<16x128xf32> -> vector<16x128xf32>
    %cst_105 = arith.constant dense<0.000000e+00> : vector<16x128xf32>
    %224 = tpu.matmul %220, %223, %cst_105 {dimension_numbers = #tpu.dot_dimension_numbers<[1], [0], [0], [1], [0, 0, 1, 1], [], []>} : vector<16x16xf32>, vector<16x128xf32>, vector<16x128xf32> -> vector<16x128xf32>
    %225 = vector.broadcast %200 : vector<1x128xf32> to vector<16x128xf32>
    %226 = arith.addf %225, %224 : vector<16x128xf32>
    %c1_106 = arith.constant 1 : index
    %c1_107 = arith.constant 1 : index
    %c0_108 = arith.constant 0 : index
    %c0_109 = arith.constant 0 : index
    %227 = vector.load %arg2[%c1_106, %c1_107, %c0_108, %c0_109] : memref<2x4x128x128xf32, #tpu.memory_space<vmem>>, vector<1x1x128x128xf32>
    %228 = vector.shape_cast %227 : vector<1x1x128x128xf32> to vector<128x128xf32>
    %cst_110 = arith.constant dense<0.000000e+00> : vector<16x128xf32>
    %229 = tpu.matmul %205, %228, %cst_110 {dimension_numbers = #tpu.dot_dimension_numbers<[1], [0], [0], [1], [0, 0, 1, 1], [], []>} : vector<16x128xf32>, vector<128x128xf32>, vector<16x128xf32> -> vector<16x128xf32>
    "tpu.trace_start"() <{level = 10 : i32, message = "qd,kd->qk"}> : () -> ()
    %cst_111 = arith.constant dense<0.000000e+00> : vector<16x16xf32>
    %230 = tpu.matmul %229, %205, %cst_111 {dimension_numbers = #tpu.dot_dimension_numbers<[1], [1], [0], [0], [0, 0, 1, 0], [], []>} : vector<16x128xf32>, vector<16x128xf32>, vector<16x16xf32> -> vector<16x16xf32>
    "tpu.trace_stop"() : () -> ()
    %231 = arith.addf %230, %46 : vector<16x16xf32>
    %cst_112 = arith.constant dense<0xFF800000> : vector<16xf32>
    %232 = vector.multi_reduction <maximumf>, %231, %cst_112 [1] : vector<16x16xf32> to vector<16xf32>
    %233 = vector.shape_cast %232 : vector<16xf32> to vector<16x1xf32>
    %234 = vector.broadcast %233 : vector<16x1xf32> to vector<16x16xf32>
    %235 = arith.subf %231, %234 : vector<16x16xf32>
    %236 = math.exp %235 : vector<16x16xf32>
    %cst_113 = arith.constant dense<0.000000e+00> : vector<16xf32>
    %237 = vector.multi_reduction <add>, %236, %cst_113 [1] : vector<16x16xf32> to vector<16xf32>
    %238 = vector.shape_cast %237 : vector<16xf32> to vector<16x1xf32>
    %239 = tpu.reciprocal %238 {approx = true} : vector<16x1xf32> -> vector<16x1xf32>
    %240 = vector.broadcast %239 : vector<16x1xf32> to vector<16x16xf32>
    %241 = arith.mulf %236, %240 : vector<16x16xf32>
    %c1_114 = arith.constant 1 : index
    %c1_115 = arith.constant 1 : index
    %c0_116 = arith.constant 0 : index
    %c0_117 = arith.constant 0 : index
    %242 = vector.load %arg3[%c1_114, %c1_115, %c0_116, %c0_117] : memref<2x4x128x128xf32, #tpu.memory_space<vmem>>, vector<1x1x128x128xf32>
    %243 = vector.shape_cast %242 : vector<1x1x128x128xf32> to vector<128x128xf32>
    %cst_118 = arith.constant dense<0.000000e+00> : vector<16x128xf32>
    %244 = tpu.matmul %197, %243, %cst_118 {dimension_numbers = #tpu.dot_dimension_numbers<[1], [0], [0], [1], [0, 0, 1, 1], [], []>} : vector<16x128xf32>, vector<128x128xf32>, vector<16x128xf32> -> vector<16x128xf32>
    %cst_119 = arith.constant dense<0.000000e+00> : vector<16x128xf32>
    %245 = tpu.matmul %241, %244, %cst_119 {dimension_numbers = #tpu.dot_dimension_numbers<[1], [0], [0], [1], [0, 0, 1, 1], [], []>} : vector<16x16xf32>, vector<16x128xf32>, vector<16x128xf32> -> vector<16x128xf32>
    %246 = arith.addf %226, %245 : vector<16x128xf32>
    %c1_120 = arith.constant 1 : index
    %c2_121 = arith.constant 2 : index
    %c0_122 = arith.constant 0 : index
    %c0_123 = arith.constant 0 : index
    %247 = vector.load %arg2[%c1_120, %c2_121, %c0_122, %c0_123] : memref<2x4x128x128xf32, #tpu.memory_space<vmem>>, vector<1x1x128x128xf32>
    %248 = vector.shape_cast %247 : vector<1x1x128x128xf32> to vector<128x128xf32>
    %cst_124 = arith.constant dense<0.000000e+00> : vector<16x128xf32>
    %249 = tpu.matmul %205, %248, %cst_124 {dimension_numbers = #tpu.dot_dimension_numbers<[1], [0], [0], [1], [0, 0, 1, 1], [], []>} : vector<16x128xf32>, vector<128x128xf32>, vector<16x128xf32> -> vector<16x128xf32>
    "tpu.trace_start"() <{level = 10 : i32, message = "qd,kd->qk"}> : () -> ()
    %cst_125 = arith.constant dense<0.000000e+00> : vector<16x16xf32>
    %250 = tpu.matmul %249, %205, %cst_125 {dimension_numbers = #tpu.dot_dimension_numbers<[1], [1], [0], [0], [0, 0, 1, 0], [], []>} : vector<16x128xf32>, vector<16x128xf32>, vector<16x16xf32> -> vector<16x16xf32>
    "tpu.trace_stop"() : () -> ()
    %251 = arith.addf %250, %46 : vector<16x16xf32>
    %cst_126 = arith.constant dense<0xFF800000> : vector<16xf32>
    %252 = vector.multi_reduction <maximumf>, %251, %cst_126 [1] : vector<16x16xf32> to vector<16xf32>
    %253 = vector.shape_cast %252 : vector<16xf32> to vector<16x1xf32>
    %254 = vector.broadcast %253 : vector<16x1xf32> to vector<16x16xf32>
    %255 = arith.subf %251, %254 : vector<16x16xf32>
    %256 = math.exp %255 : vector<16x16xf32>
    %cst_127 = arith.constant dense<0.000000e+00> : vector<16xf32>
    %257 = vector.multi_reduction <add>, %256, %cst_127 [1] : vector<16x16xf32> to vector<16xf32>
    %258 = vector.shape_cast %257 : vector<16xf32> to vector<16x1xf32>
    %259 = tpu.reciprocal %258 {approx = true} : vector<16x1xf32> -> vector<16x1xf32>
    %260 = vector.broadcast %259 : vector<16x1xf32> to vector<16x16xf32>
    %261 = arith.mulf %256, %260 : vector<16x16xf32>
    %c1_128 = arith.constant 1 : index
    %c2_129 = arith.constant 2 : index
    %c0_130 = arith.constant 0 : index
    %c0_131 = arith.constant 0 : index
    %262 = vector.load %arg3[%c1_128, %c2_129, %c0_130, %c0_131] : memref<2x4x128x128xf32, #tpu.memory_space<vmem>>, vector<1x1x128x128xf32>
    %263 = vector.shape_cast %262 : vector<1x1x128x128xf32> to vector<128x128xf32>
    %cst_132 = arith.constant dense<0.000000e+00> : vector<16x128xf32>
    %264 = tpu.matmul %197, %263, %cst_132 {dimension_numbers = #tpu.dot_dimension_numbers<[1], [0], [0], [1], [0, 0, 1, 1], [], []>} : vector<16x128xf32>, vector<128x128xf32>, vector<16x128xf32> -> vector<16x128xf32>
    %cst_133 = arith.constant dense<0.000000e+00> : vector<16x128xf32>
    %265 = tpu.matmul %261, %264, %cst_133 {dimension_numbers = #tpu.dot_dimension_numbers<[1], [0], [0], [1], [0, 0, 1, 1], [], []>} : vector<16x16xf32>, vector<16x128xf32>, vector<16x128xf32> -> vector<16x128xf32>
    %266 = arith.addf %246, %265 : vector<16x128xf32>
    %c1_134 = arith.constant 1 : index
    %c3_135 = arith.constant 3 : index
    %c0_136 = arith.constant 0 : index
    %c0_137 = arith.constant 0 : index
    %267 = vector.load %arg2[%c1_134, %c3_135, %c0_136, %c0_137] : memref<2x4x128x128xf32, #tpu.memory_space<vmem>>, vector<1x1x128x128xf32>
    %268 = vector.shape_cast %267 : vector<1x1x128x128xf32> to vector<128x128xf32>
    %cst_138 = arith.constant dense<0.000000e+00> : vector<16x128xf32>
    %269 = tpu.matmul %205, %268, %cst_138 {dimension_numbers = #tpu.dot_dimension_numbers<[1], [0], [0], [1], [0, 0, 1, 1], [], []>} : vector<16x128xf32>, vector<128x128xf32>, vector<16x128xf32> -> vector<16x128xf32>
    "tpu.trace_start"() <{level = 10 : i32, message = "qd,kd->qk"}> : () -> ()
    %cst_139 = arith.constant dense<0.000000e+00> : vector<16x16xf32>
    %270 = tpu.matmul %269, %205, %cst_139 {dimension_numbers = #tpu.dot_dimension_numbers<[1], [1], [0], [0], [0, 0, 1, 0], [], []>} : vector<16x128xf32>, vector<16x128xf32>, vector<16x16xf32> -> vector<16x16xf32>
    "tpu.trace_stop"() : () -> ()
    %271 = arith.addf %270, %46 : vector<16x16xf32>
    %cst_140 = arith.constant dense<0xFF800000> : vector<16xf32>
    %272 = vector.multi_reduction <maximumf>, %271, %cst_140 [1] : vector<16x16xf32> to vector<16xf32>
    %273 = vector.shape_cast %272 : vector<16xf32> to vector<16x1xf32>
    %274 = vector.broadcast %273 : vector<16x1xf32> to vector<16x16xf32>
    %275 = arith.subf %271, %274 : vector<16x16xf32>
    %276 = math.exp %275 : vector<16x16xf32>
    %cst_141 = arith.constant dense<0.000000e+00> : vector<16xf32>
    %277 = vector.multi_reduction <add>, %276, %cst_141 [1] : vector<16x16xf32> to vector<16xf32>
    %278 = vector.shape_cast %277 : vector<16xf32> to vector<16x1xf32>
    %279 = tpu.reciprocal %278 {approx = true} : vector<16x1xf32> -> vector<16x1xf32>
    %280 = vector.broadcast %279 : vector<16x1xf32> to vector<16x16xf32>
    %281 = arith.mulf %276, %280 : vector<16x16xf32>
    %c1_142 = arith.constant 1 : index
    %c3_143 = arith.constant 3 : index
    %c0_144 = arith.constant 0 : index
    %c0_145 = arith.constant 0 : index
    %282 = vector.load %arg3[%c1_142, %c3_143, %c0_144, %c0_145] : memref<2x4x128x128xf32, #tpu.memory_space<vmem>>, vector<1x1x128x128xf32>
    %283 = vector.shape_cast %282 : vector<1x1x128x128xf32> to vector<128x128xf32>
    %cst_146 = arith.constant dense<0.000000e+00> : vector<16x128xf32>
    %284 = tpu.matmul %197, %283, %cst_146 {dimension_numbers = #tpu.dot_dimension_numbers<[1], [0], [0], [1], [0, 0, 1, 1], [], []>} : vector<16x128xf32>, vector<128x128xf32>, vector<16x128xf32> -> vector<16x128xf32>
    %cst_147 = arith.constant dense<0.000000e+00> : vector<16x128xf32>
    %285 = tpu.matmul %281, %284, %cst_147 {dimension_numbers = #tpu.dot_dimension_numbers<[1], [0], [0], [1], [0, 0, 1, 1], [], []>} : vector<16x16xf32>, vector<16x128xf32>, vector<16x128xf32> -> vector<16x128xf32>
    %286 = arith.addf %266, %285 : vector<16x128xf32>
    %287 = arith.addf %197, %286 : vector<16x128xf32>
    %288 = vector.broadcast %4 : vector<1x128xf32> to vector<16x128xf32>
    %289 = arith.mulf %287, %288 : vector<16x128xf32>
    %cst_148 = arith.constant dense<0.000000e+00> : vector<16xf32>
    %290 = vector.multi_reduction <add>, %289, %cst_148 [1] : vector<16x128xf32> to vector<16xf32>
    %291 = vector.shape_cast %290 : vector<16xf32> to vector<16x1xf32>
    %cst_149 = arith.constant 3.125000e-02 : f32
    %292 = vector.broadcast %cst_149 : f32 to vector<16x1xf32>
    %293 = arith.mulf %291, %292 : vector<16x1xf32>
    %294 = vector.broadcast %293 : vector<16x1xf32> to vector<16x128xf32>
    %295 = arith.subf %287, %294 : vector<16x128xf32>
    %296 = vector.broadcast %4 : vector<1x128xf32> to vector<16x128xf32>
    %297 = arith.mulf %295, %296 : vector<16x128xf32>
    %298 = arith.mulf %297, %297 : vector<16x128xf32>
    %cst_150 = arith.constant dense<0.000000e+00> : vector<16xf32>
    %299 = vector.multi_reduction <add>, %298, %cst_150 [1] : vector<16x128xf32> to vector<16xf32>
    %300 = vector.shape_cast %299 : vector<16xf32> to vector<16x1xf32>
    %cst_151 = arith.constant 3.125000e-02 : f32
    %301 = vector.broadcast %cst_151 : f32 to vector<16x1xf32>
    %302 = arith.mulf %300, %301 : vector<16x1xf32>
    %cst_152 = arith.constant 9.99999974E-6 : f32
    %303 = vector.broadcast %cst_152 : f32 to vector<16x1xf32>
    %304 = arith.addf %302, %303 : vector<16x1xf32>
    %305 = math.rsqrt %304 : vector<16x1xf32>
    %306 = vector.broadcast %305 : vector<16x1xf32> to vector<16x128xf32>
    %307 = arith.mulf %297, %306 : vector<16x128xf32>
    %308 = vector.broadcast %201 : vector<1x128xf32> to vector<16x128xf32>
    %309 = arith.mulf %307, %308 : vector<16x128xf32>
    %310 = vector.broadcast %202 : vector<1x128xf32> to vector<16x128xf32>
    %311 = arith.addf %309, %310 : vector<16x128xf32>
    %c1_153 = arith.constant 1 : index
    %c0_154 = arith.constant 0 : index
    %c0_155 = arith.constant 0 : index
    %312 = vector.load %arg4[%c1_153, %c0_154, %c0_155] : memref<2x128x128xf32, #tpu.memory_space<vmem>>, vector<1x128x128xf32>
    %313 = vector.shape_cast %312 : vector<1x128x128xf32> to vector<128x128xf32>
    %cst_156 = arith.constant dense<0.000000e+00> : vector<16x128xf32>
    %314 = tpu.matmul %311, %313, %cst_156 {dimension_numbers = #tpu.dot_dimension_numbers<[1], [0], [0], [1], [0, 0, 1, 1], [], []>} : vector<16x128xf32>, vector<128x128xf32>, vector<16x128xf32> -> vector<16x128xf32>
    %cst_157 = arith.constant 0.000000e+00 : f32
    %315 = vector.broadcast %cst_157 : f32 to vector<16x128xf32>
    %316 = arith.maximumf %314, %315 : vector<16x128xf32>
    %c1_158 = arith.constant 1 : index
    %c0_159 = arith.constant 0 : index
    %c0_160 = arith.constant 0 : index
    %317 = vector.load %arg5[%c1_158, %c0_159, %c0_160] : memref<2x128x128xf32, #tpu.memory_space<vmem>>, vector<1x128x128xf32>
    %318 = vector.shape_cast %317 : vector<1x128x128xf32> to vector<128x128xf32>
    %cst_161 = arith.constant dense<0.000000e+00> : vector<16x128xf32>
    %319 = tpu.matmul %316, %318, %cst_161 {dimension_numbers = #tpu.dot_dimension_numbers<[1], [0], [0], [1], [0, 0, 1, 1], [], []>} : vector<16x128xf32>, vector<128x128xf32>, vector<16x128xf32> -> vector<16x128xf32>
    %320 = arith.addf %311, %319 : vector<16x128xf32>
    %321 = vector.broadcast %4 : vector<1x128xf32> to vector<16x128xf32>
    %322 = arith.mulf %320, %321 : vector<16x128xf32>
    %cst_162 = arith.constant dense<0.000000e+00> : vector<16xf32>
    %323 = vector.multi_reduction <add>, %322, %cst_162 [1] : vector<16x128xf32> to vector<16xf32>
    %324 = vector.shape_cast %323 : vector<16xf32> to vector<16x1xf32>
    %cst_163 = arith.constant 3.125000e-02 : f32
    %325 = vector.broadcast %cst_163 : f32 to vector<16x1xf32>
    %326 = arith.mulf %324, %325 : vector<16x1xf32>
    %327 = vector.broadcast %326 : vector<16x1xf32> to vector<16x128xf32>
    %328 = arith.subf %320, %327 : vector<16x128xf32>
    %329 = vector.broadcast %4 : vector<1x128xf32> to vector<16x128xf32>
    %330 = arith.mulf %328, %329 : vector<16x128xf32>
    %331 = arith.mulf %330, %330 : vector<16x128xf32>
    %cst_164 = arith.constant dense<0.000000e+00> : vector<16xf32>
    %332 = vector.multi_reduction <add>, %331, %cst_164 [1] : vector<16x128xf32> to vector<16xf32>
    %333 = vector.shape_cast %332 : vector<16xf32> to vector<16x1xf32>
    %cst_165 = arith.constant 3.125000e-02 : f32
    %334 = vector.broadcast %cst_165 : f32 to vector<16x1xf32>
    %335 = arith.mulf %333, %334 : vector<16x1xf32>
    %cst_166 = arith.constant 9.99999974E-6 : f32
    %336 = vector.broadcast %cst_166 : f32 to vector<16x1xf32>
    %337 = arith.addf %335, %336 : vector<16x1xf32>
    %338 = math.rsqrt %337 : vector<16x1xf32>
    %339 = vector.broadcast %338 : vector<16x1xf32> to vector<16x128xf32>
    %340 = arith.mulf %330, %339 : vector<16x128xf32>
    %341 = vector.broadcast %203 : vector<1x128xf32> to vector<16x128xf32>
    %342 = arith.mulf %340, %341 : vector<16x128xf32>
    %343 = vector.broadcast %204 : vector<1x128xf32> to vector<16x128xf32>
    %344 = arith.addf %342, %343 : vector<16x128xf32>
    %c0_167 = arith.constant 0 : index
    %c0_168 = arith.constant 0 : index
    %345 = vector.load %arg7[%c0_167, %c0_168] : memref<2x128xf32, #tpu.memory_space<vmem>>, vector<1x128xf32>
    %c1_169 = arith.constant 1 : index
    %c0_170 = arith.constant 0 : index
    %346 = vector.load %arg7[%c1_169, %c0_170] : memref<2x128xf32, #tpu.memory_space<vmem>>, vector<1x128xf32>
    %347 = vector.broadcast %4 : vector<1x128xf32> to vector<16x128xf32>
    %348 = arith.mulf %344, %347 : vector<16x128xf32>
    %cst_171 = arith.constant dense<0.000000e+00> : vector<16xf32>
    %349 = vector.multi_reduction <add>, %348, %cst_171 [1] : vector<16x128xf32> to vector<16xf32>
    %350 = vector.shape_cast %349 : vector<16xf32> to vector<16x1xf32>
    %cst_172 = arith.constant 3.125000e-02 : f32
    %351 = vector.broadcast %cst_172 : f32 to vector<16x1xf32>
    %352 = arith.mulf %350, %351 : vector<16x1xf32>
    %353 = vector.broadcast %352 : vector<16x1xf32> to vector<16x128xf32>
    %354 = arith.subf %344, %353 : vector<16x128xf32>
    %355 = vector.broadcast %4 : vector<1x128xf32> to vector<16x128xf32>
    %356 = arith.mulf %354, %355 : vector<16x128xf32>
    %357 = arith.mulf %356, %356 : vector<16x128xf32>
    %cst_173 = arith.constant dense<0.000000e+00> : vector<16xf32>
    %358 = vector.multi_reduction <add>, %357, %cst_173 [1] : vector<16x128xf32> to vector<16xf32>
    %359 = vector.shape_cast %358 : vector<16xf32> to vector<16x1xf32>
    %cst_174 = arith.constant 3.125000e-02 : f32
    %360 = vector.broadcast %cst_174 : f32 to vector<16x1xf32>
    %361 = arith.mulf %359, %360 : vector<16x1xf32>
    %cst_175 = arith.constant 9.99999974E-6 : f32
    %362 = vector.broadcast %cst_175 : f32 to vector<16x1xf32>
    %363 = arith.addf %361, %362 : vector<16x1xf32>
    %364 = math.rsqrt %363 : vector<16x1xf32>
    %365 = vector.broadcast %364 : vector<16x1xf32> to vector<16x128xf32>
    %366 = arith.mulf %356, %365 : vector<16x128xf32>
    %367 = vector.broadcast %345 : vector<1x128xf32> to vector<16x128xf32>
    %368 = arith.mulf %366, %367 : vector<16x128xf32>
    %369 = vector.broadcast %346 : vector<1x128xf32> to vector<16x128xf32>
    %370 = arith.addf %368, %369 : vector<16x128xf32>
    %c0_176 = arith.constant 0 : index
    %c0_177 = arith.constant 0 : index
    %371 = vector.load %arg8[%c0_176, %c0_177] : memref<16x128xf32, #tpu.memory_space<vmem>>, vector<16x128xf32>
    tpu.vector_store %arg8[%c0_176, %c0_177], %370 {strides = array<i32>} : memref<16x128xf32, #tpu.memory_space<vmem>>, vector<16x128xf32>,
    return
  }
}

</mosaic_0001>

<llo_original>
// kernel: _encoder_jit.1
$region0: #{_encoder_jit.1}
  #allocation0 [shape = 'u32[]', space=smem, size = 0x4, offset = 0x4, fixed_abs, tag = 'smem constant byte address 0x4 - core index']
  #allocation1 [shape = 'u32[144,128]{1,0:T(1,128)}', space=vmem, size = 0x12000, scoped, tag = 'internal scratch']
  %s0 = inlined_call_operand.vmem [shape: f32[16,128], index: 0, kind: input, shape index: {}]
  %s1 = inlined_call_operand.vmem [shape: f32[16,128], index: 1, kind: input, shape index: {}]
  %s2 = inlined_call_operand.hbm [shape: f32[2,4,128,128], index: 2, kind: input, shape index: {}]
  %s3 = inlined_call_operand.hbm [shape: f32[2,4,128,128], index: 3, kind: input, shape index: {}]
  %s4 = inlined_call_operand.hbm [shape: f32[2,128,128], index: 4, kind: input, shape index: {}]
  %s5 = inlined_call_operand.hbm [shape: f32[2,128,128], index: 5, kind: input, shape index: {}]
  %s6 = inlined_call_operand.vmem [shape: f32[2,8,128], index: 6, kind: input, shape index: {}]
  %s7 = inlined_call_operand.vmem [shape: f32[2,128], index: 7, kind: input, shape index: {}]
  %s8 = inlined_call_operand.hbm [shape: f32[16,128], index: 8, kind: output, shape index: {}]
  %s9 = sld [smem:[#allocation0]]
  $region58: #{_encoder_jit.1} parent=0
    _
  %s11 = ssub.s32 1, %s9
  %s12 = scalar_select 0, %s11, %s9
  $region1: #{_encoder_jit.1} parent=0
    #allocation2 [shape = 'u8[524288]{0}', space=vmem, size = 0x80000, scoped, tag = 'input window, operand 2, single buffered']
    #allocation3 [shape = 's32[1]{0}', space=sflag, size = 0x4, scoped, tag = 'scoped memory for _encoder_jit.1']
    #allocation4 [shape = 's32[1]{0}', space=sflag, size = 0x4, scoped, tag = 'scoped memory for _encoder_jit.1']
    #allocation5 [shape = 'u8[524288]{0}', space=vmem, size = 0x80000, scoped, tag = 'input window, operand 3, single buffered']
    #allocation6 [shape = 's32[1]{0}', space=sflag, size = 0x4, scoped, tag = 'scoped memory for _encoder_jit.1']
    #allocation7 [shape = 'u8[131072]{0}', space=vmem, size = 0x20000, scoped, tag = 'input window, operand 4, single buffered']
    #allocation8 [shape = 'u8[131072]{0}', space=vmem, size = 0x20000, scoped, tag = 'input window, operand 5, single buffered']
    #allocation9 [shape = 's32[1]{0}', space=sflag, size = 0x4, scoped, tag = 'scoped memory for _encoder_jit.1']
    #allocation10 [shape = 'u8[8192]{0}', space=vmem, size = 0x2000, scoped, tag = 'output window, operand 0, single buffered']
    %13 = vsyncpa [#allocation3], 0
    %14 = vsyncpa [#allocation6], 0
    %15 = vsyncpa [#allocation9], 0
    %16 = vsyncpa [#allocation4], 0
    // Predicated region
    $region2: #{_encoder_jit.1} parent=1 // pred_check
      _
    $region3: #{_encoder_jit.1} parent=1 // pred_check_branch
      %18 = sbr.rel (0) target = $region5
    $region4: #{_encoder_jit.1} parent=1 // pred_region
      _
    $region5: #{_encoder_jit.1} parent=1 // pred_fallthru
      _
    // Predicated region
    $region6: #{_encoder_jit.1} parent=1 // pred_check
      _
    $region7: #{_encoder_jit.1} parent=1 // pred_check_branch
      %20 = sbr.rel (0) target = $region9
    $region8: #{_encoder_jit.1} parent=1 // pred_region
      _
    $region9: #{_encoder_jit.1} parent=1 // pred_fallthru
      _
    // Predicated region
    $region10: #{_encoder_jit.1} parent=1 // pred_check
      _
    $region11: #{_encoder_jit.1} parent=1 // pred_check_branch
      %22 = sbr.rel (0) target = $region13
    $region12: #{_encoder_jit.1} parent=1 // pred_region
      %s24 = ssub.s32 16384, 16384
      %25 = vsyncadd [#allocation3], %s24
      %s26 = sshll.u32 [#allocation2], 4
      %s27 = int_to_ptr.vmem [resolvable:$true] %s26
      %32 = dma.hbm_to_vmem [thread:$0]  %s2, 16384, %s27, [#allocation3], 128, 128, 8
    $region13: #{_encoder_jit.1} parent=1 // pred_fallthru
      _
    // Predicated region
    $region14: #{_encoder_jit.1} parent=1 // pred_check
      _
    $region15: #{_encoder_jit.1} parent=1 // pred_check_branch
      %34 = sbr.rel (0) target = $region17
    $region16: #{_encoder_jit.1} parent=1 // pred_region
      %s36 = ssub.s32 16384, 16384
      %37 = vsyncadd [#allocation6], %s36
      %s38 = sshll.u32 [#allocation5], 4
      %s39 = int_to_ptr.vmem [resolvable:$true] %s38
      %44 = dma.hbm_to_vmem [thread:$0]  %s3, 16384, %s39, [#allocation6], 128, 128, 8
    $region17: #{_encoder_jit.1} parent=1 // pred_fallthru
      _
    // Predicated region
    $region18: #{_encoder_jit.1} parent=1 // pred_check
      _
    $region19: #{_encoder_jit.1} parent=1 // pred_check_branch
      %46 = sbr.rel (0) target = $region21
    $region20: #{_encoder_jit.1} parent=1 // pred_region
      %s48 = ssub.s32 4096, 4096
      %49 = vsyncadd [#allocation6], %s48
      %s50 = sshll.u32 [#allocation7], 4
      %s51 = int_to_ptr.vmem [resolvable:$true] %s50
      %56 = dma.hbm_to_vmem [thread:$0]  %s4, 4096, %s51, [#allocation6], 128, 128, 8
    $region21: #{_encoder_jit.1} parent=1 // pred_fallthru
      _
    // Predicated region
    $region22: #{_encoder_jit.1} parent=1 // pred_check
      _
    $region23: #{_encoder_jit.1} parent=1 // pred_check_branch
      %58 = sbr.rel (0) target = $region25
    $region24: #{_encoder_jit.1} parent=1 // pred_region
      %s60 = ssub.s32 4096, 4096
      %61 = vsyncadd [#allocation9], %s60
      %s62 = sshll.u32 [#allocation8], 4
      %s63 = int_to_ptr.vmem [resolvable:$true] %s62
      %68 = dma.hbm_to_vmem [thread:$0]  %s5, 4096, %s63, [#allocation9], 128, 128, 8
    $region25: #{_encoder_jit.1} parent=1 // pred_fallthru
      _
    // Predicated region
    $region26: #{_encoder_jit.1} parent=1 // pred_check
      _
    $region27: #{_encoder_jit.1} parent=1 // pred_check_branch
      %70 = sbr.rel (0) target = $region29
    $region28: #{_encoder_jit.1} parent=1 // pred_region
      _
    $region29: #{_encoder_jit.1} parent=1 // pred_fallthru
      _
    // Predicated region
    $region30: #{_encoder_jit.1} parent=1 // pred_check
      _
    $region31: #{_encoder_jit.1} parent=1 // pred_check_branch
      %72 = sbr.rel (0) target = $region33
    $region32: #{_encoder_jit.1} parent=1 // pred_region
      _
    $region33: #{_encoder_jit.1} parent=1 // pred_fallthru
      _
    // Predicated region
    $region34: #{_encoder_jit.1} parent=1 // pred_check
      _
    $region35: #{_encoder_jit.1} parent=1 // pred_check_branch
      %74 = sbr.rel (0) target = $region37
    $region36: #{_encoder_jit.1} parent=1 // pred_region
      %75 = dma.done [#allocation3], 16384
    $region37: #{_encoder_jit.1} parent=1 // pred_fallthru
      _
    // Predicated region
    $region38: #{_encoder_jit.1} parent=1 // pred_check
      _
    $region39: #{_encoder_jit.1} parent=1 // pred_check_branch
      %77 = sbr.rel (0) target = $region41
    $region40: #{_encoder_jit.1} parent=1 // pred_region
      %78 = dma.done [#allocation6], 16384
    $region41: #{_encoder_jit.1} parent=1 // pred_fallthru
      _
    // Predicated region
    $region42: #{_encoder_jit.1} parent=1 // pred_check
      _
    $region43: #{_encoder_jit.1} parent=1 // pred_check_branch
      %80 = sbr.rel (0) target = $region45
    $region44: #{_encoder_jit.1} parent=1 // pred_region
      %81 = dma.done [#allocation6], 4096
    $region45: #{_encoder_jit.1} parent=1 // pred_fallthru
      _
    // Predicated region
    $region46: #{_encoder_jit.1} parent=1 // pred_check
      _
    $region47: #{_encoder_jit.1} parent=1 // pred_check_branch
      %83 = sbr.rel (0) target = $region49
    $region48: #{_encoder_jit.1} parent=1 // pred_region
      %84 = dma.done [#allocation9], 4096
    $region49: #{_encoder_jit.1} parent=1 // pred_fallthru
      _
    %v85 = vlaneseq
    %v86 = vand.u32 %v85, 127
    %vm87 = vcmp.lt.s32.totalorder %v86, 32
    %v88 = vsel %vm87, 1, 0
    %v89 = vcvt.s32.f32 %v88
    %vm90 = vcmp.eq.s32.totalorder %v86, 32
    %v91 = vsel %vm90, 1, 0
    %v92 = vcvt.s32.f32 %v91
    %v93 = vlaneseq
    %v94 = vshrl.u32 %v93, 7
    %v95 = vadd.s32 %v94, 8
    %vm96 = vcmp.lt.s32.totalorder %v94, 0
    %v97 = vsub.s32 0, %v94
    %v98 = vsel %vm96, %v97, %v94
    %v99 = vshrl.u32 %v98, 1
    %v100 = vand.u32 %v98, 1
    %v101 = vsub.s32 0, %v100
    %v102 = vsel %vm96, %v101, %v100
    %vm103 = vcmp.lt.s32.totalorder %v95, 0
    %v104 = vsub.s32 0, %v95
    %v105 = vsel %vm103, %v104, %v95
    %v106 = vshrl.u32 %v105, 1
    %v107 = vand.u32 %v105, 1
    %v108 = vsub.s32 0, %v107
    %v109 = vsel %vm103, %v108, %v107
    %vm110 = vcmp.ne.s32.totalorder %v102, 0
    %vm111 = vcmp.ne.s32.totalorder %v109, 0
    %vm112 = vcmp.lt.s32.totalorder %v102, 0
    %vm113 = vcmp.lt.s32.totalorder %v109, 0
    %vm114 = vmand %vm112, %vm110
    %vm115 = vmand %vm113, %vm111
    %v116 = vadd.s32 %v102, 2
    %v117 = vadd.s32 %v109, 2
    %v118 = vsel %vm114, %v116, %v102
    %v119 = vsel %vm115, %v117, %v109
    %vm120 = vcmp.lt.s32.totalorder %v86, 0
    %v121 = vsub.s32 0, %v86
    %v122 = vsel %vm120, %v121, %v86
    %v123 = vshrl.u32 %v122, 1
    %v124 = vand.u32 %v122, 1
    %v125 = vsub.s32 0, %v124
    %v126 = vsel %vm120, %v125, %v124
    %vm127 = vcmp.ne.s32.totalorder %v126, 0
    %vm128 = vcmp.lt.s32.totalorder %v126, 0
    %vm129 = vmand %vm128, %vm127
    %v130 = vadd.s32 %v126, 2
    %v131 = vsel %vm129, %v130, %v126
    %vm132 = vcmp.eq.s32.totalorder %v118, %v131
    %vm133 = vcmp.eq.s32.totalorder %v119, %v131
    %v134 = vsel %vm132, 0.0, -1e+30
    %v135 = vsel %vm133, 0.0, -1e+30
    %v136 = vld [vmem:[%s0] sm:$0xff]
    %v137 = vld [vmem:[%s0 + $0x8] sm:$0xff]
    %v138 = vadd.f32 %v136, %v92
    %v139 = vadd.f32 %v137, %v92
    %v140 = vld [vmem:[%s1] sm:$0xff]
    %v141 = vld [vmem:[%s1 + $0x8] sm:$0xff]
    %v142 = vld [vmem:[%s6] sm:$0xff]
    %v143 = vadd.f32 %v138, %v140
    %v144 = vadd.f32 %v139, %v141
    %v145 = vld [vmem:[#allocation2] sm:$0xff]
    %v146 = vld [vmem:[#allocation2 + $0x8] sm:$0xff]
    %v147 = vld [vmem:[#allocation2 + $0x10] sm:$0xff]
    %v148 = vld [vmem:[#allocation2 + $0x18] sm:$0xff]
    %v149 = vld [vmem:[#allocation2 + $0x20] sm:$0xff]
    %v150 = vld [vmem:[#allocation2 + $0x28] sm:$0xff]
    %v151 = vld [vmem:[#allocation2 + $0x30] sm:$0xff]
    %v152 = vld [vmem:[#allocation2 + $0x38] sm:$0xff]
    %v153 = vld [vmem:[#allocation2 + $0x40] sm:$0xff]
    %v154 = vld [vmem:[#allocation2 + $0x48] sm:$0xff]
    %v155 = vld [vmem:[#allocation2 + $0x50] sm:$0xff]
    %v156 = vld [vmem:[#allocation2 + $0x58] sm:$0xff]
    %v157 = vld [vmem:[#allocation2 + $0x60] sm:$0xff]
    %v158 = vld [vmem:[#allocation2 + $0x68] sm:$0xff]
    %v159 = vld [vmem:[#allocation2 + $0x70] sm:$0xff]
    %v160 = vld [vmem:[#allocation2 + $0x78] sm:$0xff]
    %161 = vmatprep.subr.mxu0 0.0
    %162 = vmatpush1.msra.mxu0 %v160
    %163 = vmatprep.subr.mxu0 0.0
    %164 = vmatpush1.msra.mxu0 %v159
    %165 = vmatprep.subr.mxu0 0.0
    %166 = vmatpush1.msra.mxu0 %v158
    %167 = vmatprep.subr.mxu0 0.0
    %168 = vmatpush1.msra.mxu0 %v157
    %169 = vmatprep.subr.mxu0 0.0
    %170 = vmatpush1.msra.mxu0 %v156
    %171 = vmatprep.subr.mxu0 0.0
    %172 = vmatpush1.msra.mxu0 %v155
    %173 = vmatprep.subr.mxu0 0.0
    %174 = vmatpush1.msra.mxu0 %v154
    %175 = vmatprep.subr.mxu0 0.0
    %176 = vmatpush1.msra.mxu0 %v153
    %177 = vmatprep.subr.mxu0 0.0
    %178 = vmatpush1.msra.mxu0 %v152
    %179 = vmatprep.subr.mxu0 0.0
    %180 = vmatpush1.msra.mxu0 %v151
    %181 = vmatprep.subr.mxu0 0.0
    %182 = vmatpush1.msra.mxu0 %v150
    %183 = vmatprep.subr.mxu0 0.0
    %184 = vmatpush1.msra.mxu0 %v149
    %185 = vmatprep.subr.mxu0 0.0
    %186 = vmatpush1.msra.mxu0 %v148
    %187 = vmatprep.subr.mxu0 0.0
    %188 = vmatpush1.msra.mxu0 %v147
    %189 = vmatprep.subr.mxu0 0.0
    %190 = vmatpush1.msra.mxu0 %v146
    %191 = vmatprep.subr.mxu0 0.0
    %192 = vmatpush1.msra.mxu0 %v145
    %193 = vmatprep.subr.mxu0 0.0
    %194 = vmatpush2.msra.mxu0 0.0
    %195 = vmatprep.subr.mxu0 0.0
    %196 = vmatpush2.msra.mxu0 0.0
    %197 = vmatprep.subr.mxu0 0.0
    %198 = vmatpush2.msra.mxu0 0.0
    %199 = vmatprep.subr.mxu0 0.0
    %200 = vmatpush2.msra.mxu0 0.0
    %201 = vmatprep.subr.mxu0 0.0
    %202 = vmatpush2.msra.mxu0 0.0
    %203 = vmatprep.subr.mxu0 0.0
    %204 = vmatpush2.msra.mxu0 0.0
    %205 = vmatprep.subr.mxu0 0.0
    %206 = vmatpush2.msra.mxu0 0.0
    %207 = vmatprep.subr.mxu0 0.0
    %208 = vmatpush2.msra.mxu0 0.0
    %209 = vmatprep.subr.mxu0 0.0
    %210 = vmatpush2.msra.mxu0 0.0
    %211 = vmatprep.subr.mxu0 0.0
    %212 = vmatpush2.msra.mxu0 0.0
    %213 = vmatprep.subr.mxu0 0.0
    %214 = vmatpush2.msra.mxu0 0.0
    %215 = vmatprep.subr.mxu0 0.0
    %216 = vmatpush2.msra.mxu0 0.0
    %217 = vmatprep.subr.mxu0 0.0
    %218 = vmatpush2.msra.mxu0 0.0
    %219 = vmatprep.subr.mxu0 0.0
    %220 = vmatpush2.msra.mxu0 0.0
    %221 = vmatprep.subr.mxu0 0.0
    %222 = vmatpush2.msra.mxu0 0.0
    %223 = vmatprep.subr.mxu0 0.0
    %224 = vmatpush2.msra.mxu0 0.0
    %225 = vmatprep.mubr.f32.mxu0 0.0
    %226 = vmatmul.mubr.f32.gmra.mxu0 %v143
    %v227 = vpop.f32.mrf.mxu0
    %v228 = vadd.f32 0.0, %v227
    %v229 = vpop.f32.mrf.mxu0
    %230 = vmatprep.mubr.f32.mxu0 0.0
    %231 = vmatmul.mubr.f32.gmra.mxu0 %v144
    %v232 = vpop.f32.mrf.mxu0
    %v233 = vadd.f32 0.0, %v232
    %v234 = vpop.f32.mrf.mxu0
    %235 = vdwg.mxu0
    %236 = vmatprep.subr.mxu0 0.0
    %237 = vmatpush1.xpose.msra.mxu0 0.0
    %238 = vmatprep.subr.mxu0 0.0
    %239 = vmatpush1.xpose.msra.mxu0 0.0
    %240 = vmatprep.subr.mxu0 0.0
    %241 = vmatpush1.xpose.msra.mxu0 0.0
    %242 = vmatprep.subr.mxu0 0.0
    %243 = vmatpush1.xpose.msra.mxu0 0.0
    %244 = vmatprep.subr.mxu0 0.0
    %245 = vmatpush1.xpose.msra.mxu0 0.0
    %246 = vmatprep.subr.mxu0 0.0
    %247 = vmatpush1.xpose.msra.mxu0 0.0
    %248 = vmatprep.subr.mxu0 0.0
    %249 = vmatpush1.xpose.msra.mxu0 0.0
    %250 = vmatprep.subr.mxu0 0.0
    %251 = vmatpush1.xpose.msra.mxu0 0.0
    %252 = vmatprep.subr.mxu0 0.0
    %253 = vmatpush1.xpose.msra.mxu0 0.0
    %254 = vmatprep.subr.mxu0 0.0
    %255 = vmatpush1.xpose.msra.mxu0 0.0
    %256 = vmatprep.subr.mxu0 0.0
    %257 = vmatpush1.xpose.msra.mxu0 0.0
    %258 = vmatprep.subr.mxu0 0.0
    %259 = vmatpush1.xpose.msra.mxu0 0.0
    %260 = vmatprep.subr.mxu0 0.0
    %261 = vmatpush1.xpose.msra.mxu0 0.0
    %262 = vmatprep.subr.mxu0 0.0
    %263 = vmatpush1.xpose.msra.mxu0 0.0
    %264 = vmatprep.subr.mxu0 0.0
    %265 = vmatpush1.xpose.msra.mxu0 %v144
    %266 = vmatprep.subr.mxu0 0.0
    %267 = vmatpush1.xpose.msra.mxu0 %v143
    %268 = vmatprep.subr.mxu0 0.0
    %269 = vmatpush2.xpose.msra.mxu0 0.0
    %270 = vmatprep.subr.mxu0 0.0
    %271 = vmatpush2.xpose.msra.mxu0 0.0
    %272 = vmatprep.subr.mxu0 0.0
    %273 = vmatpush2.xpose.msra.mxu0 0.0
    %274 = vmatprep.subr.mxu0 0.0
    %275 = vmatpush2.xpose.msra.mxu0 0.0
    %276 = vmatprep.subr.mxu0 0.0
    %277 = vmatpush2.xpose.msra.mxu0 0.0
    %278 = vmatprep.subr.mxu0 0.0
    %279 = vmatpush2.xpose.msra.mxu0 0.0
    %280 = vmatprep.subr.mxu0 0.0
    %281 = vmatpush2.xpose.msra.mxu0 0.0
    %282 = vmatprep.subr.mxu0 0.0
    %283 = vmatpush2.xpose.msra.mxu0 0.0
    %284 = vmatprep.subr.mxu0 0.0
    %285 = vmatpush2.xpose.msra.mxu0 0.0
    %286 = vmatprep.subr.mxu0 0.0
    %287 = vmatpush2.xpose.msra.mxu0 0.0
    %288 = vmatprep.subr.mxu0 0.0
    %289 = vmatpush2.xpose.msra.mxu0 0.0
    %290 = vmatprep.subr.mxu0 0.0
    %291 = vmatpush2.xpose.msra.mxu0 0.0
    %292 = vmatprep.subr.mxu0 0.0
    %293 = vmatpush2.xpose.msra.mxu0 0.0
    %294 = vmatprep.subr.mxu0 0.0
    %295 = vmatpush2.xpose.msra.mxu0 0.0
    %296 = vmatprep.subr.mxu0 0.0
    %297 = vmatpush2.xpose.msra.mxu0 0.0
    %298 = vmatprep.subr.mxu0 0.0
    %299 = vmatpush2.xpose.msra.mxu0 0.0
    %300 = vmatprep.mubr.f32.mxu0 0.0
    %301 = vmatmul.mubr.f32.gmra.mxu0 %v228
    %v302 = vpop.f32.mrf.mxu0
    %v303 = vadd.f32 %v134, %v302
    %v304 = vpop.f32.mrf.mxu0
    %305 = vmatprep.mubr.f32.mxu0 0.0
    %306 = vmatmul.mubr.f32.gmra.mxu0 %v233
    %v307 = vpop.f32.mrf.mxu0
    %v308 = vadd.f32 %v135, %v307
    %v309 = vpop.f32.mrf.mxu0
    %310 = vdwg.mxu0
    %vm311 = vcmask 130048
    %v312 = vsel %vm311, %v303, -inf
    %313 = vmax.xlane.f32.xlu0 %v312
    %v314 = vpop.xlane.xlu0 %313
    %v315 = vsel %vm311, %v308, -inf
    %316 = vmax.xlane.f32.xlu0 %v315
    %v317 = vpop.xlane.xlu0 %316
    %v318 = vsub.f32 %v303, %v314
    %v319 = vsub.f32 %v308, %v317
    %v320 = vmul.f32 %v318, 1.442695
    %v321 = vpow.pop %v320
    %v322 = vmul.f32 %v319, 1.442695
    %v323 = vpow.pop %v322
    %v324 = vsel %vm311, %v321, 0.0
    %325 = vadd.xlane.f32.xlu0 %v324
    %v326 = vpop.xlane.xlu0 %325
    %v327 = vsel %vm311, %v323, 0.0
    %328 = vadd.xlane.f32.xlu0 %v327
    %v329 = vpop.xlane.xlu0 %328
    %v330 = vrcp.pop %v326
    %v331 = vrcp.pop %v329
    %v332 = vmul.f32 %v321, %v330
    %v333 = vmul.f32 %v323, %v331
    %v334 = vld [vmem:[#allocation5] sm:$0xff]
    %v335 = vld [vmem:[#allocation5 + $0x8] sm:$0xff]
    %v336 = vld [vmem:[#allocation5 + $0x10] sm:$0xff]
    %v337 = vld [vmem:[#allocation5 + $0x18] sm:$0xff]
    %v338 = vld [vmem:[#allocation5 + $0x20] sm:$0xff]
    %v339 = vld [vmem:[#allocation5 + $0x28] sm:$0xff]
    %v340 = vld [vmem:[#allocation5 + $0x30] sm:$0xff]
    %v341 = vld [vmem:[#allocation5 + $0x38] sm:$0xff]
    %v342 = vld [vmem:[#allocation5 + $0x40] sm:$0xff]
    %v343 = vld [vmem:[#allocation5 + $0x48] sm:$0xff]
    %v344 = vld [vmem:[#allocation5 + $0x50] sm:$0xff]
    %v345 = vld [vmem:[#allocation5 + $0x58] sm:$0xff]
    %v346 = vld [vmem:[#allocation5 + $0x60] sm:$0xff]
    %v347 = vld [vmem:[#allocation5 + $0x68] sm:$0xff]
    %v348 = vld [vmem:[#allocation5 + $0x70] sm:$0xff]
    %v349 = vld [vmem:[#allocation5 + $0x78] sm:$0xff]
    %350 = vmatprep.subr.mxu0 0.0
    %351 = vmatpush1.msra.mxu0 %v349
    %352 = vmatprep.subr.mxu0 0.0
    %353 = vmatpush1.msra.mxu0 %v348
    %354 = vmatprep.subr.mxu0 0.0
    %355 = vmatpush1.msra.mxu0 %v347
    %356 = vmatprep.subr.mxu0 0.0
    %357 = vmatpush1.msra.mxu0 %v346
    %358 = vmatprep.subr.mxu0 0.0
    %359 = vmatpush1.msra.mxu0 %v345
    %360 = vmatprep.subr.mxu0 0.0
    %361 = vmatpush1.msra.mxu0 %v344
    %362 = vmatprep.subr.mxu0 0.0
    %363 = vmatpush1.msra.mxu0 %v343
    %364 = vmatprep.subr.mxu0 0.0
    %365 = vmatpush1.msra.mxu0 %v342
    %366 = vmatprep.subr.mxu0 0.0
    %367 = vmatpush1.msra.mxu0 %v341
    %368 = vmatprep.subr.mxu0 0.0
    %369 = vmatpush1.msra.mxu0 %v340
    %370 = vmatprep.subr.mxu0 0.0
    %371 = vmatpush1.msra.mxu0 %v339
    %372 = vmatprep.subr.mxu0 0.0
    %373 = vmatpush1.msra.mxu0 %v338
    %374 = vmatprep.subr.mxu0 0.0
    %375 = vmatpush1.msra.mxu0 %v337
    %376 = vmatprep.subr.mxu0 0.0
    %377 = vmatpush1.msra.mxu0 %v336
    %378 = vmatprep.subr.mxu0 0.0
    %379 = vmatpush1.msra.mxu0 %v335
    %380 = vmatprep.subr.mxu0 0.0
    %381 = vmatpush1.msra.mxu0 %v334
    %382 = vmatprep.subr.mxu0 0.0
    %383 = vmatpush2.msra.mxu0 0.0
    %384 = vmatprep.subr.mxu0 0.0
    %385 = vmatpush2.msra.mxu0 0.0
    %386 = vmatprep.subr.mxu0 0.0
    %387 = vmatpush2.msra.mxu0 0.0
    %388 = vmatprep.subr.mxu0 0.0
    %389 = vmatpush2.msra.mxu0 0.0
    %390 = vmatprep.subr.mxu0 0.0
    %391 = vmatpush2.msra.mxu0 0.0
    %392 = vmatprep.subr.mxu0 0.0
    %393 = vmatpush2.msra.mxu0 0.0
    %394 = vmatprep.subr.mxu0 0.0
    %395 = vmatpush2.msra.mxu0 0.0
    %396 = vmatprep.subr.mxu0 0.0
    %397 = vmatpush2.msra.mxu0 0.0
    %398 = vmatprep.subr.mxu0 0.0
    %399 = vmatpush2.msra.mxu0 0.0
    %400 = vmatprep.subr.mxu0 0.0
    %401 = vmatpush2.msra.mxu0 0.0
    %402 = vmatprep.subr.mxu0 0.0
    %403 = vmatpush2.msra.mxu0 0.0
    %404 = vmatprep.subr.mxu0 0.0
    %405 = vmatpush2.msra.mxu0 0.0
    %406 = vmatprep.subr.mxu0 0.0
    %407 = vmatpush2.msra.mxu0 0.0
    %408 = vmatprep.subr.mxu0 0.0
    %409 = vmatpush2.msra.mxu0 0.0
    %410 = vmatprep.subr.mxu0 0.0
    %411 = vmatpush2.msra.mxu0 0.0
    %412 = vmatprep.subr.mxu0 0.0
    %413 = vmatpush2.msra.mxu0 0.0
    %414 = vmatprep.mubr.f32.mxu0 0.0
    %415 = vmatmul.mubr.f32.gmra.mxu0 %v138
    %v416 = vpop.f32.mrf.mxu0
    %v417 = vadd.f32 0.0, %v416
    %v418 = vpop.f32.mrf.mxu0
    %419 = vmatprep.mubr.f32.mxu0 0.0
    %420 = vmatmul.mubr.f32.gmra.mxu0 %v139
    %v421 = vpop.f32.mrf.mxu0
    %v422 = vadd.f32 0.0, %v421
    %v423 = vpop.f32.mrf.mxu0
    %424 = vdwg.mxu0
    %v426 = vsel %vm311, %v332, 0
    %v429 = vsel %vm311, %v333, 0
    %431 = vmatprep.subr.mxu0 0.0
    %432 = vmatpush1.msra.mxu0 0.0
    %433 = vmatprep.subr.mxu0 0.0
    %434 = vmatpush1.msra.mxu0 0.0
    %435 = vmatprep.subr.mxu0 0.0
    %436 = vmatpush1.msra.mxu0 0.0
    %437 = vmatprep.subr.mxu0 0.0
    %438 = vmatpush1.msra.mxu0 0.0
    %439 = vmatprep.subr.mxu0 0.0
    %440 = vmatpush1.msra.mxu0 0.0
    %441 = vmatprep.subr.mxu0 0.0
    %442 = vmatpush1.msra.mxu0 0.0
    %443 = vmatprep.subr.mxu0 0.0
    %444 = vmatpush1.msra.mxu0 0.0
    %445 = vmatprep.subr.mxu0 0.0
    %446 = vmatpush1.msra.mxu0 0.0
    %447 = vmatprep.subr.mxu0 0.0
    %448 = vmatpush1.msra.mxu0 0.0
    %449 = vmatprep.subr.mxu0 0.0
    %450 = vmatpush1.msra.mxu0 0.0
    %451 = vmatprep.subr.mxu0 0.0
    %452 = vmatpush1.msra.mxu0 0.0
    %453 = vmatprep.subr.mxu0 0.0
    %454 = vmatpush1.msra.mxu0 0.0
    %455 = vmatprep.subr.mxu0 0.0
    %456 = vmatpush1.msra.mxu0 0.0
    %457 = vmatprep.subr.mxu0 0.0
    %458 = vmatpush1.msra.mxu0 0.0
    %459 = vmatprep.subr.mxu0 0.0
    %460 = vmatpush1.msra.mxu0 %v422
    %461 = vmatprep.subr.mxu0 0.0
    %462 = vmatpush1.msra.mxu0 %v417
    %463 = vmatprep.subr.mxu0 0.0
    %464 = vmatpush2.msra.mxu0 0.0
    %465 = vmatprep.subr.mxu0 0.0
    %466 = vmatpush2.msra.mxu0 0.0
    %467 = vmatprep.subr.mxu0 0.0
    %468 = vmatpush2.msra.mxu0 0.0
    %469 = vmatprep.subr.mxu0 0.0
    %470 = vmatpush2.msra.mxu0 0.0
    %471 = vmatprep.subr.mxu0 0.0
    %472 = vmatpush2.msra.mxu0 0.0
    %473 = vmatprep.subr.mxu0 0.0
    %474 = vmatpush2.msra.mxu0 0.0
    %475 = vmatprep.subr.mxu0 0.0
    %476 = vmatpush2.msra.mxu0 0.0
    %477 = vmatprep.subr.mxu0 0.0
    %478 = vmatpush2.msra.mxu0 0.0
    %479 = vmatprep.subr.mxu0 0.0
    %480 = vmatpush2.msra.mxu0 0.0
    %481 = vmatprep.subr.mxu0 0.0
    %482 = vmatpush2.msra.mxu0 0.0
    %483 = vmatprep.subr.mxu0 0.0
    %484 = vmatpush2.msra.mxu0 0.0
    %485 = vmatprep.subr.mxu0 0.0
    %486 = vmatpush2.msra.mxu0 0.0
    %487 = vmatprep.subr.mxu0 0.0
    %488 = vmatpush2.msra.mxu0 0.0
    %489 = vmatprep.subr.mxu0 0.0
    %490 = vmatpush2.msra.mxu0 0.0
    %491 = vmatprep.subr.mxu0 0.0
    %492 = vmatpush2.msra.mxu0 0.0
    %493 = vmatprep.subr.mxu0 0.0
    %494 = vmatpush2.msra.mxu0 0.0
    %495 = vmatprep.mubr.f32.mxu0 0.0
    %496 = vmatmul.mubr.f32.gmra.mxu0 %v426
    %v497 = vpop.f32.mrf.mxu0
    %v498 = vadd.f32 0.0, %v497
    %v499 = vpop.f32.mrf.mxu0
    %500 = vmatprep.mubr.f32.mxu0 0.0
    %501 = vmatmul.mubr.f32.gmra.mxu0 %v429
    %v502 = vpop.f32.mrf.mxu0
    %v503 = vadd.f32 0.0, %v502
    %v504 = vpop.f32.mrf.mxu0
    %505 = vdwg.mxu0
    %v506 = vlaneseq
    %v507 = vshrl.u32 %v506, 7
    %v508 = vsub.s32 0, %v507
    %v509 = vrot.slane %v142, %v508
    %v510 = vadd.f32 %v509, %v498
    %v511 = vadd.f32 %v509, %v503
    %s512 = scalar_lea.vmem [#allocation2], 128
    %v513 = vld [vmem:[%s512] sm:$0xff]
    %v514 = vld [vmem:[%s512 + $0x8] sm:$0xff]
    %v515 = vld [vmem:[%s512 + $0x10] sm:$0xff]
    %v516 = vld [vmem:[%s512 + $0x18] sm:$0xff]
    %v517 = vld [vmem:[%s512 + $0x20] sm:$0xff]
    %v518 = vld [vmem:[%s512 + $0x28] sm:$0xff]
    %v519 = vld [vmem:[%s512 + $0x30] sm:$0xff]
    %v520 = vld [vmem:[%s512 + $0x38] sm:$0xff]
    %v521 = vld [vmem:[%s512 + $0x40] sm:$0xff]
    %v522 = vld [vmem:[%s512 + $0x48] sm:$0xff]
    %v523 = vld [vmem:[%s512 + $0x50] sm:$0xff]
    %v524 = vld [vmem:[%s512 + $0x58] sm:$0xff]
    %v525 = vld [vmem:[%s512 + $0x60] sm:$0xff]
    %v526 = vld [vmem:[%s512 + $0x68] sm:$0xff]
    %v527 = vld [vmem:[%s512 + $0x70] sm:$0xff]
    %v528 = vld [vmem:[%s512 + $0x78] sm:$0xff]
    %529 = vmatprep.subr.mxu0 0.0
    %530 = vmatpush1.msra.mxu0 %v528
    %531 = vmatprep.subr.mxu0 0.0
    %532 = vmatpush1.msra.mxu0 %v527
    %533 = vmatprep.subr.mxu0 0.0
    %534 = vmatpush1.msra.mxu0 %v526
    %535 = vmatprep.subr.mxu0 0.0
    %536 = vmatpush1.msra.mxu0 %v525
    %537 = vmatprep.subr.mxu0 0.0
    %538 = vmatpush1.msra.mxu0 %v524
    %539 = vmatprep.subr.mxu0 0.0
    %540 = vmatpush1.msra.mxu0 %v523
    %541 = vmatprep.subr.mxu0 0.0
    %542 = vmatpush1.msra.mxu0 %v522
    %543 = vmatprep.subr.mxu0 0.0
    %544 = vmatpush1.msra.mxu0 %v521
    %545 = vmatprep.subr.mxu0 0.0
    %546 = vmatpush1.msra.mxu0 %v520
    %547 = vmatprep.subr.mxu0 0.0
    %548 = vmatpush1.msra.mxu0 %v519
    %549 = vmatprep.subr.mxu0 0.0
    %550 = vmatpush1.msra.mxu0 %v518
    %551 = vmatprep.subr.mxu0 0.0
    %552 = vmatpush1.msra.mxu0 %v517
    %553 = vmatprep.subr.mxu0 0.0
    %554 = vmatpush1.msra.mxu0 %v516
    %555 = vmatprep.subr.mxu0 0.0
    %556 = vmatpush1.msra.mxu0 %v515
    %557 = vmatprep.subr.mxu0 0.0
    %558 = vmatpush1.msra.mxu0 %v514
    %559 = vmatprep.subr.mxu0 0.0
    %560 = vmatpush1.msra.mxu0 %v513
    %561 = vmatprep.subr.mxu0 0.0
    %562 = vmatpush2.msra.mxu0 0.0
    %563 = vmatprep.subr.mxu0 0.0
    %564 = vmatpush2.msra.mxu0 0.0
    %565 = vmatprep.subr.mxu0 0.0
    %566 = vmatpush2.msra.mxu0 0.0
    %567 = vmatprep.subr.mxu0 0.0
    %568 = vmatpush2.msra.mxu0 0.0
    %569 = vmatprep.subr.mxu0 0.0
    %570 = vmatpush2.msra.mxu0 0.0
    %571 = vmatprep.subr.mxu0 0.0
    %572 = vmatpush2.msra.mxu0 0.0
    %573 = vmatprep.subr.mxu0 0.0
    %574 = vmatpush2.msra.mxu0 0.0
    %575 = vmatprep.subr.mxu0 0.0
    %576 = vmatpush2.msra.mxu0 0.0
    %577 = vmatprep.subr.mxu0 0.0
    %578 = vmatpush2.msra.mxu0 0.0
    %579 = vmatprep.subr.mxu0 0.0
    %580 = vmatpush2.msra.mxu0 0.0
    %581 = vmatprep.subr.mxu0 0.0
    %582 = vmatpush2.msra.mxu0 0.0
    %583 = vmatprep.subr.mxu0 0.0
    %584 = vmatpush2.msra.mxu0 0.0
    %585 = vmatprep.subr.mxu0 0.0
    %586 = vmatpush2.msra.mxu0 0.0
    %587 = vmatprep.subr.mxu0 0.0
    %588 = vmatpush2.msra.mxu0 0.0
    %589 = vmatprep.subr.mxu0 0.0
    %590 = vmatpush2.msra.mxu0 0.0
    %591 = vmatprep.subr.mxu0 0.0
    %592 = vmatpush2.msra.mxu0 0.0
    %593 = vmatprep.mubr.f32.mxu0 0.0
    %594 = vmatmul.mubr.f32.gmra.mxu0 %v143
    %v595 = vpop.f32.mrf.mxu0
    %v596 = vadd.f32 0.0, %v595
    %v597 = vpop.f32.mrf.mxu0
    %598 = vmatprep.mubr.f32.mxu0 0.0
    %599 = vmatmul.mubr.f32.gmra.mxu0 %v144
    %v600 = vpop.f32.mrf.mxu0
    %v601 = vadd.f32 0.0, %v600
    %v602 = vpop.f32.mrf.mxu0
    %603 = vdwg.mxu0
    %604 = vmatprep.subr.mxu0 0.0
    %605 = vmatpush1.xpose.msra.mxu0 0.0
    %606 = vmatprep.subr.mxu0 0.0
    %607 = vmatpush1.xpose.msra.mxu0 0.0
    %608 = vmatprep.subr.mxu0 0.0
    %609 = vmatpush1.xpose.msra.mxu0 0.0
    %610 = vmatprep.subr.mxu0 0.0
    %611 = vmatpush1.xpose.msra.mxu0 0.0
    %612 = vmatprep.subr.mxu0 0.0
    %613 = vmatpush1.xpose.msra.mxu0 0.0
    %614 = vmatprep.subr.mxu0 0.0
    %615 = vmatpush1.xpose.msra.mxu0 0.0
    %616 = vmatprep.subr.mxu0 0.0
    %617 = vmatpush1.xpose.msra.mxu0 0.0
    %618 = vmatprep.subr.mxu0 0.0
    %619 = vmatpush1.xpose.msra.mxu0 0.0
    %620 = vmatprep.subr.mxu0 0.0
    %621 = vmatpush1.xpose.msra.mxu0 0.0
    %622 = vmatprep.subr.mxu0 0.0
    %623 = vmatpush1.xpose.msra.mxu0 0.0
    %624 = vmatprep.subr.mxu0 0.0
    %625 = vmatpush1.xpose.msra.mxu0 0.0
    %626 = vmatprep.subr.mxu0 0.0
    %627 = vmatpush1.xpose.msra.mxu0 0.0
    %628 = vmatprep.subr.mxu0 0.0
    %629 = vmatpush1.xpose.msra.mxu0 0.0
    %630 = vmatprep.subr.mxu0 0.0
    %631 = vmatpush1.xpose.msra.mxu0 0.0
    %632 = vmatprep.subr.mxu0 0.0
    %633 = vmatpush1.xpose.msra.mxu0 %v144
    %634 = vmatprep.subr.mxu0 0.0
    %635 = vmatpush1.xpose.msra.mxu0 %v143
    %636 = vmatprep.subr.mxu0 0.0
    %637 = vmatpush2.xpose.msra.mxu0 0.0
    %638 = vmatprep.subr.mxu0 0.0
    %639 = vmatpush2.xpose.msra.mxu0 0.0
    %640 = vmatprep.subr.mxu0 0.0
    %641 = vmatpush2.xpose.msra.mxu0 0.0
    %642 = vmatprep.subr.mxu0 0.0
    %643 = vmatpush2.xpose.msra.mxu0 0.0
    %644 = vmatprep.subr.mxu0 0.0
    %645 = vmatpush2.xpose.msra.mxu0 0.0
    %646 = vmatprep.subr.mxu0 0.0
    %647 = vmatpush2.xpose.msra.mxu0 0.0
    %648 = vmatprep.subr.mxu0 0.0
    %649 = vmatpush2.xpose.msra.mxu0 0.0
    %650 = vmatprep.subr.mxu0 0.0
    %651 = vmatpush2.xpose.msra.mxu0 0.0
    %652 = vmatprep.subr.mxu0 0.0
    %653 = vmatpush2.xpose.msra.mxu0 0.0
    %654 = vmatprep.subr.mxu0 0.0
    %655 = vmatpush2.xpose.msra.mxu0 0.0
    %656 = vmatprep.subr.mxu0 0.0
    %657 = vmatpush2.xpose.msra.mxu0 0.0
    %658 = vmatprep.subr.mxu0 0.0
    %659 = vmatpush2.xpose.msra.mxu0 0.0
    %660 = vmatprep.subr.mxu0 0.0
    %661 = vmatpush2.xpose.msra.mxu0 0.0
    %662 = vmatprep.subr.mxu0 0.0
    %663 = vmatpush2.xpose.msra.mxu0 0.0
    %664 = vmatprep.subr.mxu0 0.0
    %665 = vmatpush2.xpose.msra.mxu0 0.0
    %666 = vmatprep.subr.mxu0 0.0
    %667 = vmatpush2.xpose.msra.mxu0 0.0
    %668 = vmatprep.mubr.f32.mxu0 0.0
    %669 = vmatmul.mubr.f32.gmra.mxu0 %v596
    %v670 = vpop.f32.mrf.mxu0
    %v671 = vadd.f32 %v134, %v670
    %v672 = vpop.f32.mrf.mxu0
    %673 = vmatprep.mubr.f32.mxu0 0.0
    %674 = vmatmul.mubr.f32.gmra.mxu0 %v601
    %v675 = vpop.f32.mrf.mxu0
    %v676 = vadd.f32 %v135, %v675
    %v677 = vpop.f32.mrf.mxu0
    %678 = vdwg.mxu0
    %v679 = vsel %vm311, %v671, -inf
    %680 = vmax.xlane.f32.xlu0 %v679
    %v681 = vpop.xlane.xlu0 %680
    %v682 = vsel %vm311, %v676, -inf
    %683 = vmax.xlane.f32.xlu0 %v682
    %v684 = vpop.xlane.xlu0 %683
    %v685 = vsub.f32 %v671, %v681
    %v686 = vsub.f32 %v676, %v684
    %v687 = vmul.f32 %v685, 1.442695
    %v688 = vpow.pop %v687
    %v689 = vmul.f32 %v686, 1.442695
    %v690 = vpow.pop %v689
    %v691 = vsel %vm311, %v688, 0.0
    %692 = vadd.xlane.f32.xlu0 %v691
    %v693 = vpop.xlane.xlu0 %692
    %v694 = vsel %vm311, %v690, 0.0
    %695 = vadd.xlane.f32.xlu0 %v694
    %v696 = vpop.xlane.xlu0 %695
    %v697 = vrcp.pop %v693
    %v698 = vrcp.pop %v696
    %v699 = vmul.f32 %v688, %v697
    %v700 = vmul.f32 %v690, %v698
    %s701 = scalar_lea.vmem [#allocation5], 128
    %v702 = vld [vmem:[%s701] sm:$0xff]
    %v703 = vld [vmem:[%s701 + $0x8] sm:$0xff]
    %v704 = vld [vmem:[%s701 + $0x10] sm:$0xff]
    %v705 = vld [vmem:[%s701 + $0x18] sm:$0xff]
    %v706 = vld [vmem:[%s701 + $0x20] sm:$0xff]
    %v707 = vld [vmem:[%s701 + $0x28] sm:$0xff]
    %v708 = vld [vmem:[%s701 + $0x30] sm:$0xff]
    %v709 = vld [vmem:[%s701 + $0x38] sm:$0xff]
    %v710 = vld [vmem:[%s701 + $0x40] sm:$0xff]
    %v711 = vld [vmem:[%s701 + $0x48] sm:$0xff]
    %v712 = vld [vmem:[%s701 + $0x50] sm:$0xff]
    %v713 = vld [vmem:[%s701 + $0x58] sm:$0xff]
    %v714 = vld [vmem:[%s701 + $0x60] sm:$0xff]
    %v715 = vld [vmem:[%s701 + $0x68] sm:$0xff]
    %v716 = vld [vmem:[%s701 + $0x70] sm:$0xff]
    %v717 = vld [vmem:[%s701 + $0x78] sm:$0xff]
    %718 = vmatprep.subr.mxu0 0.0
    %719 = vmatpush1.msra.mxu0 %v717
    %720 = vmatprep.subr.mxu0 0.0
    %721 = vmatpush1.msra.mxu0 %v716
    %722 = vmatprep.subr.mxu0 0.0
    %723 = vmatpush1.msra.mxu0 %v715
    %724 = vmatprep.subr.mxu0 0.0
    %725 = vmatpush1.msra.mxu0 %v714
    %726 = vmatprep.subr.mxu0 0.0
    %727 = vmatpush1.msra.mxu0 %v713
    %728 = vmatprep.subr.mxu0 0.0
    %729 = vmatpush1.msra.mxu0 %v712
    %730 = vmatprep.subr.mxu0 0.0
    %731 = vmatpush1.msra.mxu0 %v711
    %732 = vmatprep.subr.mxu0 0.0
    %733 = vmatpush1.msra.mxu0 %v710
    %734 = vmatprep.subr.mxu0 0.0
    %735 = vmatpush1.msra.mxu0 %v709
    %736 = vmatprep.subr.mxu0 0.0
    %737 = vmatpush1.msra.mxu0 %v708
    %738 = vmatprep.subr.mxu0 0.0
    %739 = vmatpush1.msra.mxu0 %v707
    %740 = vmatprep.subr.mxu0 0.0
    %741 = vmatpush1.msra.mxu0 %v706
    %742 = vmatprep.subr.mxu0 0.0
    %743 = vmatpush1.msra.mxu0 %v705
    %744 = vmatprep.subr.mxu0 0.0
    %745 = vmatpush1.msra.mxu0 %v704
    %746 = vmatprep.subr.mxu0 0.0
    %747 = vmatpush1.msra.mxu0 %v703
    %748 = vmatprep.subr.mxu0 0.0
    %749 = vmatpush1.msra.mxu0 %v702
    %750 = vmatprep.subr.mxu0 0.0
    %751 = vmatpush2.msra.mxu0 0.0
    %752 = vmatprep.subr.mxu0 0.0
    %753 = vmatpush2.msra.mxu0 0.0
    %754 = vmatprep.subr.mxu0 0.0
    %755 = vmatpush2.msra.mxu0 0.0
    %756 = vmatprep.subr.mxu0 0.0
    %757 = vmatpush2.msra.mxu0 0.0
    %758 = vmatprep.subr.mxu0 0.0
    %759 = vmatpush2.msra.mxu0 0.0
    %760 = vmatprep.subr.mxu0 0.0
    %761 = vmatpush2.msra.mxu0 0.0
    %762 = vmatprep.subr.mxu0 0.0
    %763 = vmatpush2.msra.mxu0 0.0
    %764 = vmatprep.subr.mxu0 0.0
    %765 = vmatpush2.msra.mxu0 0.0
    %766 = vmatprep.subr.mxu0 0.0
    %767 = vmatpush2.msra.mxu0 0.0
    %768 = vmatprep.subr.mxu0 0.0
    %769 = vmatpush2.msra.mxu0 0.0
    %770 = vmatprep.subr.mxu0 0.0
    %771 = vmatpush2.msra.mxu0 0.0
    %772 = vmatprep.subr.mxu0 0.0
    %773 = vmatpush2.msra.mxu0 0.0
    %774 = vmatprep.subr.mxu0 0.0
    %775 = vmatpush2.msra.mxu0 0.0
    %776 = vmatprep.subr.mxu0 0.0
    %777 = vmatpush2.msra.mxu0 0.0
    %778 = vmatprep.subr.mxu0 0.0
    %779 = vmatpush2.msra.mxu0 0.0
    %780 = vmatprep.subr.mxu0 0.0
    %781 = vmatpush2.msra.mxu0 0.0
    %782 = vmatprep.mubr.f32.mxu0 0.0
    %783 = vmatmul.mubr.f32.gmra.mxu0 %v138
    %v784 = vpop.f32.mrf.mxu0
    %v785 = vadd.f32 0.0, %v784
    %v786 = vpop.f32.mrf.mxu0
    %787 = vmatprep.mubr.f32.mxu0 0.0
    %788 = vmatmul.mubr.f32.gmra.mxu0 %v139
    %v789 = vpop.f32.mrf.mxu0
    %v790 = vadd.f32 0.0, %v789
    %v791 = vpop.f32.mrf.mxu0
    %792 = vdwg.mxu0
    %v794 = vsel %vm311, %v699, 0
    %v797 = vsel %vm311, %v700, 0
    %799 = vmatprep.subr.mxu0 0.0
    %800 = vmatpush1.msra.mxu0 0.0
    %801 = vmatprep.subr.mxu0 0.0
    %802 = vmatpush1.msra.mxu0 0.0
    %803 = vmatprep.subr.mxu0 0.0
    %804 = vmatpush1.msra.mxu0 0.0
    %805 = vmatprep.subr.mxu0 0.0
    %806 = vmatpush1.msra.mxu0 0.0
    %807 = vmatprep.subr.mxu0 0.0
    %808 = vmatpush1.msra.mxu0 0.0
    %809 = vmatprep.subr.mxu0 0.0
    %810 = vmatpush1.msra.mxu0 0.0
    %811 = vmatprep.subr.mxu0 0.0
    %812 = vmatpush1.msra.mxu0 0.0
    %813 = vmatprep.subr.mxu0 0.0
    %814 = vmatpush1.msra.mxu0 0.0
    %815 = vmatprep.subr.mxu0 0.0
    %816 = vmatpush1.msra.mxu0 0.0
    %817 = vmatprep.subr.mxu0 0.0
    %818 = vmatpush1.msra.mxu0 0.0
    %819 = vmatprep.subr.mxu0 0.0
    %820 = vmatpush1.msra.mxu0 0.0
    %821 = vmatprep.subr.mxu0 0.0
    %822 = vmatpush1.msra.mxu0 0.0
    %823 = vmatprep.subr.mxu0 0.0
    %824 = vmatpush1.msra.mxu0 0.0
    %825 = vmatprep.subr.mxu0 0.0
    %826 = vmatpush1.msra.mxu0 0.0
    %827 = vmatprep.subr.mxu0 0.0
    %828 = vmatpush1.msra.mxu0 %v790
    %829 = vmatprep.subr.mxu0 0.0
    %830 = vmatpush1.msra.mxu0 %v785
    %831 = vmatprep.subr.mxu0 0.0
    %832 = vmatpush2.msra.mxu0 0.0
    %833 = vmatprep.subr.mxu0 0.0
    %834 = vmatpush2.msra.mxu0 0.0
    %835 = vmatprep.subr.mxu0 0.0
    %836 = vmatpush2.msra.mxu0 0.0
    %837 = vmatprep.subr.mxu0 0.0
    %838 = vmatpush2.msra.mxu0 0.0
    %839 = vmatprep.subr.mxu0 0.0
    %840 = vmatpush2.msra.mxu0 0.0
    %841 = vmatprep.subr.mxu0 0.0
    %842 = vmatpush2.msra.mxu0 0.0
    %843 = vmatprep.subr.mxu0 0.0
    %844 = vmatpush2.msra.mxu0 0.0
    %845 = vmatprep.subr.mxu0 0.0
    %846 = vmatpush2.msra.mxu0 0.0
    %847 = vmatprep.subr.mxu0 0.0
    %848 = vmatpush2.msra.mxu0 0.0
    %849 = vmatprep.subr.mxu0 0.0
    %850 = vmatpush2.msra.mxu0 0.0
    %851 = vmatprep.subr.mxu0 0.0
    %852 = vmatpush2.msra.mxu0 0.0
    %853 = vmatprep.subr.mxu0 0.0
    %854 = vmatpush2.msra.mxu0 0.0
    %855 = vmatprep.subr.mxu0 0.0
    %856 = vmatpush2.msra.mxu0 0.0
    %857 = vmatprep.subr.mxu0 0.0
    %858 = vmatpush2.msra.mxu0 0.0
    %859 = vmatprep.subr.mxu0 0.0
    %860 = vmatpush2.msra.mxu0 0.0
    %861 = vmatprep.subr.mxu0 0.0
    %862 = vmatpush2.msra.mxu0 0.0
    %863 = vmatprep.mubr.f32.mxu0 0.0
    %864 = vmatmul.mubr.f32.gmra.mxu0 %v794
    %v865 = vpop.f32.mrf.mxu0
    %v866 = vadd.f32 0.0, %v865
    %v867 = vpop.f32.mrf.mxu0
    %868 = vmatprep.mubr.f32.mxu0 0.0
    %869 = vmatmul.mubr.f32.gmra.mxu0 %v797
    %v870 = vpop.f32.mrf.mxu0
    %v871 = vadd.f32 0.0, %v870
    %v872 = vpop.f32.mrf.mxu0
    %873 = vdwg.mxu0
    %v874 = vadd.f32 %v510, %v866
    %v875 = vadd.f32 %v511, %v871
    %s876 = scalar_lea.vmem [#allocation2], 256
    %v877 = vld [vmem:[%s876] sm:$0xff]
    %v878 = vld [vmem:[%s876 + $0x8] sm:$0xff]
    %v879 = vld [vmem:[%s876 + $0x10] sm:$0xff]
    %v880 = vld [vmem:[%s876 + $0x18] sm:$0xff]
    %v881 = vld [vmem:[%s876 + $0x20] sm:$0xff]
    %v882 = vld [vmem:[%s876 + $0x28] sm:$0xff]
    %v883 = vld [vmem:[%s876 + $0x30] sm:$0xff]
    %v884 = vld [vmem:[%s876 + $0x38] sm:$0xff]
    %v885 = vld [vmem:[%s876 + $0x40] sm:$0xff]
    %v886 = vld [vmem:[%s876 + $0x48] sm:$0xff]
    %v887 = vld [vmem:[%s876 + $0x50] sm:$0xff]
    %v888 = vld [vmem:[%s876 + $0x58] sm:$0xff]
    %v889 = vld [vmem:[%s876 + $0x60] sm:$0xff]
    %v890 = vld [vmem:[%s876 + $0x68] sm:$0xff]
    %v891 = vld [vmem:[%s876 + $0x70] sm:$0xff]
    %v892 = vld [vmem:[%s876 + $0x78] sm:$0xff]
    %893 = vmatprep.subr.mxu0 0.0
    %894 = vmatpush1.msra.mxu0 %v892
    %895 = vmatprep.subr.mxu0 0.0
    %896 = vmatpush1.msra.mxu0 %v891
    %897 = vmatprep.subr.mxu0 0.0
    %898 = vmatpush1.msra.mxu0 %v890
    %899 = vmatprep.subr.mxu0 0.0
    %900 = vmatpush1.msra.mxu0 %v889
    %901 = vmatprep.subr.mxu0 0.0
    %902 = vmatpush1.msra.mxu0 %v888
    %903 = vmatprep.subr.mxu0 0.0
    %904 = vmatpush1.msra.mxu0 %v887
    %905 = vmatprep.subr.mxu0 0.0
    %906 = vmatpush1.msra.mxu0 %v886
    %907 = vmatprep.subr.mxu0 0.0
    %908 = vmatpush1.msra.mxu0 %v885
    %909 = vmatprep.subr.mxu0 0.0
    %910 = vmatpush1.msra.mxu0 %v884
    %911 = vmatprep.subr.mxu0 0.0
    %912 = vmatpush1.msra.mxu0 %v883
    %913 = vmatprep.subr.mxu0 0.0
    %914 = vmatpush1.msra.mxu0 %v882
    %915 = vmatprep.subr.mxu0 0.0
    %916 = vmatpush1.msra.mxu0 %v881
    %917 = vmatprep.subr.mxu0 0.0
    %918 = vmatpush1.msra.mxu0 %v880
    %919 = vmatprep.subr.mxu0 0.0
    %920 = vmatpush1.msra.mxu0 %v879
    %921 = vmatprep.subr.mxu0 0.0
    %922 = vmatpush1.msra.mxu0 %v878
    %923 = vmatprep.subr.mxu0 0.0
    %924 = vmatpush1.msra.mxu0 %v877
    %925 = vmatprep.subr.mxu0 0.0
    %926 = vmatpush2.msra.mxu0 0.0
    %927 = vmatprep.subr.mxu0 0.0
    %928 = vmatpush2.msra.mxu0 0.0
    %929 = vmatprep.subr.mxu0 0.0
    %930 = vmatpush2.msra.mxu0 0.0
    %931 = vmatprep.subr.mxu0 0.0
    %932 = vmatpush2.msra.mxu0 0.0
    %933 = vmatprep.subr.mxu0 0.0
    %934 = vmatpush2.msra.mxu0 0.0
    %935 = vmatprep.subr.mxu0 0.0
    %936 = vmatpush2.msra.mxu0 0.0
    %937 = vmatprep.subr.mxu0 0.0
    %938 = vmatpush2.msra.mxu0 0.0
    %939 = vmatprep.subr.mxu0 0.0
    %940 = vmatpush2.msra.mxu0 0.0
    %941 = vmatprep.subr.mxu0 0.0
    %942 = vmatpush2.msra.mxu0 0.0
    %943 = vmatprep.subr.mxu0 0.0
    %944 = vmatpush2.msra.mxu0 0.0
    %945 = vmatprep.subr.mxu0 0.0
    %946 = vmatpush2.msra.mxu0 0.0
    %947 = vmatprep.subr.mxu0 0.0
    %948 = vmatpush2.msra.mxu0 0.0
    %949 = vmatprep.subr.mxu0 0.0
    %950 = vmatpush2.msra.mxu0 0.0
    %951 = vmatprep.subr.mxu0 0.0
    %952 = vmatpush2.msra.mxu0 0.0
    %953 = vmatprep.subr.mxu0 0.0
    %954 = vmatpush2.msra.mxu0 0.0
    %955 = vmatprep.subr.mxu0 0.0
    %956 = vmatpush2.msra.mxu0 0.0
    %957 = vmatprep.mubr.f32.mxu0 0.0
    %958 = vmatmul.mubr.f32.gmra.mxu0 %v143
    %v959 = vpop.f32.mrf.mxu0
    %v960 = vadd.f32 0.0, %v959
    %v961 = vpop.f32.mrf.mxu0
    %962 = vmatprep.mubr.f32.mxu0 0.0
    %963 = vmatmul.mubr.f32.gmra.mxu0 %v144
    %v964 = vpop.f32.mrf.mxu0
    %v965 = vadd.f32 0.0, %v964
    %v966 = vpop.f32.mrf.mxu0
    %967 = vdwg.mxu0
    %968 = vmatprep.subr.mxu0 0.0
    %969 = vmatpush1.xpose.msra.mxu0 0.0
    %970 = vmatprep.subr.mxu0 0.0
    %971 = vmatpush1.xpose.msra.mxu0 0.0
    %972 = vmatprep.subr.mxu0 0.0
    %973 = vmatpush1.xpose.msra.mxu0 0.0
    %974 = vmatprep.subr.mxu0 0.0
    %975 = vmatpush1.xpose.msra.mxu0 0.0
    %976 = vmatprep.subr.mxu0 0.0
    %977 = vmatpush1.xpose.msra.mxu0 0.0
    %978 = vmatprep.subr.mxu0 0.0
    %979 = vmatpush1.xpose.msra.mxu0 0.0
    %980 = vmatprep.subr.mxu0 0.0
    %981 = vmatpush1.xpose.msra.mxu0 0.0
    %982 = vmatprep.subr.mxu0 0.0
    %983 = vmatpush1.xpose.msra.mxu0 0.0
    %984 = vmatprep.subr.mxu0 0.0
    %985 = vmatpush1.xpose.msra.mxu0 0.0
    %986 = vmatprep.subr.mxu0 0.0
    %987 = vmatpush1.xpose.msra.mxu0 0.0
    %988 = vmatprep.subr.mxu0 0.0
    %989 = vmatpush1.xpose.msra.mxu0 0.0
    %990 = vmatprep.subr.mxu0 0.0
    %991 = vmatpush1.xpose.msra.mxu0 0.0
    %992 = vmatprep.subr.mxu0 0.0
    %993 = vmatpush1.xpose.msra.mxu0 0.0
    %994 = vmatprep.subr.mxu0 0.0
    %995 = vmatpush1.xpose.msra.mxu0 0.0
    %996 = vmatprep.subr.mxu0 0.0
    %997 = vmatpush1.xpose.msra.mxu0 %v144
    %998 = vmatprep.subr.mxu0 0.0
    %999 = vmatpush1.xpose.msra.mxu0 %v143
    %1000 = vmatprep.subr.mxu0 0.0
    %1001 = vmatpush2.xpose.msra.mxu0 0.0
    %1002 = vmatprep.subr.mxu0 0.0
    %1003 = vmatpush2.xpose.msra.mxu0 0.0
    %1004 = vmatprep.subr.mxu0 0.0
    %1005 = vmatpush2.xpose.msra.mxu0 0.0
    %1006 = vmatprep.subr.mxu0 0.0
    %1007 = vmatpush2.xpose.msra.mxu0 0.0
    %1008 = vmatprep.subr.mxu0 0.0
    %1009 = vmatpush2.xpose.msra.mxu0 0.0
    %1010 = vmatprep.subr.mxu0 0.0
    %1011 = vmatpush2.xpose.msra.mxu0 0.0
    %1012 = vmatprep.subr.mxu0 0.0
    %1013 = vmatpush2.xpose.msra.mxu0 0.0
    %1014 = vmatprep.subr.mxu0 0.0
    %1015 = vmatpush2.xpose.msra.mxu0 0.0
    %1016 = vmatprep.subr.mxu0 0.0
    %1017 = vmatpush2.xpose.msra.mxu0 0.0
    %1018 = vmatprep.subr.mxu0 0.0
    %1019 = vmatpush2.xpose.msra.mxu0 0.0
    %1020 = vmatprep.subr.mxu0 0.0
    %1021 = vmatpush2.xpose.msra.mxu0 0.0
    %1022 = vmatprep.subr.mxu0 0.0
    %1023 = vmatpush2.xpose.msra.mxu0 0.0
    %1024 = vmatprep.subr.mxu0 0.0
    %1025 = vmatpush2.xpose.msra.mxu0 0.0
    %1026 = vmatprep.subr.mxu0 0.0
    %1027 = vmatpush2.xpose.msra.mxu0 0.0
    %1028 = vmatprep.subr.mxu0 0.0
    %1029 = vmatpush2.xpose.msra.mxu0 0.0
    %1030 = vmatprep.subr.mxu0 0.0
    %1031 = vmatpush2.xpose.msra.mxu0 0.0
    %1032 = vmatprep.mubr.f32.mxu0 0.0
    %1033 = vmatmul.mubr.f32.gmra.mxu0 %v960
    %v1034 = vpop.f32.mrf.mxu0
    %v1035 = vadd.f32 %v134, %v1034
    %v1036 = vpop.f32.mrf.mxu0
    %1037 = vmatprep.mubr.f32.mxu0 0.0
    %1038 = vmatmul.mubr.f32.gmra.mxu0 %v965
    %v1039 = vpop.f32.mrf.mxu0
    %v1040 = vadd.f32 %v135, %v1039
    %v1041 = vpop.f32.mrf.mxu0
    %1042 = vdwg.mxu0
    %v1043 = vsel %vm311, %v1035, -inf
    %1044 = vmax.xlane.f32.xlu0 %v1043
    %v1045 = vpop.xlane.xlu0 %1044
    %v1046 = vsel %vm311, %v1040, -inf
    %1047 = vmax.xlane.f32.xlu0 %v1046
    %v1048 = vpop.xlane.xlu0 %1047
    %v1049 = vsub.f32 %v1035, %v1045
    %v1050 = vsub.f32 %v1040, %v1048
    %v1051 = vmul.f32 %v1049, 1.442695
    %v1052 = vpow.pop %v1051
    %v1053 = vmul.f32 %v1050, 1.442695
    %v1054 = vpow.pop %v1053
    %v1055 = vsel %vm311, %v1052, 0.0
    %1056 = vadd.xlane.f32.xlu0 %v1055
    %v1057 = vpop.xlane.xlu0 %1056
    %v1058 = vsel %vm311, %v1054, 0.0
    %1059 = vadd.xlane.f32.xlu0 %v1058
    %v1060 = vpop.xlane.xlu0 %1059
    %v1061 = vrcp.pop %v1057
    %v1062 = vrcp.pop %v1060
    %v1063 = vmul.f32 %v1052, %v1061
    %v1064 = vmul.f32 %v1054, %v1062
    %s1065 = scalar_lea.vmem [#allocation5], 256
    %v1066 = vld [vmem:[%s1065] sm:$0xff]
    %v1067 = vld [vmem:[%s1065 + $0x8] sm:$0xff]
    %v1068 = vld [vmem:[%s1065 + $0x10] sm:$0xff]
    %v1069 = vld [vmem:[%s1065 + $0x18] sm:$0xff]
    %v1070 = vld [vmem:[%s1065 + $0x20] sm:$0xff]
    %v1071 = vld [vmem:[%s1065 + $0x28] sm:$0xff]
    %v1072 = vld [vmem:[%s1065 + $0x30] sm:$0xff]
    %v1073 = vld [vmem:[%s1065 + $0x38] sm:$0xff]
    %v1074 = vld [vmem:[%s1065 + $0x40] sm:$0xff]
    %v1075 = vld [vmem:[%s1065 + $0x48] sm:$0xff]
    %v1076 = vld [vmem:[%s1065 + $0x50] sm:$0xff]
    %v1077 = vld [vmem:[%s1065 + $0x58] sm:$0xff]
    %v1078 = vld [vmem:[%s1065 + $0x60] sm:$0xff]
    %v1079 = vld [vmem:[%s1065 + $0x68] sm:$0xff]
    %v1080 = vld [vmem:[%s1065 + $0x70] sm:$0xff]
    %v1081 = vld [vmem:[%s1065 + $0x78] sm:$0xff]
    %1082 = vmatprep.subr.mxu0 0.0
    %1083 = vmatpush1.msra.mxu0 %v1081
    %1084 = vmatprep.subr.mxu0 0.0
    %1085 = vmatpush1.msra.mxu0 %v1080
    %1086 = vmatprep.subr.mxu0 0.0
    %1087 = vmatpush1.msra.mxu0 %v1079
    %1088 = vmatprep.subr.mxu0 0.0
    %1089 = vmatpush1.msra.mxu0 %v1078
    %1090 = vmatprep.subr.mxu0 0.0
    %1091 = vmatpush1.msra.mxu0 %v1077
    %1092 = vmatprep.subr.mxu0 0.0
    %1093 = vmatpush1.msra.mxu0 %v1076
    %1094 = vmatprep.subr.mxu0 0.0
    %1095 = vmatpush1.msra.mxu0 %v1075
    %1096 = vmatprep.subr.mxu0 0.0
    %1097 = vmatpush1.msra.mxu0 %v1074
    %1098 = vmatprep.subr.mxu0 0.0
    %1099 = vmatpush1.msra.mxu0 %v1073
    %1100 = vmatprep.subr.mxu0 0.0
    %1101 = vmatpush1.msra.mxu0 %v1072
    %1102 = vmatprep.subr.mxu0 0.0
    %1103 = vmatpush1.msra.mxu0 %v1071
    %1104 = vmatprep.subr.mxu0 0.0
    %1105 = vmatpush1.msra.mxu0 %v1070
    %1106 = vmatprep.subr.mxu0 0.0
    %1107 = vmatpush1.msra.mxu0 %v1069
    %1108 = vmatprep.subr.mxu0 0.0
    %1109 = vmatpush1.msra.mxu0 %v1068
    %1110 = vmatprep.subr.mxu0 0.0
    %1111 = vmatpush1.msra.mxu0 %v1067
    %1112 = vmatprep.subr.mxu0 0.0
    %1113 = vmatpush1.msra.mxu0 %v1066
    %1114 = vmatprep.subr.mxu0 0.0
    %1115 = vmatpush2.msra.mxu0 0.0
    %1116 = vmatprep.subr.mxu0 0.0
    %1117 = vmatpush2.msra.mxu0 0.0
    %1118 = vmatprep.subr.mxu0 0.0
    %1119 = vmatpush2.msra.mxu0 0.0
    %1120 = vmatprep.subr.mxu0 0.0
    %1121 = vmatpush2.msra.mxu0 0.0
    %1122 = vmatprep.subr.mxu0 0.0
    %1123 = vmatpush2.msra.mxu0 0.0
    %1124 = vmatprep.subr.mxu0 0.0
    %1125 = vmatpush2.msra.mxu0 0.0
    %1126 = vmatprep.subr.mxu0 0.0
    %1127 = vmatpush2.msra.mxu0 0.0
    %1128 = vmatprep.subr.mxu0 0.0
    %1129 = vmatpush2.msra.mxu0 0.0
    %1130 = vmatprep.subr.mxu0 0.0
    %1131 = vmatpush2.msra.mxu0 0.0
    %1132 = vmatprep.subr.mxu0 0.0
    %1133 = vmatpush2.msra.mxu0 0.0
    %1134 = vmatprep.subr.mxu0 0.0
    %1135 = vmatpush2.msra.mxu0 0.0
    %1136 = vmatprep.subr.mxu0 0.0
    %1137 = vmatpush2.msra.mxu0 0.0
    %1138 = vmatprep.subr.mxu0 0.0
    %1139 = vmatpush2.msra.mxu0 0.0
    %1140 = vmatprep.subr.mxu0 0.0
    %1141 = vmatpush2.msra.mxu0 0.0
    %1142 = vmatprep.subr.mxu0 0.0
    %1143 = vmatpush2.msra.mxu0 0.0
    %1144 = vmatprep.subr.mxu0 0.0
    %1145 = vmatpush2.msra.mxu0 0.0
    %1146 = vmatprep.mubr.f32.mxu0 0.0
    %1147 = vmatmul.mubr.f32.gmra.mxu0 %v138
    %v1148 = vpop.f32.mrf.mxu0
    %v1149 = vadd.f32 0.0, %v1148
    %v1150 = vpop.f32.mrf.mxu0
    %1151 = vmatprep.mubr.f32.mxu0 0.0
    %1152 = vmatmul.mubr.f32.gmra.mxu0 %v139
    %v1153 = vpop.f32.mrf.mxu0
    %v1154 = vadd.f32 0.0, %v1153
    %v1155 = vpop.f32.mrf.mxu0
    %1156 = vdwg.mxu0
    %v1158 = vsel %vm311, %v1063, 0
    %v1161 = vsel %vm311, %v1064, 0
    %1163 = vmatprep.subr.mxu0 0.0
    %1164 = vmatpush1.msra.mxu0 0.0
    %1165 = vmatprep.subr.mxu0 0.0
    %1166 = vmatpush1.msra.mxu0 0.0
    %1167 = vmatprep.subr.mxu0 0.0
    %1168 = vmatpush1.msra.mxu0 0.0
    %1169 = vmatprep.subr.mxu0 0.0
    %1170 = vmatpush1.msra.mxu0 0.0
    %1171 = vmatprep.subr.mxu0 0.0
    %1172 = vmatpush1.msra.mxu0 0.0
    %1173 = vmatprep.subr.mxu0 0.0
    %1174 = vmatpush1.msra.mxu0 0.0
    %1175 = vmatprep.subr.mxu0 0.0
    %1176 = vmatpush1.msra.mxu0 0.0
    %1177 = vmatprep.subr.mxu0 0.0
    %1178 = vmatpush1.msra.mxu0 0.0
    %1179 = vmatprep.subr.mxu0 0.0
    %1180 = vmatpush1.msra.mxu0 0.0
    %1181 = vmatprep.subr.mxu0 0.0
    %1182 = vmatpush1.msra.mxu0 0.0
    %1183 = vmatprep.subr.mxu0 0.0
    %1184 = vmatpush1.msra.mxu0 0.0
    %1185 = vmatprep.subr.mxu0 0.0
    %1186 = vmatpush1.msra.mxu0 0.0
    %1187 = vmatprep.subr.mxu0 0.0
    %1188 = vmatpush1.msra.mxu0 0.0
    %1189 = vmatprep.subr.mxu0 0.0
    %1190 = vmatpush1.msra.mxu0 0.0
    %1191 = vmatprep.subr.mxu0 0.0
    %1192 = vmatpush1.msra.mxu0 %v1154
    %1193 = vmatprep.subr.mxu0 0.0
    %1194 = vmatpush1.msra.mxu0 %v1149
    %1195 = vmatprep.subr.mxu0 0.0
    %1196 = vmatpush2.msra.mxu0 0.0
    %1197 = vmatprep.subr.mxu0 0.0
    %1198 = vmatpush2.msra.mxu0 0.0
    %1199 = vmatprep.subr.mxu0 0.0
    %1200 = vmatpush2.msra.mxu0 0.0
    %1201 = vmatprep.subr.mxu0 0.0
    %1202 = vmatpush2.msra.mxu0 0.0
    %1203 = vmatprep.subr.mxu0 0.0
    %1204 = vmatpush2.msra.mxu0 0.0
    %1205 = vmatprep.subr.mxu0 0.0
    %1206 = vmatpush2.msra.mxu0 0.0
    %1207 = vmatprep.subr.mxu0 0.0
    %1208 = vmatpush2.msra.mxu0 0.0
    %1209 = vmatprep.subr.mxu0 0.0
    %1210 = vmatpush2.msra.mxu0 0.0
    %1211 = vmatprep.subr.mxu0 0.0
    %1212 = vmatpush2.msra.mxu0 0.0
    %1213 = vmatprep.subr.mxu0 0.0
    %1214 = vmatpush2.msra.mxu0 0.0
    %1215 = vmatprep.subr.mxu0 0.0
    %1216 = vmatpush2.msra.mxu0 0.0
    %1217 = vmatprep.subr.mxu0 0.0
    %1218 = vmatpush2.msra.mxu0 0.0
    %1219 = vmatprep.subr.mxu0 0.0
    %1220 = vmatpush2.msra.mxu0 0.0
    %1221 = vmatprep.subr.mxu0 0.0
    %1222 = vmatpush2.msra.mxu0 0.0
    %1223 = vmatprep.subr.mxu0 0.0
    %1224 = vmatpush2.msra.mxu0 0.0
    %1225 = vmatprep.subr.mxu0 0.0
    %1226 = vmatpush2.msra.mxu0 0.0
    %1227 = vmatprep.mubr.f32.mxu0 0.0
    %1228 = vmatmul.mubr.f32.gmra.mxu0 %v1158
    %v1229 = vpop.f32.mrf.mxu0
    %v1230 = vadd.f32 0.0, %v1229
    %v1231 = vpop.f32.mrf.mxu0
    %1232 = vmatprep.mubr.f32.mxu0 0.0
    %1233 = vmatmul.mubr.f32.gmra.mxu0 %v1161
    %v1234 = vpop.f32.mrf.mxu0
    %v1235 = vadd.f32 0.0, %v1234
    %v1236 = vpop.f32.mrf.mxu0
    %1237 = vdwg.mxu0
    %v1238 = vadd.f32 %v874, %v1230
    %v1239 = vadd.f32 %v875, %v1235
    %s1240 = scalar_lea.vmem [#allocation2], 384
    %v1241 = vld [vmem:[%s1240] sm:$0xff]
    %v1242 = vld [vmem:[%s1240 + $0x8] sm:$0xff]
    %v1243 = vld [vmem:[%s1240 + $0x10] sm:$0xff]
    %v1244 = vld [vmem:[%s1240 + $0x18] sm:$0xff]
    %v1245 = vld [vmem:[%s1240 + $0x20] sm:$0xff]
    %v1246 = vld [vmem:[%s1240 + $0x28] sm:$0xff]
    %v1247 = vld [vmem:[%s1240 + $0x30] sm:$0xff]
    %v1248 = vld [vmem:[%s1240 + $0x38] sm:$0xff]
    %v1249 = vld [vmem:[%s1240 + $0x40] sm:$0xff]
    %v1250 = vld [vmem:[%s1240 + $0x48] sm:$0xff]
    %v1251 = vld [vmem:[%s1240 + $0x50] sm:$0xff]
    %v1252 = vld [vmem:[%s1240 + $0x58] sm:$0xff]
    %v1253 = vld [vmem:[%s1240 + $0x60] sm:$0xff]
    %v1254 = vld [vmem:[%s1240 + $0x68] sm:$0xff]
    %v1255 = vld [vmem:[%s1240 + $0x70] sm:$0xff]
    %v1256 = vld [vmem:[%s1240 + $0x78] sm:$0xff]
    %1257 = vmatprep.subr.mxu0 0.0
    %1258 = vmatpush1.msra.mxu0 %v1256
    %1259 = vmatprep.subr.mxu0 0.0
    %1260 = vmatpush1.msra.mxu0 %v1255
    %1261 = vmatprep.subr.mxu0 0.0
    %1262 = vmatpush1.msra.mxu0 %v1254
    %1263 = vmatprep.subr.mxu0 0.0
    %1264 = vmatpush1.msra.mxu0 %v1253
    %1265 = vmatprep.subr.mxu0 0.0
    %1266 = vmatpush1.msra.mxu0 %v1252
    %1267 = vmatprep.subr.mxu0 0.0
    %1268 = vmatpush1.msra.mxu0 %v1251
    %1269 = vmatprep.subr.mxu0 0.0
    %1270 = vmatpush1.msra.mxu0 %v1250
    %1271 = vmatprep.subr.mxu0 0.0
    %1272 = vmatpush1.msra.mxu0 %v1249
    %1273 = vmatprep.subr.mxu0 0.0
    %1274 = vmatpush1.msra.mxu0 %v1248
    %1275 = vmatprep.subr.mxu0 0.0
    %1276 = vmatpush1.msra.mxu0 %v1247
    %1277 = vmatprep.subr.mxu0 0.0
    %1278 = vmatpush1.msra.mxu0 %v1246
    %1279 = vmatprep.subr.mxu0 0.0
    %1280 = vmatpush1.msra.mxu0 %v1245
    %1281 = vmatprep.subr.mxu0 0.0
    %1282 = vmatpush1.msra.mxu0 %v1244
    %1283 = vmatprep.subr.mxu0 0.0
    %1284 = vmatpush1.msra.mxu0 %v1243
    %1285 = vmatprep.subr.mxu0 0.0
    %1286 = vmatpush1.msra.mxu0 %v1242
    %1287 = vmatprep.subr.mxu0 0.0
    %1288 = vmatpush1.msra.mxu0 %v1241
    %1289 = vmatprep.subr.mxu0 0.0
    %1290 = vmatpush2.msra.mxu0 0.0
    %1291 = vmatprep.subr.mxu0 0.0
    %1292 = vmatpush2.msra.mxu0 0.0
    %1293 = vmatprep.subr.mxu0 0.0
    %1294 = vmatpush2.msra.mxu0 0.0
    %1295 = vmatprep.subr.mxu0 0.0
    %1296 = vmatpush2.msra.mxu0 0.0
    %1297 = vmatprep.subr.mxu0 0.0
    %1298 = vmatpush2.msra.mxu0 0.0
    %1299 = vmatprep.subr.mxu0 0.0
    %1300 = vmatpush2.msra.mxu0 0.0
    %1301 = vmatprep.subr.mxu0 0.0
    %1302 = vmatpush2.msra.mxu0 0.0
    %1303 = vmatprep.subr.mxu0 0.0
    %1304 = vmatpush2.msra.mxu0 0.0
    %1305 = vmatprep.subr.mxu0 0.0
    %1306 = vmatpush2.msra.mxu0 0.0
    %1307 = vmatprep.subr.mxu0 0.0
    %1308 = vmatpush2.msra.mxu0 0.0
    %1309 = vmatprep.subr.mxu0 0.0
    %1310 = vmatpush2.msra.mxu0 0.0
    %1311 = vmatprep.subr.mxu0 0.0
    %1312 = vmatpush2.msra.mxu0 0.0
    %1313 = vmatprep.subr.mxu0 0.0
    %1314 = vmatpush2.msra.mxu0 0.0
    %1315 = vmatprep.subr.mxu0 0.0
    %1316 = vmatpush2.msra.mxu0 0.0
    %1317 = vmatprep.subr.mxu0 0.0
    %1318 = vmatpush2.msra.mxu0 0.0
    %1319 = vmatprep.subr.mxu0 0.0
    %1320 = vmatpush2.msra.mxu0 0.0
    %1321 = vmatprep.mubr.f32.mxu0 0.0
    %1322 = vmatmul.mubr.f32.gmra.mxu0 %v143
    %v1323 = vpop.f32.mrf.mxu0
    %v1324 = vadd.f32 0.0, %v1323
    %v1325 = vpop.f32.mrf.mxu0
    %1326 = vmatprep.mubr.f32.mxu0 0.0
    %1327 = vmatmul.mubr.f32.gmra.mxu0 %v144
    %v1328 = vpop.f32.mrf.mxu0
    %v1329 = vadd.f32 0.0, %v1328
    %v1330 = vpop.f32.mrf.mxu0
    %1331 = vdwg.mxu0
    %1332 = vmatprep.subr.mxu0 0.0
    %1333 = vmatpush1.xpose.msra.mxu0 0.0
    %1334 = vmatprep.subr.mxu0 0.0
    %1335 = vmatpush1.xpose.msra.mxu0 0.0
    %1336 = vmatprep.subr.mxu0 0.0
    %1337 = vmatpush1.xpose.msra.mxu0 0.0
    %1338 = vmatprep.subr.mxu0 0.0
    %1339 = vmatpush1.xpose.msra.mxu0 0.0
    %1340 = vmatprep.subr.mxu0 0.0
    %1341 = vmatpush1.xpose.msra.mxu0 0.0
    %1342 = vmatprep.subr.mxu0 0.0
    %1343 = vmatpush1.xpose.msra.mxu0 0.0
    %1344 = vmatprep.subr.mxu0 0.0
    %1345 = vmatpush1.xpose.msra.mxu0 0.0
    %1346 = vmatprep.subr.mxu0 0.0
    %1347 = vmatpush1.xpose.msra.mxu0 0.0
    %1348 = vmatprep.subr.mxu0 0.0
    %1349 = vmatpush1.xpose.msra.mxu0 0.0
    %1350 = vmatprep.subr.mxu0 0.0
    %1351 = vmatpush1.xpose.msra.mxu0 0.0
    %1352 = vmatprep.subr.mxu0 0.0
    %1353 = vmatpush1.xpose.msra.mxu0 0.0
    %1354 = vmatprep.subr.mxu0 0.0
    %1355 = vmatpush1.xpose.msra.mxu0 0.0
    %1356 = vmatprep.subr.mxu0 0.0
    %1357 = vmatpush1.xpose.msra.mxu0 0.0
    %1358 = vmatprep.subr.mxu0 0.0
    %1359 = vmatpush1.xpose.msra.mxu0 0.0
    %1360 = vmatprep.subr.mxu0 0.0
    %1361 = vmatpush1.xpose.msra.mxu0 %v144
    %1362 = vmatprep.subr.mxu0 0.0
    %1363 = vmatpush1.xpose.msra.mxu0 %v143
    %1364 = vmatprep.subr.mxu0 0.0
    %1365 = vmatpush2.xpose.msra.mxu0 0.0
    %1366 = vmatprep.subr.mxu0 0.0
    %1367 = vmatpush2.xpose.msra.mxu0 0.0
    %1368 = vmatprep.subr.mxu0 0.0
    %1369 = vmatpush2.xpose.msra.mxu0 0.0
    %1370 = vmatprep.subr.mxu0 0.0
    %1371 = vmatpush2.xpose.msra.mxu0 0.0
    %1372 = vmatprep.subr.mxu0 0.0
    %1373 = vmatpush2.xpose.msra.mxu0 0.0
    %1374 = vmatprep.subr.mxu0 0.0
    %1375 = vmatpush2.xpose.msra.mxu0 0.0
    %1376 = vmatprep.subr.mxu0 0.0
    %1377 = vmatpush2.xpose.msra.mxu0 0.0
    %1378 = vmatprep.subr.mxu0 0.0
    %1379 = vmatpush2.xpose.msra.mxu0 0.0
    %1380 = vmatprep.subr.mxu0 0.0
    %1381 = vmatpush2.xpose.msra.mxu0 0.0
    %1382 = vmatprep.subr.mxu0 0.0
    %1383 = vmatpush2.xpose.msra.mxu0 0.0
    %1384 = vmatprep.subr.mxu0 0.0
    %1385 = vmatpush2.xpose.msra.mxu0 0.0
    %1386 = vmatprep.subr.mxu0 0.0
    %1387 = vmatpush2.xpose.msra.mxu0 0.0
    %1388 = vmatprep.subr.mxu0 0.0
    %1389 = vmatpush2.xpose.msra.mxu0 0.0
    %1390 = vmatprep.subr.mxu0 0.0
    %1391 = vmatpush2.xpose.msra.mxu0 0.0
    %1392 = vmatprep.subr.mxu0 0.0
    %1393 = vmatpush2.xpose.msra.mxu0 0.0
    %1394 = vmatprep.subr.mxu0 0.0
    %1395 = vmatpush2.xpose.msra.mxu0 0.0
    %1396 = vmatprep.mubr.f32.mxu0 0.0
    %1397 = vmatmul.mubr.f32.gmra.mxu0 %v1324
    %v1398 = vpop.f32.mrf.mxu0
    %v1399 = vadd.f32 %v134, %v1398
    %v1400 = vpop.f32.mrf.mxu0
    %1401 = vmatprep.mubr.f32.mxu0 0.0
    %1402 = vmatmul.mubr.f32.gmra.mxu0 %v1329
    %v1403 = vpop.f32.mrf.mxu0
    %v1404 = vadd.f32 %v135, %v1403
    %v1405 = vpop.f32.mrf.mxu0
    %1406 = vdwg.mxu0
    %v1407 = vsel %vm311, %v1399, -inf
    %1408 = vmax.xlane.f32.xlu0 %v1407
    %v1409 = vpop.xlane.xlu0 %1408
    %v1410 = vsel %vm311, %v1404, -inf
    %1411 = vmax.xlane.f32.xlu0 %v1410
    %v1412 = vpop.xlane.xlu0 %1411
    %v1413 = vsub.f32 %v1399, %v1409
    %v1414 = vsub.f32 %v1404, %v1412
    %v1415 = vmul.f32 %v1413, 1.442695
    %v1416 = vpow.pop %v1415
    %v1417 = vmul.f32 %v1414, 1.442695
    %v1418 = vpow.pop %v1417
    %v1419 = vsel %vm311, %v1416, 0.0
    %1420 = vadd.xlane.f32.xlu0 %v1419
    %v1421 = vpop.xlane.xlu0 %1420
    %v1422 = vsel %vm311, %v1418, 0.0
    %1423 = vadd.xlane.f32.xlu0 %v1422
    %v1424 = vpop.xlane.xlu0 %1423
    %v1425 = vrcp.pop %v1421
    %v1426 = vrcp.pop %v1424
    %v1427 = vmul.f32 %v1416, %v1425
    %v1428 = vmul.f32 %v1418, %v1426
    %s1429 = scalar_lea.vmem [#allocation5], 384
    %v1430 = vld [vmem:[%s1429] sm:$0xff]
    %v1431 = vld [vmem:[%s1429 + $0x8] sm:$0xff]
    %v1432 = vld [vmem:[%s1429 + $0x10] sm:$0xff]
    %v1433 = vld [vmem:[%s1429 + $0x18] sm:$0xff]
    %v1434 = vld [vmem:[%s1429 + $0x20] sm:$0xff]
    %v1435 = vld [vmem:[%s1429 + $0x28] sm:$0xff]
    %v1436 = vld [vmem:[%s1429 + $0x30] sm:$0xff]
    %v1437 = vld [vmem:[%s1429 + $0x38] sm:$0xff]
    %v1438 = vld [vmem:[%s1429 + $0x40] sm:$0xff]
    %v1439 = vld [vmem:[%s1429 + $0x48] sm:$0xff]
    %v1440 = vld [vmem:[%s1429 + $0x50] sm:$0xff]
    %v1441 = vld [vmem:[%s1429 + $0x58] sm:$0xff]
    %v1442 = vld [vmem:[%s1429 + $0x60] sm:$0xff]
    %v1443 = vld [vmem:[%s1429 + $0x68] sm:$0xff]
    %v1444 = vld [vmem:[%s1429 + $0x70] sm:$0xff]
    %v1445 = vld [vmem:[%s1429 + $0x78] sm:$0xff]
    %1446 = vmatprep.subr.mxu0 0.0
    %1447 = vmatpush1.msra.mxu0 %v1445
    %1448 = vmatprep.subr.mxu0 0.0
    %1449 = vmatpush1.msra.mxu0 %v1444
    %1450 = vmatprep.subr.mxu0 0.0
    %1451 = vmatpush1.msra.mxu0 %v1443
    %1452 = vmatprep.subr.mxu0 0.0
    %1453 = vmatpush1.msra.mxu0 %v1442
    %1454 = vmatprep.subr.mxu0 0.0
    %1455 = vmatpush1.msra.mxu0 %v1441
    %1456 = vmatprep.subr.mxu0 0.0
    %1457 = vmatpush1.msra.mxu0 %v1440
    %1458 = vmatprep.subr.mxu0 0.0
    %1459 = vmatpush1.msra.mxu0 %v1439
    %1460 = vmatprep.subr.mxu0 0.0
    %1461 = vmatpush1.msra.mxu0 %v1438
    %1462 = vmatprep.subr.mxu0 0.0
    %1463 = vmatpush1.msra.mxu0 %v1437
    %1464 = vmatprep.subr.mxu0 0.0
    %1465 = vmatpush1.msra.mxu0 %v1436
    %1466 = vmatprep.subr.mxu0 0.0
    %1467 = vmatpush1.msra.mxu0 %v1435
    %1468 = vmatprep.subr.mxu0 0.0
    %1469 = vmatpush1.msra.mxu0 %v1434
    %1470 = vmatprep.subr.mxu0 0.0
    %1471 = vmatpush1.msra.mxu0 %v1433
    %1472 = vmatprep.subr.mxu0 0.0
    %1473 = vmatpush1.msra.mxu0 %v1432
    %1474 = vmatprep.subr.mxu0 0.0
    %1475 = vmatpush1.msra.mxu0 %v1431
    %1476 = vmatprep.subr.mxu0 0.0
    %1477 = vmatpush1.msra.mxu0 %v1430
    %1478 = vmatprep.subr.mxu0 0.0
    %1479 = vmatpush2.msra.mxu0 0.0
    %1480 = vmatprep.subr.mxu0 0.0
    %1481 = vmatpush2.msra.mxu0 0.0
    %1482 = vmatprep.subr.mxu0 0.0
    %1483 = vmatpush2.msra.mxu0 0.0
    %1484 = vmatprep.subr.mxu0 0.0
    %1485 = vmatpush2.msra.mxu0 0.0
    %1486 = vmatprep.subr.mxu0 0.0
    %1487 = vmatpush2.msra.mxu0 0.0
    %1488 = vmatprep.subr.mxu0 0.0
    %1489 = vmatpush2.msra.mxu0 0.0
    %1490 = vmatprep.subr.mxu0 0.0
    %1491 = vmatpush2.msra.mxu0 0.0
    %1492 = vmatprep.subr.mxu0 0.0
    %1493 = vmatpush2.msra.mxu0 0.0
    %1494 = vmatprep.subr.mxu0 0.0
    %1495 = vmatpush2.msra.mxu0 0.0
    %1496 = vmatprep.subr.mxu0 0.0
    %1497 = vmatpush2.msra.mxu0 0.0
    %1498 = vmatprep.subr.mxu0 0.0
    %1499 = vmatpush2.msra.mxu0 0.0
    %1500 = vmatprep.subr.mxu0 0.0
    %1501 = vmatpush2.msra.mxu0 0.0
    %1502 = vmatprep.subr.mxu0 0.0
    %1503 = vmatpush2.msra.mxu0 0.0
    %1504 = vmatprep.subr.mxu0 0.0
    %1505 = vmatpush2.msra.mxu0 0.0
    %1506 = vmatprep.subr.mxu0 0.0
    %1507 = vmatpush2.msra.mxu0 0.0
    %1508 = vmatprep.subr.mxu0 0.0
    %1509 = vmatpush2.msra.mxu0 0.0
    %1510 = vmatprep.mubr.f32.mxu0 0.0
    %1511 = vmatmul.mubr.f32.gmra.mxu0 %v138
    %v1512 = vpop.f32.mrf.mxu0
    %v1513 = vadd.f32 0.0, %v1512
    %v1514 = vpop.f32.mrf.mxu0
    %1515 = vmatprep.mubr.f32.mxu0 0.0
    %1516 = vmatmul.mubr.f32.gmra.mxu0 %v139
    %v1517 = vpop.f32.mrf.mxu0
    %v1518 = vadd.f32 0.0, %v1517
    %v1519 = vpop.f32.mrf.mxu0
    %1520 = vdwg.mxu0
    %v1522 = vsel %vm311, %v1427, 0
    %v1525 = vsel %vm311, %v1428, 0
    %1527 = vmatprep.subr.mxu0 0.0
    %1528 = vmatpush1.msra.mxu0 0.0
    %1529 = vmatprep.subr.mxu0 0.0
    %1530 = vmatpush1.msra.mxu0 0.0
    %1531 = vmatprep.subr.mxu0 0.0
    %1532 = vmatpush1.msra.mxu0 0.0
    %1533 = vmatprep.subr.mxu0 0.0
    %1534 = vmatpush1.msra.mxu0 0.0
    %1535 = vmatprep.subr.mxu0 0.0
    %1536 = vmatpush1.msra.mxu0 0.0
    %1537 = vmatprep.subr.mxu0 0.0
    %1538 = vmatpush1.msra.mxu0 0.0
    %1539 = vmatprep.subr.mxu0 0.0
    %1540 = vmatpush1.msra.mxu0 0.0
    %1541 = vmatprep.subr.mxu0 0.0
    %1542 = vmatpush1.msra.mxu0 0.0
    %1543 = vmatprep.subr.mxu0 0.0
    %1544 = vmatpush1.msra.mxu0 0.0
    %1545 = vmatprep.subr.mxu0 0.0
    %1546 = vmatpush1.msra.mxu0 0.0
    %1547 = vmatprep.subr.mxu0 0.0
    %1548 = vmatpush1.msra.mxu0 0.0
    %1549 = vmatprep.subr.mxu0 0.0
    %1550 = vmatpush1.msra.mxu0 0.0
    %1551 = vmatprep.subr.mxu0 0.0
    %1552 = vmatpush1.msra.mxu0 0.0
    %1553 = vmatprep.subr.mxu0 0.0
    %1554 = vmatpush1.msra.mxu0 0.0
    %1555 = vmatprep.subr.mxu0 0.0
    %1556 = vmatpush1.msra.mxu0 %v1518
    %1557 = vmatprep.subr.mxu0 0.0
    %1558 = vmatpush1.msra.mxu0 %v1513
    %1559 = vmatprep.subr.mxu0 0.0
    %1560 = vmatpush2.msra.mxu0 0.0
    %1561 = vmatprep.subr.mxu0 0.0
    %1562 = vmatpush2.msra.mxu0 0.0
    %1563 = vmatprep.subr.mxu0 0.0
    %1564 = vmatpush2.msra.mxu0 0.0
    %1565 = vmatprep.subr.mxu0 0.0
    %1566 = vmatpush2.msra.mxu0 0.0
    %1567 = vmatprep.subr.mxu0 0.0
    %1568 = vmatpush2.msra.mxu0 0.0
    %1569 = vmatprep.subr.mxu0 0.0
    %1570 = vmatpush2.msra.mxu0 0.0
    %1571 = vmatprep.subr.mxu0 0.0
    %1572 = vmatpush2.msra.mxu0 0.0
    %1573 = vmatprep.subr.mxu0 0.0
    %1574 = vmatpush2.msra.mxu0 0.0
    %1575 = vmatprep.subr.mxu0 0.0
    %1576 = vmatpush2.msra.mxu0 0.0
    %1577 = vmatprep.subr.mxu0 0.0
    %1578 = vmatpush2.msra.mxu0 0.0
    %1579 = vmatprep.subr.mxu0 0.0
    %1580 = vmatpush2.msra.mxu0 0.0
    %1581 = vmatprep.subr.mxu0 0.0
    %1582 = vmatpush2.msra.mxu0 0.0
    %1583 = vmatprep.subr.mxu0 0.0
    %1584 = vmatpush2.msra.mxu0 0.0
    %1585 = vmatprep.subr.mxu0 0.0
    %1586 = vmatpush2.msra.mxu0 0.0
    %1587 = vmatprep.subr.mxu0 0.0
    %1588 = vmatpush2.msra.mxu0 0.0
    %1589 = vmatprep.subr.mxu0 0.0
    %1590 = vmatpush2.msra.mxu0 0.0
    %1591 = vmatprep.mubr.f32.mxu0 0.0
    %1592 = vmatmul.mubr.f32.gmra.mxu0 %v1522
    %v1593 = vpop.f32.mrf.mxu0
    %v1594 = vadd.f32 0.0, %v1593
    %v1595 = vpop.f32.mrf.mxu0
    %1596 = vmatprep.mubr.f32.mxu0 0.0
    %1597 = vmatmul.mubr.f32.gmra.mxu0 %v1525
    %v1598 = vpop.f32.mrf.mxu0
    %v1599 = vadd.f32 0.0, %v1598
    %v1600 = vpop.f32.mrf.mxu0
    %1601 = vdwg.mxu0
    %v1602 = vadd.f32 %v1238, %v1594
    %v1603 = vadd.f32 %v1239, %v1599
    %v1604 = vadd.f32 %v138, %v1602
    %v1605 = vadd.f32 %v139, %v1603
    %v1606 = vmul.f32 %v1604, %v89
    %v1607 = vmul.f32 %v1605, %v89
    %1608 = vadd.xlane.f32.xlu0 %v1606
    %v1609 = vpop.xlane.xlu0 %1608
    %1610 = vadd.xlane.f32.xlu0 %v1607
    %v1611 = vpop.xlane.xlu0 %1610
    %v1612 = vmul.f32 %v1609, 0.03125
    %v1613 = vmul.f32 %v1611, 0.03125
    %v1614 = vsub.f32 %v1604, %v1612
    %v1615 = vsub.f32 %v1605, %v1613
    %v1616 = vmul.f32 %v1614, %v89
    %v1617 = vmul.f32 %v1615, %v89
    %v1618 = vmul.f32 %v1616, %v1616
    %v1619 = vmul.f32 %v1617, %v1617
    %1620 = vadd.xlane.f32.xlu0 %v1618
    %v1621 = vpop.xlane.xlu0 %1620
    %1622 = vadd.xlane.f32.xlu0 %v1619
    %v1623 = vpop.xlane.xlu0 %1622
    %v1624 = vmul.f32 %v1621, 0.03125
    %v1625 = vmul.f32 %v1623, 0.03125
    %v1626 = vadd.f32 %v1624, 1e-05
    %v1627 = vadd.f32 %v1625, 1e-05
    %v1628 = vrsqrt.pop %v1626
    %v1629 = vrsqrt.pop %v1627
    %v1630 = vmul.f32 %v1616, %v1628
    %v1631 = vmul.f32 %v1617, %v1629
    %v1632 = vlaneseq
    %v1633 = vshrl.u32 %v1632, 7
    %v1634 = vsub.s32 1, %v1633
    %v1635 = vrot.slane %v142, %v1634
    %v1636 = vmul.f32 %v1630, %v1635
    %v1637 = vmul.f32 %v1631, %v1635
    %v1638 = vlaneseq
    %v1639 = vshrl.u32 %v1638, 7
    %v1640 = vsub.s32 2, %v1639
    %v1641 = vrot.slane %v142, %v1640
    %v1642 = vadd.f32 %v1636, %v1641
    %v1643 = vadd.f32 %v1637, %v1641
    %v1644 = vld [vmem:[#allocation7] sm:$0xff]
    %v1645 = vld [vmem:[#allocation7 + $0x8] sm:$0xff]
    %v1646 = vld [vmem:[#allocation7 + $0x10] sm:$0xff]
    %v1647 = vld [vmem:[#allocation7 + $0x18] sm:$0xff]
    %v1648 = vld [vmem:[#allocation7 + $0x20] sm:$0xff]
    %v1649 = vld [vmem:[#allocation7 + $0x28] sm:$0xff]
    %v1650 = vld [vmem:[#allocation7 + $0x30] sm:$0xff]
    %v1651 = vld [vmem:[#allocation7 + $0x38] sm:$0xff]
    %v1652 = vld [vmem:[#allocation7 + $0x40] sm:$0xff]
    %v1653 = vld [vmem:[#allocation7 + $0x48] sm:$0xff]
    %v1654 = vld [vmem:[#allocation7 + $0x50] sm:$0xff]
    %v1655 = vld [vmem:[#allocation7 + $0x58] sm:$0xff]
    %v1656 = vld [vmem:[#allocation7 + $0x60] sm:$0xff]
    %v1657 = vld [vmem:[#allocation7 + $0x68] sm:$0xff]
    %v1658 = vld [vmem:[#allocation7 + $0x70] sm:$0xff]
    %v1659 = vld [vmem:[#allocation7 + $0x78] sm:$0xff]
    %1660 = vmatprep.subr.mxu0 0.0
    %1661 = vmatpush1.msra.mxu0 %v1659
    %1662 = vmatprep.subr.mxu0 0.0
    %1663 = vmatpush1.msra.mxu0 %v1658
    %1664 = vmatprep.subr.mxu0 0.0
    %1665 = vmatpush1.msra.mxu0 %v1657
    %1666 = vmatprep.subr.mxu0 0.0
    %1667 = vmatpush1.msra.mxu0 %v1656
    %1668 = vmatprep.subr.mxu0 0.0
    %1669 = vmatpush1.msra.mxu0 %v1655
    %1670 = vmatprep.subr.mxu0 0.0
    %1671 = vmatpush1.msra.mxu0 %v1654
    %1672 = vmatprep.subr.mxu0 0.0
    %1673 = vmatpush1.msra.mxu0 %v1653
    %1674 = vmatprep.subr.mxu0 0.0
    %1675 = vmatpush1.msra.mxu0 %v1652
    %1676 = vmatprep.subr.mxu0 0.0
    %1677 = vmatpush1.msra.mxu0 %v1651
    %1678 = vmatprep.subr.mxu0 0.0
    %1679 = vmatpush1.msra.mxu0 %v1650
    %1680 = vmatprep.subr.mxu0 0.0
    %1681 = vmatpush1.msra.mxu0 %v1649
    %1682 = vmatprep.subr.mxu0 0.0
    %1683 = vmatpush1.msra.mxu0 %v1648
    %1684 = vmatprep.subr.mxu0 0.0
    %1685 = vmatpush1.msra.mxu0 %v1647
    %1686 = vmatprep.subr.mxu0 0.0
    %1687 = vmatpush1.msra.mxu0 %v1646
    %1688 = vmatprep.subr.mxu0 0.0
    %1689 = vmatpush1.msra.mxu0 %v1645
    %1690 = vmatprep.subr.mxu0 0.0
    %1691 = vmatpush1.msra.mxu0 %v1644
    %1692 = vmatprep.subr.mxu0 0.0
    %1693 = vmatpush2.msra.mxu0 0.0
    %1694 = vmatprep.subr.mxu0 0.0
    %1695 = vmatpush2.msra.mxu0 0.0
    %1696 = vmatprep.subr.mxu0 0.0
    %1697 = vmatpush2.msra.mxu0 0.0
    %1698 = vmatprep.subr.mxu0 0.0
    %1699 = vmatpush2.msra.mxu0 0.0
    %1700 = vmatprep.subr.mxu0 0.0
    %1701 = vmatpush2.msra.mxu0 0.0
    %1702 = vmatprep.subr.mxu0 0.0
    %1703 = vmatpush2.msra.mxu0 0.0
    %1704 = vmatprep.subr.mxu0 0.0
    %1705 = vmatpush2.msra.mxu0 0.0
    %1706 = vmatprep.subr.mxu0 0.0
    %1707 = vmatpush2.msra.mxu0 0.0
    %1708 = vmatprep.subr.mxu0 0.0
    %1709 = vmatpush2.msra.mxu0 0.0
    %1710 = vmatprep.subr.mxu0 0.0
    %1711 = vmatpush2.msra.mxu0 0.0
    %1712 = vmatprep.subr.mxu0 0.0
    %1713 = vmatpush2.msra.mxu0 0.0
    %1714 = vmatprep.subr.mxu0 0.0
    %1715 = vmatpush2.msra.mxu0 0.0
    %1716 = vmatprep.subr.mxu0 0.0
    %1717 = vmatpush2.msra.mxu0 0.0
    %1718 = vmatprep.subr.mxu0 0.0
    %1719 = vmatpush2.msra.mxu0 0.0
    %1720 = vmatprep.subr.mxu0 0.0
    %1721 = vmatpush2.msra.mxu0 0.0
    %1722 = vmatprep.subr.mxu0 0.0
    %1723 = vmatpush2.msra.mxu0 0.0
    %1724 = vmatprep.mubr.f32.mxu0 0.0
    %1725 = vmatmul.mubr.f32.gmra.mxu0 %v1642
    %v1726 = vpop.f32.mrf.mxu0
    %v1727 = vadd.f32 0.0, %v1726
    %v1728 = vpop.f32.mrf.mxu0
    %1729 = vmatprep.mubr.f32.mxu0 0.0
    %1730 = vmatmul.mubr.f32.gmra.mxu0 %v1643
    %v1731 = vpop.f32.mrf.mxu0
    %v1732 = vadd.f32 0.0, %v1731
    %v1733 = vpop.f32.mrf.mxu0
    %1734 = vdwg.mxu0
    %v1735 = vmax.f32 %v1727, 0.0
    %v1736 = vmax.f32 %v1732, 0.0
    %v1737 = vld [vmem:[#allocation8] sm:$0xff]
    %v1738 = vld [vmem:[#allocation8 + $0x8] sm:$0xff]
    %v1739 = vld [vmem:[#allocation8 + $0x10] sm:$0xff]
    %v1740 = vld [vmem:[#allocation8 + $0x18] sm:$0xff]
    %v1741 = vld [vmem:[#allocation8 + $0x20] sm:$0xff]
    %v1742 = vld [vmem:[#allocation8 + $0x28] sm:$0xff]
    %v1743 = vld [vmem:[#allocation8 + $0x30] sm:$0xff]
    %v1744 = vld [vmem:[#allocation8 + $0x38] sm:$0xff]
    %v1745 = vld [vmem:[#allocation8 + $0x40] sm:$0xff]
    %v1746 = vld [vmem:[#allocation8 + $0x48] sm:$0xff]
    %v1747 = vld [vmem:[#allocation8 + $0x50] sm:$0xff]
    %v1748 = vld [vmem:[#allocation8 + $0x58] sm:$0xff]
    %v1749 = vld [vmem:[#allocation8 + $0x60] sm:$0xff]
    %v1750 = vld [vmem:[#allocation8 + $0x68] sm:$0xff]
    %v1751 = vld [vmem:[#allocation8 + $0x70] sm:$0xff]
    %v1752 = vld [vmem:[#allocation8 + $0x78] sm:$0xff]
    %1753 = vmatprep.subr.mxu0 0.0
    %1754 = vmatpush1.msra.mxu0 %v1752
    %1755 = vmatprep.subr.mxu0 0.0
    %1756 = vmatpush1.msra.mxu0 %v1751
    %1757 = vmatprep.subr.mxu0 0.0
    %1758 = vmatpush1.msra.mxu0 %v1750
    %1759 = vmatprep.subr.mxu0 0.0
    %1760 = vmatpush1.msra.mxu0 %v1749
    %1761 = vmatprep.subr.mxu0 0.0
    %1762 = vmatpush1.msra.mxu0 %v1748
    %1763 = vmatprep.subr.mxu0 0.0
    %1764 = vmatpush1.msra.mxu0 %v1747
    %1765 = vmatprep.subr.mxu0 0.0
    %1766 = vmatpush1.msra.mxu0 %v1746
    %1767 = vmatprep.subr.mxu0 0.0
    %1768 = vmatpush1.msra.mxu0 %v1745
    %1769 = vmatprep.subr.mxu0 0.0
    %1770 = vmatpush1.msra.mxu0 %v1744
    %1771 = vmatprep.subr.mxu0 0.0
    %1772 = vmatpush1.msra.mxu0 %v1743
    %1773 = vmatprep.subr.mxu0 0.0
    %1774 = vmatpush1.msra.mxu0 %v1742
    %1775 = vmatprep.subr.mxu0 0.0
    %1776 = vmatpush1.msra.mxu0 %v1741
    %1777 = vmatprep.subr.mxu0 0.0
    %1778 = vmatpush1.msra.mxu0 %v1740
    %1779 = vmatprep.subr.mxu0 0.0
    %1780 = vmatpush1.msra.mxu0 %v1739
    %1781 = vmatprep.subr.mxu0 0.0
    %1782 = vmatpush1.msra.mxu0 %v1738
    %1783 = vmatprep.subr.mxu0 0.0
    %1784 = vmatpush1.msra.mxu0 %v1737
    %1785 = vmatprep.subr.mxu0 0.0
    %1786 = vmatpush2.msra.mxu0 0.0
    %1787 = vmatprep.subr.mxu0 0.0
    %1788 = vmatpush2.msra.mxu0 0.0
    %1789 = vmatprep.subr.mxu0 0.0
    %1790 = vmatpush2.msra.mxu0 0.0
    %1791 = vmatprep.subr.mxu0 0.0
    %1792 = vmatpush2.msra.mxu0 0.0
    %1793 = vmatprep.subr.mxu0 0.0
    %1794 = vmatpush2.msra.mxu0 0.0
    %1795 = vmatprep.subr.mxu0 0.0
    %1796 = vmatpush2.msra.mxu0 0.0
    %1797 = vmatprep.subr.mxu0 0.0
    %1798 = vmatpush2.msra.mxu0 0.0
    %1799 = vmatprep.subr.mxu0 0.0
    %1800 = vmatpush2.msra.mxu0 0.0
    %1801 = vmatprep.subr.mxu0 0.0
    %1802 = vmatpush2.msra.mxu0 0.0
    %1803 = vmatprep.subr.mxu0 0.0
    %1804 = vmatpush2.msra.mxu0 0.0
    %1805 = vmatprep.subr.mxu0 0.0
    %1806 = vmatpush2.msra.mxu0 0.0
    %1807 = vmatprep.subr.mxu0 0.0
    %1808 = vmatpush2.msra.mxu0 0.0
    %1809 = vmatprep.subr.mxu0 0.0
    %1810 = vmatpush2.msra.mxu0 0.0
    %1811 = vmatprep.subr.mxu0 0.0
    %1812 = vmatpush2.msra.mxu0 0.0
    %1813 = vmatprep.subr.mxu0 0.0
    %1814 = vmatpush2.msra.mxu0 0.0
    %1815 = vmatprep.subr.mxu0 0.0
    %1816 = vmatpush2.msra.mxu0 0.0
    %1817 = vmatprep.mubr.f32.mxu0 0.0
    %1818 = vmatmul.mubr.f32.gmra.mxu0 %v1735
    %v1819 = vpop.f32.mrf.mxu0
    %v1820 = vadd.f32 0.0, %v1819
    %v1821 = vpop.f32.mrf.mxu0
    %1822 = vmatprep.mubr.f32.mxu0 0.0
    %1823 = vmatmul.mubr.f32.gmra.mxu0 %v1736
    %v1824 = vpop.f32.mrf.mxu0
    %v1825 = vadd.f32 0.0, %v1824
    %v1826 = vpop.f32.mrf.mxu0
    %1827 = vdwg.mxu0
    %v1828 = vadd.f32 %v1642, %v1820
    %v1829 = vadd.f32 %v1643, %v1825
    %v1830 = vmul.f32 %v1828, %v89
    %v1831 = vmul.f32 %v1829, %v89
    %1832 = vadd.xlane.f32.xlu0 %v1830
    %v1833 = vpop.xlane.xlu0 %1832
    %1834 = vadd.xlane.f32.xlu0 %v1831
    %v1835 = vpop.xlane.xlu0 %1834
    %v1836 = vmul.f32 %v1833, 0.03125
    %v1837 = vmul.f32 %v1835, 0.03125
    %v1838 = vsub.f32 %v1828, %v1836
    %v1839 = vsub.f32 %v1829, %v1837
    %v1840 = vmul.f32 %v1838, %v89
    %v1841 = vmul.f32 %v1839, %v89
    %v1842 = vmul.f32 %v1840, %v1840
    %v1843 = vmul.f32 %v1841, %v1841
    %1844 = vadd.xlane.f32.xlu0 %v1842
    %v1845 = vpop.xlane.xlu0 %1844
    %1846 = vadd.xlane.f32.xlu0 %v1843
    %v1847 = vpop.xlane.xlu0 %1846
    %v1848 = vmul.f32 %v1845, 0.03125
    %v1849 = vmul.f32 %v1847, 0.03125
    %v1850 = vadd.f32 %v1848, 1e-05
    %v1851 = vadd.f32 %v1849, 1e-05
    %v1852 = vrsqrt.pop %v1850
    %v1853 = vrsqrt.pop %v1851
    %v1854 = vmul.f32 %v1840, %v1852
    %v1855 = vmul.f32 %v1841, %v1853
    %v1856 = vlaneseq
    %v1857 = vshrl.u32 %v1856, 7
    %v1858 = vsub.s32 3, %v1857
    %v1859 = vrot.slane %v142, %v1858
    %v1860 = vmul.f32 %v1854, %v1859
    %v1861 = vmul.f32 %v1855, %v1859
    %v1862 = vlaneseq
    %v1863 = vshrl.u32 %v1862, 7
    %v1864 = vsub.s32 4, %v1863
    %v1865 = vrot.slane %v142, %v1864
    %v1866 = vadd.f32 %v1860, %v1865
    %v1867 = vadd.f32 %v1861, %v1865
    %s1868 = scalar_lea.vmem %s6, 8
    %v1869 = vld [vmem:[%s1868] sm:$0xff]
    %v1870 = vadd.f32 %v1866, %v140
    %v1871 = vadd.f32 %v1867, %v141
    %s1872 = scalar_lea.vmem [#allocation2], 512
    %v1873 = vld [vmem:[%s1872] sm:$0xff]
    %v1874 = vld [vmem:[%s1872 + $0x8] sm:$0xff]
    %v1875 = vld [vmem:[%s1872 + $0x10] sm:$0xff]
    %v1876 = vld [vmem:[%s1872 + $0x18] sm:$0xff]
    %v1877 = vld [vmem:[%s1872 + $0x20] sm:$0xff]
    %v1878 = vld [vmem:[%s1872 + $0x28] sm:$0xff]
    %v1879 = vld [vmem:[%s1872 + $0x30] sm:$0xff]
    %v1880 = vld [vmem:[%s1872 + $0x38] sm:$0xff]
    %v1881 = vld [vmem:[%s1872 + $0x40] sm:$0xff]
    %v1882 = vld [vmem:[%s1872 + $0x48] sm:$0xff]
    %v1883 = vld [vmem:[%s1872 + $0x50] sm:$0xff]
    %v1884 = vld [vmem:[%s1872 + $0x58] sm:$0xff]
    %v1885 = vld [vmem:[%s1872 + $0x60] sm:$0xff]
    %v1886 = vld [vmem:[%s1872 + $0x68] sm:$0xff]
    %v1887 = vld [vmem:[%s1872 + $0x70] sm:$0xff]
    %v1888 = vld [vmem:[%s1872 + $0x78] sm:$0xff]
    %1889 = vmatprep.subr.mxu0 0.0
    %1890 = vmatpush1.msra.mxu0 %v1888
    %1891 = vmatprep.subr.mxu0 0.0
    %1892 = vmatpush1.msra.mxu0 %v1887
    %1893 = vmatprep.subr.mxu0 0.0
    %1894 = vmatpush1.msra.mxu0 %v1886
    %1895 = vmatprep.subr.mxu0 0.0
    %1896 = vmatpush1.msra.mxu0 %v1885
    %1897 = vmatprep.subr.mxu0 0.0
    %1898 = vmatpush1.msra.mxu0 %v1884
    %1899 = vmatprep.subr.mxu0 0.0
    %1900 = vmatpush1.msra.mxu0 %v1883
    %1901 = vmatprep.subr.mxu0 0.0
    %1902 = vmatpush1.msra.mxu0 %v1882
    %1903 = vmatprep.subr.mxu0 0.0
    %1904 = vmatpush1.msra.mxu0 %v1881
    %1905 = vmatprep.subr.mxu0 0.0
    %1906 = vmatpush1.msra.mxu0 %v1880
    %1907 = vmatprep.subr.mxu0 0.0
    %1908 = vmatpush1.msra.mxu0 %v1879
    %1909 = vmatprep.subr.mxu0 0.0
    %1910 = vmatpush1.msra.mxu0 %v1878
    %1911 = vmatprep.subr.mxu0 0.0
    %1912 = vmatpush1.msra.mxu0 %v1877
    %1913 = vmatprep.subr.mxu0 0.0
    %1914 = vmatpush1.msra.mxu0 %v1876
    %1915 = vmatprep.subr.mxu0 0.0
    %1916 = vmatpush1.msra.mxu0 %v1875
    %1917 = vmatprep.subr.mxu0 0.0
    %1918 = vmatpush1.msra.mxu0 %v1874
    %1919 = vmatprep.subr.mxu0 0.0
    %1920 = vmatpush1.msra.mxu0 %v1873
    %1921 = vmatprep.subr.mxu0 0.0
    %1922 = vmatpush2.msra.mxu0 0.0
    %1923 = vmatprep.subr.mxu0 0.0
    %1924 = vmatpush2.msra.mxu0 0.0
    %1925 = vmatprep.subr.mxu0 0.0
    %1926 = vmatpush2.msra.mxu0 0.0
    %1927 = vmatprep.subr.mxu0 0.0
    %1928 = vmatpush2.msra.mxu0 0.0
    %1929 = vmatprep.subr.mxu0 0.0
    %1930 = vmatpush2.msra.mxu0 0.0
    %1931 = vmatprep.subr.mxu0 0.0
    %1932 = vmatpush2.msra.mxu0 0.0
    %1933 = vmatprep.subr.mxu0 0.0
    %1934 = vmatpush2.msra.mxu0 0.0
    %1935 = vmatprep.subr.mxu0 0.0
    %1936 = vmatpush2.msra.mxu0 0.0
    %1937 = vmatprep.subr.mxu0 0.0
    %1938 = vmatpush2.msra.mxu0 0.0
    %1939 = vmatprep.subr.mxu0 0.0
    %1940 = vmatpush2.msra.mxu0 0.0
    %1941 = vmatprep.subr.mxu0 0.0
    %1942 = vmatpush2.msra.mxu0 0.0
    %1943 = vmatprep.subr.mxu0 0.0
    %1944 = vmatpush2.msra.mxu0 0.0
    %1945 = vmatprep.subr.mxu0 0.0
    %1946 = vmatpush2.msra.mxu0 0.0
    %1947 = vmatprep.subr.mxu0 0.0
    %1948 = vmatpush2.msra.mxu0 0.0
    %1949 = vmatprep.subr.mxu0 0.0
    %1950 = vmatpush2.msra.mxu0 0.0
    %1951 = vmatprep.subr.mxu0 0.0
    %1952 = vmatpush2.msra.mxu0 0.0
    %1953 = vmatprep.mubr.f32.mxu0 0.0
    %1954 = vmatmul.mubr.f32.gmra.mxu0 %v1870
    %v1955 = vpop.f32.mrf.mxu0
    %v1956 = vadd.f32 0.0, %v1955
    %v1957 = vpop.f32.mrf.mxu0
    %1958 = vmatprep.mubr.f32.mxu0 0.0
    %1959 = vmatmul.mubr.f32.gmra.mxu0 %v1871
    %v1960 = vpop.f32.mrf.mxu0
    %v1961 = vadd.f32 0.0, %v1960
    %v1962 = vpop.f32.mrf.mxu0
    %1963 = vdwg.mxu0
    %1964 = vmatprep.subr.mxu0 0.0
    %1965 = vmatpush1.xpose.msra.mxu0 0.0
    %1966 = vmatprep.subr.mxu0 0.0
    %1967 = vmatpush1.xpose.msra.mxu0 0.0
    %1968 = vmatprep.subr.mxu0 0.0
    %1969 = vmatpush1.xpose.msra.mxu0 0.0
    %1970 = vmatprep.subr.mxu0 0.0
    %1971 = vmatpush1.xpose.msra.mxu0 0.0
    %1972 = vmatprep.subr.mxu0 0.0
    %1973 = vmatpush1.xpose.msra.mxu0 0.0
    %1974 = vmatprep.subr.mxu0 0.0
    %1975 = vmatpush1.xpose.msra.mxu0 0.0
    %1976 = vmatprep.subr.mxu0 0.0
    %1977 = vmatpush1.xpose.msra.mxu0 0.0
    %1978 = vmatprep.subr.mxu0 0.0
    %1979 = vmatpush1.xpose.msra.mxu0 0.0
    %1980 = vmatprep.subr.mxu0 0.0
    %1981 = vmatpush1.xpose.msra.mxu0 0.0
    %1982 = vmatprep.subr.mxu0 0.0
    %1983 = vmatpush1.xpose.msra.mxu0 0.0
    %1984 = vmatprep.subr.mxu0 0.0
    %1985 = vmatpush1.xpose.msra.mxu0 0.0
    %1986 = vmatprep.subr.mxu0 0.0
    %1987 = vmatpush1.xpose.msra.mxu0 0.0
    %1988 = vmatprep.subr.mxu0 0.0
    %1989 = vmatpush1.xpose.msra.mxu0 0.0
    %1990 = vmatprep.subr.mxu0 0.0
    %1991 = vmatpush1.xpose.msra.mxu0 0.0
    %1992 = vmatprep.subr.mxu0 0.0
    %1993 = vmatpush1.xpose.msra.mxu0 %v1871
    %1994 = vmatprep.subr.mxu0 0.0
    %1995 = vmatpush1.xpose.msra.mxu0 %v1870
    %1996 = vmatprep.subr.mxu0 0.0
    %1997 = vmatpush2.xpose.msra.mxu0 0.0
    %1998 = vmatprep.subr.mxu0 0.0
    %1999 = vmatpush2.xpose.msra.mxu0 0.0
    %2000 = vmatprep.subr.mxu0 0.0
    %2001 = vmatpush2.xpose.msra.mxu0 0.0
    %2002 = vmatprep.subr.mxu0 0.0
    %2003 = vmatpush2.xpose.msra.mxu0 0.0
    %2004 = vmatprep.subr.mxu0 0.0
    %2005 = vmatpush2.xpose.msra.mxu0 0.0
    %2006 = vmatprep.subr.mxu0 0.0
    %2007 = vmatpush2.xpose.msra.mxu0 0.0
    %2008 = vmatprep.subr.mxu0 0.0
    %2009 = vmatpush2.xpose.msra.mxu0 0.0
    %2010 = vmatprep.subr.mxu0 0.0
    %2011 = vmatpush2.xpose.msra.mxu0 0.0
    %2012 = vmatprep.subr.mxu0 0.0
    %2013 = vmatpush2.xpose.msra.mxu0 0.0
    %2014 = vmatprep.subr.mxu0 0.0
    %2015 = vmatpush2.xpose.msra.mxu0 0.0
    %2016 = vmatprep.subr.mxu0 0.0
    %2017 = vmatpush2.xpose.msra.mxu0 0.0
    %2018 = vmatprep.subr.mxu0 0.0
    %2019 = vmatpush2.xpose.msra.mxu0 0.0
    %2020 = vmatprep.subr.mxu0 0.0
    %2021 = vmatpush2.xpose.msra.mxu0 0.0
    %2022 = vmatprep.subr.mxu0 0.0
    %2023 = vmatpush2.xpose.msra.mxu0 0.0
    %2024 = vmatprep.subr.mxu0 0.0
    %2025 = vmatpush2.xpose.msra.mxu0 0.0
    %2026 = vmatprep.subr.mxu0 0.0
    %2027 = vmatpush2.xpose.msra.mxu0 0.0
    %2028 = vmatprep.mubr.f32.mxu0 0.0
    %2029 = vmatmul.mubr.f32.gmra.mxu0 %v1956
    %v2030 = vpop.f32.mrf.mxu0
    %v2031 = vadd.f32 %v134, %v2030
    %v2032 = vpop.f32.mrf.mxu0
    %2033 = vmatprep.mubr.f32.mxu0 0.0
    %2034 = vmatmul.mubr.f32.gmra.mxu0 %v1961
    %v2035 = vpop.f32.mrf.mxu0
    %v2036 = vadd.f32 %v135, %v2035
    %v2037 = vpop.f32.mrf.mxu0
    %2038 = vdwg.mxu0
    %v2039 = vsel %vm311, %v2031, -inf
    %2040 = vmax.xlane.f32.xlu0 %v2039
    %v2041 = vpop.xlane.xlu0 %2040
    %v2042 = vsel %vm311, %v2036, -inf
    %2043 = vmax.xlane.f32.xlu0 %v2042
    %v2044 = vpop.xlane.xlu0 %2043
    %v2045 = vsub.f32 %v2031, %v2041
    %v2046 = vsub.f32 %v2036, %v2044
    %v2047 = vmul.f32 %v2045, 1.442695
    %v2048 = vpow.pop %v2047
    %v2049 = vmul.f32 %v2046, 1.442695
    %v2050 = vpow.pop %v2049
    %v2051 = vsel %vm311, %v2048, 0.0
    %2052 = vadd.xlane.f32.xlu0 %v2051
    %v2053 = vpop.xlane.xlu0 %2052
    %v2054 = vsel %vm311, %v2050, 0.0
    %2055 = vadd.xlane.f32.xlu0 %v2054
    %v2056 = vpop.xlane.xlu0 %2055
    %v2057 = vrcp.pop %v2053
    %v2058 = vrcp.pop %v2056
    %v2059 = vmul.f32 %v2048, %v2057
    %v2060 = vmul.f32 %v2050, %v2058
    %s2061 = scalar_lea.vmem [#allocation5], 512
    %v2062 = vld [vmem:[%s2061] sm:$0xff]
    %v2063 = vld [vmem:[%s2061 + $0x8] sm:$0xff]
    %v2064 = vld [vmem:[%s2061 + $0x10] sm:$0xff]
    %v2065 = vld [vmem:[%s2061 + $0x18] sm:$0xff]
    %v2066 = vld [vmem:[%s2061 + $0x20] sm:$0xff]
    %v2067 = vld [vmem:[%s2061 + $0x28] sm:$0xff]
    %v2068 = vld [vmem:[%s2061 + $0x30] sm:$0xff]
    %v2069 = vld [vmem:[%s2061 + $0x38] sm:$0xff]
    %v2070 = vld [vmem:[%s2061 + $0x40] sm:$0xff]
    %v2071 = vld [vmem:[%s2061 + $0x48] sm:$0xff]
    %v2072 = vld [vmem:[%s2061 + $0x50] sm:$0xff]
    %v2073 = vld [vmem:[%s2061 + $0x58] sm:$0xff]
    %v2074 = vld [vmem:[%s2061 + $0x60] sm:$0xff]
    %v2075 = vld [vmem:[%s2061 + $0x68] sm:$0xff]
    %v2076 = vld [vmem:[%s2061 + $0x70] sm:$0xff]
    %v2077 = vld [vmem:[%s2061 + $0x78] sm:$0xff]
    %2078 = vmatprep.subr.mxu0 0.0
    %2079 = vmatpush1.msra.mxu0 %v2077
    %2080 = vmatprep.subr.mxu0 0.0
    %2081 = vmatpush1.msra.mxu0 %v2076
    %2082 = vmatprep.subr.mxu0 0.0
    %2083 = vmatpush1.msra.mxu0 %v2075
    %2084 = vmatprep.subr.mxu0 0.0
    %2085 = vmatpush1.msra.mxu0 %v2074
    %2086 = vmatprep.subr.mxu0 0.0
    %2087 = vmatpush1.msra.mxu0 %v2073
    %2088 = vmatprep.subr.mxu0 0.0
    %2089 = vmatpush1.msra.mxu0 %v2072
    %2090 = vmatprep.subr.mxu0 0.0
    %2091 = vmatpush1.msra.mxu0 %v2071
    %2092 = vmatprep.subr.mxu0 0.0
    %2093 = vmatpush1.msra.mxu0 %v2070
    %2094 = vmatprep.subr.mxu0 0.0
    %2095 = vmatpush1.msra.mxu0 %v2069
    %2096 = vmatprep.subr.mxu0 0.0
    %2097 = vmatpush1.msra.mxu0 %v2068
    %2098 = vmatprep.subr.mxu0 0.0
    %2099 = vmatpush1.msra.mxu0 %v2067
    %2100 = vmatprep.subr.mxu0 0.0
    %2101 = vmatpush1.msra.mxu0 %v2066
    %2102 = vmatprep.subr.mxu0 0.0
    %2103 = vmatpush1.msra.mxu0 %v2065
    %2104 = vmatprep.subr.mxu0 0.0
    %2105 = vmatpush1.msra.mxu0 %v2064
    %2106 = vmatprep.subr.mxu0 0.0
    %2107 = vmatpush1.msra.mxu0 %v2063
    %2108 = vmatprep.subr.mxu0 0.0
    %2109 = vmatpush1.msra.mxu0 %v2062
    %2110 = vmatprep.subr.mxu0 0.0
    %2111 = vmatpush2.msra.mxu0 0.0
    %2112 = vmatprep.subr.mxu0 0.0
    %2113 = vmatpush2.msra.mxu0 0.0
    %2114 = vmatprep.subr.mxu0 0.0
    %2115 = vmatpush2.msra.mxu0 0.0
    %2116 = vmatprep.subr.mxu0 0.0
    %2117 = vmatpush2.msra.mxu0 0.0
    %2118 = vmatprep.subr.mxu0 0.0
    %2119 = vmatpush2.msra.mxu0 0.0
    %2120 = vmatprep.subr.mxu0 0.0
    %2121 = vmatpush2.msra.mxu0 0.0
    %2122 = vmatprep.subr.mxu0 0.0
    %2123 = vmatpush2.msra.mxu0 0.0
    %2124 = vmatprep.subr.mxu0 0.0
    %2125 = vmatpush2.msra.mxu0 0.0
    %2126 = vmatprep.subr.mxu0 0.0
    %2127 = vmatpush2.msra.mxu0 0.0
    %2128 = vmatprep.subr.mxu0 0.0
    %2129 = vmatpush2.msra.mxu0 0.0
    %2130 = vmatprep.subr.mxu0 0.0
    %2131 = vmatpush2.msra.mxu0 0.0
    %2132 = vmatprep.subr.mxu0 0.0
    %2133 = vmatpush2.msra.mxu0 0.0
    %2134 = vmatprep.subr.mxu0 0.0
    %2135 = vmatpush2.msra.mxu0 0.0
    %2136 = vmatprep.subr.mxu0 0.0
    %2137 = vmatpush2.msra.mxu0 0.0
    %2138 = vmatprep.subr.mxu0 0.0
    %2139 = vmatpush2.msra.mxu0 0.0
    %2140 = vmatprep.subr.mxu0 0.0
    %2141 = vmatpush2.msra.mxu0 0.0
    %2142 = vmatprep.mubr.f32.mxu0 0.0
    %2143 = vmatmul.mubr.f32.gmra.mxu0 %v1866
    %v2144 = vpop.f32.mrf.mxu0
    %v2145 = vadd.f32 0.0, %v2144
    %v2146 = vpop.f32.mrf.mxu0
    %2147 = vmatprep.mubr.f32.mxu0 0.0
    %2148 = vmatmul.mubr.f32.gmra.mxu0 %v1867
    %v2149 = vpop.f32.mrf.mxu0
    %v2150 = vadd.f32 0.0, %v2149
    %v2151 = vpop.f32.mrf.mxu0
    %2152 = vdwg.mxu0
    %v2154 = vsel %vm311, %v2059, 0
    %v2157 = vsel %vm311, %v2060, 0
    %2159 = vmatprep.subr.mxu0 0.0
    %2160 = vmatpush1.msra.mxu0 0.0
    %2161 = vmatprep.subr.mxu0 0.0
    %2162 = vmatpush1.msra.mxu0 0.0
    %2163 = vmatprep.subr.mxu0 0.0
    %2164 = vmatpush1.msra.mxu0 0.0
    %2165 = vmatprep.subr.mxu0 0.0
    %2166 = vmatpush1.msra.mxu0 0.0
    %2167 = vmatprep.subr.mxu0 0.0
    %2168 = vmatpush1.msra.mxu0 0.0
    %2169 = vmatprep.subr.mxu0 0.0
    %2170 = vmatpush1.msra.mxu0 0.0
    %2171 = vmatprep.subr.mxu0 0.0
    %2172 = vmatpush1.msra.mxu0 0.0
    %2173 = vmatprep.subr.mxu0 0.0
    %2174 = vmatpush1.msra.mxu0 0.0
    %2175 = vmatprep.subr.mxu0 0.0
    %2176 = vmatpush1.msra.mxu0 0.0
    %2177 = vmatprep.subr.mxu0 0.0
    %2178 = vmatpush1.msra.mxu0 0.0
    %2179 = vmatprep.subr.mxu0 0.0
    %2180 = vmatpush1.msra.mxu0 0.0
    %2181 = vmatprep.subr.mxu0 0.0
    %2182 = vmatpush1.msra.mxu0 0.0
    %2183 = vmatprep.subr.mxu0 0.0
    %2184 = vmatpush1.msra.mxu0 0.0
    %2185 = vmatprep.subr.mxu0 0.0
    %2186 = vmatpush1.msra.mxu0 0.0
    %2187 = vmatprep.subr.mxu0 0.0
    %2188 = vmatpush1.msra.mxu0 %v2150
    %2189 = vmatprep.subr.mxu0 0.0
    %2190 = vmatpush1.msra.mxu0 %v2145
    %2191 = vmatprep.subr.mxu0 0.0
    %2192 = vmatpush2.msra.mxu0 0.0
    %2193 = vmatprep.subr.mxu0 0.0
    %2194 = vmatpush2.msra.mxu0 0.0
    %2195 = vmatprep.subr.mxu0 0.0
    %2196 = vmatpush2.msra.mxu0 0.0
    %2197 = vmatprep.subr.mxu0 0.0
    %2198 = vmatpush2.msra.mxu0 0.0
    %2199 = vmatprep.subr.mxu0 0.0
    %2200 = vmatpush2.msra.mxu0 0.0
    %2201 = vmatprep.subr.mxu0 0.0
    %2202 = vmatpush2.msra.mxu0 0.0
    %2203 = vmatprep.subr.mxu0 0.0
    %2204 = vmatpush2.msra.mxu0 0.0
    %2205 = vmatprep.subr.mxu0 0.0
    %2206 = vmatpush2.msra.mxu0 0.0
    %2207 = vmatprep.subr.mxu0 0.0
    %2208 = vmatpush2.msra.mxu0 0.0
    %2209 = vmatprep.subr.mxu0 0.0
    %2210 = vmatpush2.msra.mxu0 0.0
    %2211 = vmatprep.subr.mxu0 0.0
    %2212 = vmatpush2.msra.mxu0 0.0
    %2213 = vmatprep.subr.mxu0 0.0
    %2214 = vmatpush2.msra.mxu0 0.0
    %2215 = vmatprep.subr.mxu0 0.0
    %2216 = vmatpush2.msra.mxu0 0.0
    %2217 = vmatprep.subr.mxu0 0.0
    %2218 = vmatpush2.msra.mxu0 0.0
    %2219 = vmatprep.subr.mxu0 0.0
    %2220 = vmatpush2.msra.mxu0 0.0
    %2221 = vmatprep.subr.mxu0 0.0
    %2222 = vmatpush2.msra.mxu0 0.0
    %2223 = vmatprep.mubr.f32.mxu0 0.0
    %2224 = vmatmul.mubr.f32.gmra.mxu0 %v2154
    %v2225 = vpop.f32.mrf.mxu0
    %v2226 = vadd.f32 0.0, %v2225
    %v2227 = vpop.f32.mrf.mxu0
    %2228 = vmatprep.mubr.f32.mxu0 0.0
    %2229 = vmatmul.mubr.f32.gmra.mxu0 %v2157
    %v2230 = vpop.f32.mrf.mxu0
    %v2231 = vadd.f32 0.0, %v2230
    %v2232 = vpop.f32.mrf.mxu0
    %2233 = vdwg.mxu0
    %v2234 = vlaneseq
    %v2235 = vshrl.u32 %v2234, 7
    %v2236 = vsub.s32 0, %v2235
    %v2237 = vrot.slane %v1869, %v2236
    %v2238 = vadd.f32 %v2237, %v2226
    %v2239 = vadd.f32 %v2237, %v2231
    %s2240 = scalar_lea.vmem [#allocation2], 640
    %v2241 = vld [vmem:[%s2240] sm:$0xff]
    %v2242 = vld [vmem:[%s2240 + $0x8] sm:$0xff]
    %v2243 = vld [vmem:[%s2240 + $0x10] sm:$0xff]
    %v2244 = vld [vmem:[%s2240 + $0x18] sm:$0xff]
    %v2245 = vld [vmem:[%s2240 + $0x20] sm:$0xff]
    %v2246 = vld [vmem:[%s2240 + $0x28] sm:$0xff]
    %v2247 = vld [vmem:[%s2240 + $0x30] sm:$0xff]
    %v2248 = vld [vmem:[%s2240 + $0x38] sm:$0xff]
    %v2249 = vld [vmem:[%s2240 + $0x40] sm:$0xff]
    %v2250 = vld [vmem:[%s2240 + $0x48] sm:$0xff]
    %v2251 = vld [vmem:[%s2240 + $0x50] sm:$0xff]
    %v2252 = vld [vmem:[%s2240 + $0x58] sm:$0xff]
    %v2253 = vld [vmem:[%s2240 + $0x60] sm:$0xff]
    %v2254 = vld [vmem:[%s2240 + $0x68] sm:$0xff]
    %v2255 = vld [vmem:[%s2240 + $0x70] sm:$0xff]
    %v2256 = vld [vmem:[%s2240 + $0x78] sm:$0xff]
    %2257 = vmatprep.subr.mxu0 0.0
    %2258 = vmatpush1.msra.mxu0 %v2256
    %2259 = vmatprep.subr.mxu0 0.0
    %2260 = vmatpush1.msra.mxu0 %v2255
    %2261 = vmatprep.subr.mxu0 0.0
    %2262 = vmatpush1.msra.mxu0 %v2254
    %2263 = vmatprep.subr.mxu0 0.0
    %2264 = vmatpush1.msra.mxu0 %v2253
    %2265 = vmatprep.subr.mxu0 0.0
    %2266 = vmatpush1.msra.mxu0 %v2252
    %2267 = vmatprep.subr.mxu0 0.0
    %2268 = vmatpush1.msra.mxu0 %v2251
    %2269 = vmatprep.subr.mxu0 0.0
    %2270 = vmatpush1.msra.mxu0 %v2250
    %2271 = vmatprep.subr.mxu0 0.0
    %2272 = vmatpush1.msra.mxu0 %v2249
    %2273 = vmatprep.subr.mxu0 0.0
    %2274 = vmatpush1.msra.mxu0 %v2248
    %2275 = vmatprep.subr.mxu0 0.0
    %2276 = vmatpush1.msra.mxu0 %v2247
    %2277 = vmatprep.subr.mxu0 0.0
    %2278 = vmatpush1.msra.mxu0 %v2246
    %2279 = vmatprep.subr.mxu0 0.0
    %2280 = vmatpush1.msra.mxu0 %v2245
    %2281 = vmatprep.subr.mxu0 0.0
    %2282 = vmatpush1.msra.mxu0 %v2244
    %2283 = vmatprep.subr.mxu0 0.0
    %2284 = vmatpush1.msra.mxu0 %v2243
    %2285 = vmatprep.subr.mxu0 0.0
    %2286 = vmatpush1.msra.mxu0 %v2242
    %2287 = vmatprep.subr.mxu0 0.0
    %2288 = vmatpush1.msra.mxu0 %v2241
    %2289 = vmatprep.subr.mxu0 0.0
    %2290 = vmatpush2.msra.mxu0 0.0
    %2291 = vmatprep.subr.mxu0 0.0
    %2292 = vmatpush2.msra.mxu0 0.0
    %2293 = vmatprep.subr.mxu0 0.0
    %2294 = vmatpush2.msra.mxu0 0.0
    %2295 = vmatprep.subr.mxu0 0.0
    %2296 = vmatpush2.msra.mxu0 0.0
    %2297 = vmatprep.subr.mxu0 0.0
    %2298 = vmatpush2.msra.mxu0 0.0
    %2299 = vmatprep.subr.mxu0 0.0
    %2300 = vmatpush2.msra.mxu0 0.0
    %2301 = vmatprep.subr.mxu0 0.0
    %2302 = vmatpush2.msra.mxu0 0.0
    %2303 = vmatprep.subr.mxu0 0.0
    %2304 = vmatpush2.msra.mxu0 0.0
    %2305 = vmatprep.subr.mxu0 0.0
    %2306 = vmatpush2.msra.mxu0 0.0
    %2307 = vmatprep.subr.mxu0 0.0
    %2308 = vmatpush2.msra.mxu0 0.0
    %2309 = vmatprep.subr.mxu0 0.0
    %2310 = vmatpush2.msra.mxu0 0.0
    %2311 = vmatprep.subr.mxu0 0.0
    %2312 = vmatpush2.msra.mxu0 0.0
    %2313 = vmatprep.subr.mxu0 0.0
    %2314 = vmatpush2.msra.mxu0 0.0
    %2315 = vmatprep.subr.mxu0 0.0
    %2316 = vmatpush2.msra.mxu0 0.0
    %2317 = vmatprep.subr.mxu0 0.0
    %2318 = vmatpush2.msra.mxu0 0.0
    %2319 = vmatprep.subr.mxu0 0.0
    %2320 = vmatpush2.msra.mxu0 0.0
    %2321 = vmatprep.mubr.f32.mxu0 0.0
    %2322 = vmatmul.mubr.f32.gmra.mxu0 %v1870
    %v2323 = vpop.f32.mrf.mxu0
    %v2324 = vadd.f32 0.0, %v2323
    %v2325 = vpop.f32.mrf.mxu0
    %2326 = vmatprep.mubr.f32.mxu0 0.0
    %2327 = vmatmul.mubr.f32.gmra.mxu0 %v1871
    %v2328 = vpop.f32.mrf.mxu0
    %v2329 = vadd.f32 0.0, %v2328
    %v2330 = vpop.f32.mrf.mxu0
    %2331 = vdwg.mxu0
    %2332 = vmatprep.subr.mxu0 0.0
    %2333 = vmatpush1.xpose.msra.mxu0 0.0
    %2334 = vmatprep.subr.mxu0 0.0
    %2335 = vmatpush1.xpose.msra.mxu0 0.0
    %2336 = vmatprep.subr.mxu0 0.0
    %2337 = vmatpush1.xpose.msra.mxu0 0.0
    %2338 = vmatprep.subr.mxu0 0.0
    %2339 = vmatpush1.xpose.msra.mxu0 0.0
    %2340 = vmatprep.subr.mxu0 0.0
    %2341 = vmatpush1.xpose.msra.mxu0 0.0
    %2342 = vmatprep.subr.mxu0 0.0
    %2343 = vmatpush1.xpose.msra.mxu0 0.0
    %2344 = vmatprep.subr.mxu0 0.0
    %2345 = vmatpush1.xpose.msra.mxu0 0.0
    %2346 = vmatprep.subr.mxu0 0.0
    %2347 = vmatpush1.xpose.msra.mxu0 0.0
    %2348 = vmatprep.subr.mxu0 0.0
    %2349 = vmatpush1.xpose.msra.mxu0 0.0
    %2350 = vmatprep.subr.mxu0 0.0
    %2351 = vmatpush1.xpose.msra.mxu0 0.0
    %2352 = vmatprep.subr.mxu0 0.0
    %2353 = vmatpush1.xpose.msra.mxu0 0.0
    %2354 = vmatprep.subr.mxu0 0.0
    %2355 = vmatpush1.xpose.msra.mxu0 0.0
    %2356 = vmatprep.subr.mxu0 0.0
    %2357 = vmatpush1.xpose.msra.mxu0 0.0
    %2358 = vmatprep.subr.mxu0 0.0
    %2359 = vmatpush1.xpose.msra.mxu0 0.0
    %2360 = vmatprep.subr.mxu0 0.0
    %2361 = vmatpush1.xpose.msra.mxu0 %v1871
    %2362 = vmatprep.subr.mxu0 0.0
    %2363 = vmatpush1.xpose.msra.mxu0 %v1870
    %2364 = vmatprep.subr.mxu0 0.0
    %2365 = vmatpush2.xpose.msra.mxu0 0.0
    %2366 = vmatprep.subr.mxu0 0.0
    %2367 = vmatpush2.xpose.msra.mxu0 0.0
    %2368 = vmatprep.subr.mxu0 0.0
    %2369 = vmatpush2.xpose.msra.mxu0 0.0
    %2370 = vmatprep.subr.mxu0 0.0
    %2371 = vmatpush2.xpose.msra.mxu0 0.0
    %2372 = vmatprep.subr.mxu0 0.0
    %2373 = vmatpush2.xpose.msra.mxu0 0.0
    %2374 = vmatprep.subr.mxu0 0.0
    %2375 = vmatpush2.xpose.msra.mxu0 0.0
    %2376 = vmatprep.subr.mxu0 0.0
    %2377 = vmatpush2.xpose.msra.mxu0 0.0
    %2378 = vmatprep.subr.mxu0 0.0
    %2379 = vmatpush2.xpose.msra.mxu0 0.0
    %2380 = vmatprep.subr.mxu0 0.0
    %2381 = vmatpush2.xpose.msra.mxu0 0.0
    %2382 = vmatprep.subr.mxu0 0.0
    %2383 = vmatpush2.xpose.msra.mxu0 0.0
    %2384 = vmatprep.subr.mxu0 0.0
    %2385 = vmatpush2.xpose.msra.mxu0 0.0
    %2386 = vmatprep.subr.mxu0 0.0
    %2387 = vmatpush2.xpose.msra.mxu0 0.0
    %2388 = vmatprep.subr.mxu0 0.0
    %2389 = vmatpush2.xpose.msra.mxu0 0.0
    %2390 = vmatprep.subr.mxu0 0.0
    %2391 = vmatpush2.xpose.msra.mxu0 0.0
    %2392 = vmatprep.subr.mxu0 0.0
    %2393 = vmatpush2.xpose.msra.mxu0 0.0
    %2394 = vmatprep.subr.mxu0 0.0
    %2395 = vmatpush2.xpose.msra.mxu0 0.0
    %2396 = vmatprep.mubr.f32.mxu0 0.0
    %2397 = vmatmul.mubr.f32.gmra.mxu0 %v2324
    %v2398 = vpop.f32.mrf.mxu0
    %v2399 = vadd.f32 %v134, %v2398
    %v2400 = vpop.f32.mrf.mxu0
    %2401 = vmatprep.mubr.f32.mxu0 0.0
    %2402 = vmatmul.mubr.f32.gmra.mxu0 %v2329
    %v2403 = vpop.f32.mrf.mxu0
    %v2404 = vadd.f32 %v135, %v2403
    %v2405 = vpop.f32.mrf.mxu0
    %2406 = vdwg.mxu0
    %v2407 = vsel %vm311, %v2399, -inf
    %2408 = vmax.xlane.f32.xlu0 %v2407
    %v2409 = vpop.xlane.xlu0 %2408
    %v2410 = vsel %vm311, %v2404, -inf
    %2411 = vmax.xlane.f32.xlu0 %v2410
    %v2412 = vpop.xlane.xlu0 %2411
    %v2413 = vsub.f32 %v2399, %v2409
    %v2414 = vsub.f32 %v2404, %v2412
    %v2415 = vmul.f32 %v2413, 1.442695
    %v2416 = vpow.pop %v2415
    %v2417 = vmul.f32 %v2414, 1.442695
    %v2418 = vpow.pop %v2417
    %v2419 = vsel %vm311, %v2416, 0.0
    %2420 = vadd.xlane.f32.xlu0 %v2419
    %v2421 = vpop.xlane.xlu0 %2420
    %v2422 = vsel %vm311, %v2418, 0.0
    %2423 = vadd.xlane.f32.xlu0 %v2422
    %v2424 = vpop.xlane.xlu0 %2423
    %v2425 = vrcp.pop %v2421
    %v2426 = vrcp.pop %v2424
    %v2427 = vmul.f32 %v2416, %v2425
    %v2428 = vmul.f32 %v2418, %v2426
    %s2429 = scalar_lea.vmem [#allocation5], 640
    %v2430 = vld [vmem:[%s2429] sm:$0xff]
    %v2431 = vld [vmem:[%s2429 + $0x8] sm:$0xff]
    %v2432 = vld [vmem:[%s2429 + $0x10] sm:$0xff]
    %v2433 = vld [vmem:[%s2429 + $0x18] sm:$0xff]
    %v2434 = vld [vmem:[%s2429 + $0x20] sm:$0xff]
    %v2435 = vld [vmem:[%s2429 + $0x28] sm:$0xff]
    %v2436 = vld [vmem:[%s2429 + $0x30] sm:$0xff]
    %v2437 = vld [vmem:[%s2429 + $0x38] sm:$0xff]
    %v2438 = vld [vmem:[%s2429 + $0x40] sm:$0xff]
    %v2439 = vld [vmem:[%s2429 + $0x48] sm:$0xff]
    %v2440 = vld [vmem:[%s2429 + $0x50] sm:$0xff]
    %v2441 = vld [vmem:[%s2429 + $0x58] sm:$0xff]
    %v2442 = vld [vmem:[%s2429 + $0x60] sm:$0xff]
    %v2443 = vld [vmem:[%s2429 + $0x68] sm:$0xff]
    %v2444 = vld [vmem:[%s2429 + $0x70] sm:$0xff]
    %v2445 = vld [vmem:[%s2429 + $0x78] sm:$0xff]
    %2446 = vmatprep.subr.mxu0 0.0
    %2447 = vmatpush1.msra.mxu0 %v2445
    %2448 = vmatprep.subr.mxu0 0.0
    %2449 = vmatpush1.msra.mxu0 %v2444
    %2450 = vmatprep.subr.mxu0 0.0
    %2451 = vmatpush1.msra.mxu0 %v2443
    %2452 = vmatprep.subr.mxu0 0.0
    %2453 = vmatpush1.msra.mxu0 %v2442
    %2454 = vmatprep.subr.mxu0 0.0
    %2455 = vmatpush1.msra.mxu0 %v2441
    %2456 = vmatprep.subr.mxu0 0.0
    %2457 = vmatpush1.msra.mxu0 %v2440
    %2458 = vmatprep.subr.mxu0 0.0
    %2459 = vmatpush1.msra.mxu0 %v2439
    %2460 = vmatprep.subr.mxu0 0.0
    %2461 = vmatpush1.msra.mxu0 %v2438
    %2462 = vmatprep.subr.mxu0 0.0
    %2463 = vmatpush1.msra.mxu0 %v2437
    %2464 = vmatprep.subr.mxu0 0.0
    %2465 = vmatpush1.msra.mxu0 %v2436
    %2466 = vmatprep.subr.mxu0 0.0
    %2467 = vmatpush1.msra.mxu0 %v2435
    %2468 = vmatprep.subr.mxu0 0.0
    %2469 = vmatpush1.msra.mxu0 %v2434
    %2470 = vmatprep.subr.mxu0 0.0
    %2471 = vmatpush1.msra.mxu0 %v2433
    %2472 = vmatprep.subr.mxu0 0.0
    %2473 = vmatpush1.msra.mxu0 %v2432
    %2474 = vmatprep.subr.mxu0 0.0
    %2475 = vmatpush1.msra.mxu0 %v2431
    %2476 = vmatprep.subr.mxu0 0.0
    %2477 = vmatpush1.msra.mxu0 %v2430
    %2478 = vmatprep.subr.mxu0 0.0
    %2479 = vmatpush2.msra.mxu0 0.0
    %2480 = vmatprep.subr.mxu0 0.0
    %2481 = vmatpush2.msra.mxu0 0.0
    %2482 = vmatprep.subr.mxu0 0.0
    %2483 = vmatpush2.msra.mxu0 0.0
    %2484 = vmatprep.subr.mxu0 0.0
    %2485 = vmatpush2.msra.mxu0 0.0
    %2486 = vmatprep.subr.mxu0 0.0
    %2487 = vmatpush2.msra.mxu0 0.0
    %2488 = vmatprep.subr.mxu0 0.0
    %2489 = vmatpush2.msra.mxu0 0.0
    %2490 = vmatprep.subr.mxu0 0.0
    %2491 = vmatpush2.msra.mxu0 0.0
    %2492 = vmatprep.subr.mxu0 0.0
    %2493 = vmatpush2.msra.mxu0 0.0
    %2494 = vmatprep.subr.mxu0 0.0
    %2495 = vmatpush2.msra.mxu0 0.0
    %2496 = vmatprep.subr.mxu0 0.0
    %2497 = vmatpush2.msra.mxu0 0.0
    %2498 = vmatprep.subr.mxu0 0.0
    %2499 = vmatpush2.msra.mxu0 0.0
    %2500 = vmatprep.subr.mxu0 0.0
    %2501 = vmatpush2.msra.mxu0 0.0
    %2502 = vmatprep.subr.mxu0 0.0
    %2503 = vmatpush2.msra.mxu0 0.0
    %2504 = vmatprep.subr.mxu0 0.0
    %2505 = vmatpush2.msra.mxu0 0.0
    %2506 = vmatprep.subr.mxu0 0.0
    %2507 = vmatpush2.msra.mxu0 0.0
    %2508 = vmatprep.subr.mxu0 0.0
    %2509 = vmatpush2.msra.mxu0 0.0
    %2510 = vmatprep.mubr.f32.mxu0 0.0
    %2511 = vmatmul.mubr.f32.gmra.mxu0 %v1866
    %v2512 = vpop.f32.mrf.mxu0
    %v2513 = vadd.f32 0.0, %v2512
    %v2514 = vpop.f32.mrf.mxu0
    %2515 = vmatprep.mubr.f32.mxu0 0.0
    %2516 = vmatmul.mubr.f32.gmra.mxu0 %v1867
    %v2517 = vpop.f32.mrf.mxu0
    %v2518 = vadd.f32 0.0, %v2517
    %v2519 = vpop.f32.mrf.mxu0
    %2520 = vdwg.mxu0
    %v2522 = vsel %vm311, %v2427, 0
    %v2525 = vsel %vm311, %v2428, 0
    %2527 = vmatprep.subr.mxu0 0.0
    %2528 = vmatpush1.msra.mxu0 0.0
    %2529 = vmatprep.subr.mxu0 0.0
    %2530 = vmatpush1.msra.mxu0 0.0
    %2531 = vmatprep.subr.mxu0 0.0
    %2532 = vmatpush1.msra.mxu0 0.0
    %2533 = vmatprep.subr.mxu0 0.0
    %2534 = vmatpush1.msra.mxu0 0.0
    %2535 = vmatprep.subr.mxu0 0.0
    %2536 = vmatpush1.msra.mxu0 0.0
    %2537 = vmatprep.subr.mxu0 0.0
    %2538 = vmatpush1.msra.mxu0 0.0
    %2539 = vmatprep.subr.mxu0 0.0
    %2540 = vmatpush1.msra.mxu0 0.0
    %2541 = vmatprep.subr.mxu0 0.0
    %2542 = vmatpush1.msra.mxu0 0.0
    %2543 = vmatprep.subr.mxu0 0.0
    %2544 = vmatpush1.msra.mxu0 0.0
    %2545 = vmatprep.subr.mxu0 0.0
    %2546 = vmatpush1.msra.mxu0 0.0
    %2547 = vmatprep.subr.mxu0 0.0
    %2548 = vmatpush1.msra.mxu0 0.0
    %2549 = vmatprep.subr.mxu0 0.0
    %2550 = vmatpush1.msra.mxu0 0.0
    %2551 = vmatprep.subr.mxu0 0.0
    %2552 = vmatpush1.msra.mxu0 0.0
    %2553 = vmatprep.subr.mxu0 0.0
    %2554 = vmatpush1.msra.mxu0 0.0
    %2555 = vmatprep.subr.mxu0 0.0
    %2556 = vmatpush1.msra.mxu0 %v2518
    %2557 = vmatprep.subr.mxu0 0.0
    %2558 = vmatpush1.msra.mxu0 %v2513
    %2559 = vmatprep.subr.mxu0 0.0
    %2560 = vmatpush2.msra.mxu0 0.0
    %2561 = vmatprep.subr.mxu0 0.0
    %2562 = vmatpush2.msra.mxu0 0.0
    %2563 = vmatprep.subr.mxu0 0.0
    %2564 = vmatpush2.msra.mxu0 0.0
    %2565 = vmatprep.subr.mxu0 0.0
    %2566 = vmatpush2.msra.mxu0 0.0
    %2567 = vmatprep.subr.mxu0 0.0
    %2568 = vmatpush2.msra.mxu0 0.0
    %2569 = vmatprep.subr.mxu0 0.0
    %2570 = vmatpush2.msra.mxu0 0.0
    %2571 = vmatprep.subr.mxu0 0.0
    %2572 = vmatpush2.msra.mxu0 0.0
    %2573 = vmatprep.subr.mxu0 0.0
    %2574 = vmatpush2.msra.mxu0 0.0
    %2575 = vmatprep.subr.mxu0 0.0
    %2576 = vmatpush2.msra.mxu0 0.0
    %2577 = vmatprep.subr.mxu0 0.0
    %2578 = vmatpush2.msra.mxu0 0.0
    %2579 = vmatprep.subr.mxu0 0.0
    %2580 = vmatpush2.msra.mxu0 0.0
    %2581 = vmatprep.subr.mxu0 0.0
    %2582 = vmatpush2.msra.mxu0 0.0
    %2583 = vmatprep.subr.mxu0 0.0
    %2584 = vmatpush2.msra.mxu0 0.0
    %2585 = vmatprep.subr.mxu0 0.0
    %2586 = vmatpush2.msra.mxu0 0.0
    %2587 = vmatprep.subr.mxu0 0.0
    %2588 = vmatpush2.msra.mxu0 0.0
    %2589 = vmatprep.subr.mxu0 0.0
    %2590 = vmatpush2.msra.mxu0 0.0
    %2591 = vmatprep.mubr.f32.mxu0 0.0
    %2592 = vmatmul.mubr.f32.gmra.mxu0 %v2522
    %v2593 = vpop.f32.mrf.mxu0
    %v2594 = vadd.f32 0.0, %v2593
    %v2595 = vpop.f32.mrf.mxu0
    %2596 = vmatprep.mubr.f32.mxu0 0.0
    %2597 = vmatmul.mubr.f32.gmra.mxu0 %v2525
    %v2598 = vpop.f32.mrf.mxu0
    %v2599 = vadd.f32 0.0, %v2598
    %v2600 = vpop.f32.mrf.mxu0
    %2601 = vdwg.mxu0
    %v2602 = vadd.f32 %v2238, %v2594
    %v2603 = vadd.f32 %v2239, %v2599
    %s2604 = scalar_lea.vmem [#allocation2], 768
    %v2605 = vld [vmem:[%s2604] sm:$0xff]
    %v2606 = vld [vmem:[%s2604 + $0x8] sm:$0xff]
    %v2607 = vld [vmem:[%s2604 + $0x10] sm:$0xff]
    %v2608 = vld [vmem:[%s2604 + $0x18] sm:$0xff]
    %v2609 = vld [vmem:[%s2604 + $0x20] sm:$0xff]
    %v2610 = vld [vmem:[%s2604 + $0x28] sm:$0xff]
    %v2611 = vld [vmem:[%s2604 + $0x30] sm:$0xff]
    %v2612 = vld [vmem:[%s2604 + $0x38] sm:$0xff]
    %v2613 = vld [vmem:[%s2604 + $0x40] sm:$0xff]
    %v2614 = vld [vmem:[%s2604 + $0x48] sm:$0xff]
    %v2615 = vld [vmem:[%s2604 + $0x50] sm:$0xff]
    %v2616 = vld [vmem:[%s2604 + $0x58] sm:$0xff]
    %v2617 = vld [vmem:[%s2604 + $0x60] sm:$0xff]
    %v2618 = vld [vmem:[%s2604 + $0x68] sm:$0xff]
    %v2619 = vld [vmem:[%s2604 + $0x70] sm:$0xff]
    %v2620 = vld [vmem:[%s2604 + $0x78] sm:$0xff]
    %2621 = vmatprep.subr.mxu0 0.0
    %2622 = vmatpush1.msra.mxu0 %v2620
    %2623 = vmatprep.subr.mxu0 0.0
    %2624 = vmatpush1.msra.mxu0 %v2619
    %2625 = vmatprep.subr.mxu0 0.0
    %2626 = vmatpush1.msra.mxu0 %v2618
    %2627 = vmatprep.subr.mxu0 0.0
    %2628 = vmatpush1.msra.mxu0 %v2617
    %2629 = vmatprep.subr.mxu0 0.0
    %2630 = vmatpush1.msra.mxu0 %v2616
    %2631 = vmatprep.subr.mxu0 0.0
    %2632 = vmatpush1.msra.mxu0 %v2615
    %2633 = vmatprep.subr.mxu0 0.0
    %2634 = vmatpush1.msra.mxu0 %v2614
    %2635 = vmatprep.subr.mxu0 0.0
    %2636 = vmatpush1.msra.mxu0 %v2613
    %2637 = vmatprep.subr.mxu0 0.0
    %2638 = vmatpush1.msra.mxu0 %v2612
    %2639 = vmatprep.subr.mxu0 0.0
    %2640 = vmatpush1.msra.mxu0 %v2611
    %2641 = vmatprep.subr.mxu0 0.0
    %2642 = vmatpush1.msra.mxu0 %v2610
    %2643 = vmatprep.subr.mxu0 0.0
    %2644 = vmatpush1.msra.mxu0 %v2609
    %2645 = vmatprep.subr.mxu0 0.0
    %2646 = vmatpush1.msra.mxu0 %v2608
    %2647 = vmatprep.subr.mxu0 0.0
    %2648 = vmatpush1.msra.mxu0 %v2607
    %2649 = vmatprep.subr.mxu0 0.0
    %2650 = vmatpush1.msra.mxu0 %v2606
    %2651 = vmatprep.subr.mxu0 0.0
    %2652 = vmatpush1.msra.mxu0 %v2605
    %2653 = vmatprep.subr.mxu0 0.0
    %2654 = vmatpush2.msra.mxu0 0.0
    %2655 = vmatprep.subr.mxu0 0.0
    %2656 = vmatpush2.msra.mxu0 0.0
    %2657 = vmatprep.subr.mxu0 0.0
    %2658 = vmatpush2.msra.mxu0 0.0
    %2659 = vmatprep.subr.mxu0 0.0
    %2660 = vmatpush2.msra.mxu0 0.0
    %2661 = vmatprep.subr.mxu0 0.0
    %2662 = vmatpush2.msra.mxu0 0.0
    %2663 = vmatprep.subr.mxu0 0.0
    %2664 = vmatpush2.msra.mxu0 0.0
    %2665 = vmatprep.subr.mxu0 0.0
    %2666 = vmatpush2.msra.mxu0 0.0
    %2667 = vmatprep.subr.mxu0 0.0
    %2668 = vmatpush2.msra.mxu0 0.0
    %2669 = vmatprep.subr.mxu0 0.0
    %2670 = vmatpush2.msra.mxu0 0.0
    %2671 = vmatprep.subr.mxu0 0.0
    %2672 = vmatpush2.msra.mxu0 0.0
    %2673 = vmatprep.subr.mxu0 0.0
    %2674 = vmatpush2.msra.mxu0 0.0
    %2675 = vmatprep.subr.mxu0 0.0
    %2676 = vmatpush2.msra.mxu0 0.0
    %2677 = vmatprep.subr.mxu0 0.0
    %2678 = vmatpush2.msra.mxu0 0.0
    %2679 = vmatprep.subr.mxu0 0.0
    %2680 = vmatpush2.msra.mxu0 0.0
    %2681 = vmatprep.subr.mxu0 0.0
    %2682 = vmatpush2.msra.mxu0 0.0
    %2683 = vmatprep.subr.mxu0 0.0
    %2684 = vmatpush2.msra.mxu0 0.0
    %2685 = vmatprep.mubr.f32.mxu0 0.0
    %2686 = vmatmul.mubr.f32.gmra.mxu0 %v1870
    %v2687 = vpop.f32.mrf.mxu0
    %v2688 = vadd.f32 0.0, %v2687
    %v2689 = vpop.f32.mrf.mxu0
    %2690 = vmatprep.mubr.f32.mxu0 0.0
    %2691 = vmatmul.mubr.f32.gmra.mxu0 %v1871
    %v2692 = vpop.f32.mrf.mxu0
    %v2693 = vadd.f32 0.0, %v2692
    %v2694 = vpop.f32.mrf.mxu0
    %2695 = vdwg.mxu0
    %2696 = vmatprep.subr.mxu0 0.0
    %2697 = vmatpush1.xpose.msra.mxu0 0.0
    %2698 = vmatprep.subr.mxu0 0.0
    %2699 = vmatpush1.xpose.msra.mxu0 0.0
    %2700 = vmatprep.subr.mxu0 0.0
    %2701 = vmatpush1.xpose.msra.mxu0 0.0
    %2702 = vmatprep.subr.mxu0 0.0
    %2703 = vmatpush1.xpose.msra.mxu0 0.0
    %2704 = vmatprep.subr.mxu0 0.0
    %2705 = vmatpush1.xpose.msra.mxu0 0.0
    %2706 = vmatprep.subr.mxu0 0.0
    %2707 = vmatpush1.xpose.msra.mxu0 0.0
    %2708 = vmatprep.subr.mxu0 0.0
    %2709 = vmatpush1.xpose.msra.mxu0 0.0
    %2710 = vmatprep.subr.mxu0 0.0
    %2711 = vmatpush1.xpose.msra.mxu0 0.0
    %2712 = vmatprep.subr.mxu0 0.0
    %2713 = vmatpush1.xpose.msra.mxu0 0.0
    %2714 = vmatprep.subr.mxu0 0.0
    %2715 = vmatpush1.xpose.msra.mxu0 0.0
    %2716 = vmatprep.subr.mxu0 0.0
    %2717 = vmatpush1.xpose.msra.mxu0 0.0
    %2718 = vmatprep.subr.mxu0 0.0
    %2719 = vmatpush1.xpose.msra.mxu0 0.0
    %2720 = vmatprep.subr.mxu0 0.0
    %2721 = vmatpush1.xpose.msra.mxu0 0.0
    %2722 = vmatprep.subr.mxu0 0.0
    %2723 = vmatpush1.xpose.msra.mxu0 0.0
    %2724 = vmatprep.subr.mxu0 0.0
    %2725 = vmatpush1.xpose.msra.mxu0 %v1871
    %2726 = vmatprep.subr.mxu0 0.0
    %2727 = vmatpush1.xpose.msra.mxu0 %v1870
    %2728 = vmatprep.subr.mxu0 0.0
    %2729 = vmatpush2.xpose.msra.mxu0 0.0
    %2730 = vmatprep.subr.mxu0 0.0
    %2731 = vmatpush2.xpose.msra.mxu0 0.0
    %2732 = vmatprep.subr.mxu0 0.0
    %2733 = vmatpush2.xpose.msra.mxu0 0.0
    %2734 = vmatprep.subr.mxu0 0.0
    %2735 = vmatpush2.xpose.msra.mxu0 0.0
    %2736 = vmatprep.subr.mxu0 0.0
    %2737 = vmatpush2.xpose.msra.mxu0 0.0
    %2738 = vmatprep.subr.mxu0 0.0
    %2739 = vmatpush2.xpose.msra.mxu0 0.0
    %2740 = vmatprep.subr.mxu0 0.0
    %2741 = vmatpush2.xpose.msra.mxu0 0.0
    %2742 = vmatprep.subr.mxu0 0.0
    %2743 = vmatpush2.xpose.msra.mxu0 0.0
    %2744 = vmatprep.subr.mxu0 0.0
    %2745 = vmatpush2.xpose.msra.mxu0 0.0
    %2746 = vmatprep.subr.mxu0 0.0
    %2747 = vmatpush2.xpose.msra.mxu0 0.0
    %2748 = vmatprep.subr.mxu0 0.0
    %2749 = vmatpush2.xpose.msra.mxu0 0.0
    %2750 = vmatprep.subr.mxu0 0.0
    %2751 = vmatpush2.xpose.msra.mxu0 0.0
    %2752 = vmatprep.subr.mxu0 0.0
    %2753 = vmatpush2.xpose.msra.mxu0 0.0
    %2754 = vmatprep.subr.mxu0 0.0
    %2755 = vmatpush2.xpose.msra.mxu0 0.0
    %2756 = vmatprep.subr.mxu0 0.0
    %2757 = vmatpush2.xpose.msra.mxu0 0.0
    %2758 = vmatprep.subr.mxu0 0.0
    %2759 = vmatpush2.xpose.msra.mxu0 0.0
    %2760 = vmatprep.mubr.f32.mxu0 0.0
    %2761 = vmatmul.mubr.f32.gmra.mxu0 %v2688
    %v2762 = vpop.f32.mrf.mxu0
    %v2763 = vadd.f32 %v134, %v2762
    %v2764 = vpop.f32.mrf.mxu0
    %2765 = vmatprep.mubr.f32.mxu0 0.0
    %2766 = vmatmul.mubr.f32.gmra.mxu0 %v2693
    %v2767 = vpop.f32.mrf.mxu0
    %v2768 = vadd.f32 %v135, %v2767
    %v2769 = vpop.f32.mrf.mxu0
    %2770 = vdwg.mxu0
    %v2771 = vsel %vm311, %v2763, -inf
    %2772 = vmax.xlane.f32.xlu0 %v2771
    %v2773 = vpop.xlane.xlu0 %2772
    %v2774 = vsel %vm311, %v2768, -inf
    %2775 = vmax.xlane.f32.xlu0 %v2774
    %v2776 = vpop.xlane.xlu0 %2775
    %v2777 = vsub.f32 %v2763, %v2773
    %v2778 = vsub.f32 %v2768, %v2776
    %v2779 = vmul.f32 %v2777, 1.442695
    %v2780 = vpow.pop %v2779
    %v2781 = vmul.f32 %v2778, 1.442695
    %v2782 = vpow.pop %v2781
    %v2783 = vsel %vm311, %v2780, 0.0
    %2784 = vadd.xlane.f32.xlu0 %v2783
    %v2785 = vpop.xlane.xlu0 %2784
    %v2786 = vsel %vm311, %v2782, 0.0
    %2787 = vadd.xlane.f32.xlu0 %v2786
    %v2788 = vpop.xlane.xlu0 %2787
    %v2789 = vrcp.pop %v2785
    %v2790 = vrcp.pop %v2788
    %v2791 = vmul.f32 %v2780, %v2789
    %v2792 = vmul.f32 %v2782, %v2790
    %s2793 = scalar_lea.vmem [#allocation5], 768
    %v2794 = vld [vmem:[%s2793] sm:$0xff]
    %v2795 = vld [vmem:[%s2793 + $0x8] sm:$0xff]
    %v2796 = vld [vmem:[%s2793 + $0x10] sm:$0xff]
    %v2797 = vld [vmem:[%s2793 + $0x18] sm:$0xff]
    %v2798 = vld [vmem:[%s2793 + $0x20] sm:$0xff]
    %v2799 = vld [vmem:[%s2793 + $0x28] sm:$0xff]
    %v2800 = vld [vmem:[%s2793 + $0x30] sm:$0xff]
    %v2801 = vld [vmem:[%s2793 + $0x38] sm:$0xff]
    %v2802 = vld [vmem:[%s2793 + $0x40] sm:$0xff]
    %v2803 = vld [vmem:[%s2793 + $0x48] sm:$0xff]
    %v2804 = vld [vmem:[%s2793 + $0x50] sm:$0xff]
    %v2805 = vld [vmem:[%s2793 + $0x58] sm:$0xff]
    %v2806 = vld [vmem:[%s2793 + $0x60] sm:$0xff]
    %v2807 = vld [vmem:[%s2793 + $0x68] sm:$0xff]
    %v2808 = vld [vmem:[%s2793 + $0x70] sm:$0xff]
    %v2809 = vld [vmem:[%s2793 + $0x78] sm:$0xff]
    %2810 = vmatprep.subr.mxu0 0.0
    %2811 = vmatpush1.msra.mxu0 %v2809
    %2812 = vmatprep.subr.mxu0 0.0
    %2813 = vmatpush1.msra.mxu0 %v2808
    %2814 = vmatprep.subr.mxu0 0.0
    %2815 = vmatpush1.msra.mxu0 %v2807
    %2816 = vmatprep.subr.mxu0 0.0
    %2817 = vmatpush1.msra.mxu0 %v2806
    %2818 = vmatprep.subr.mxu0 0.0
    %2819 = vmatpush1.msra.mxu0 %v2805
    %2820 = vmatprep.subr.mxu0 0.0
    %2821 = vmatpush1.msra.mxu0 %v2804
    %2822 = vmatprep.subr.mxu0 0.0
    %2823 = vmatpush1.msra.mxu0 %v2803
    %2824 = vmatprep.subr.mxu0 0.0
    %2825 = vmatpush1.msra.mxu0 %v2802
    %2826 = vmatprep.subr.mxu0 0.0
    %2827 = vmatpush1.msra.mxu0 %v2801
    %2828 = vmatprep.subr.mxu0 0.0
    %2829 = vmatpush1.msra.mxu0 %v2800
    %2830 = vmatprep.subr.mxu0 0.0
    %2831 = vmatpush1.msra.mxu0 %v2799
    %2832 = vmatprep.subr.mxu0 0.0
    %2833 = vmatpush1.msra.mxu0 %v2798
    %2834 = vmatprep.subr.mxu0 0.0
    %2835 = vmatpush1.msra.mxu0 %v2797
    %2836 = vmatprep.subr.mxu0 0.0
    %2837 = vmatpush1.msra.mxu0 %v2796
    %2838 = vmatprep.subr.mxu0 0.0
    %2839 = vmatpush1.msra.mxu0 %v2795
    %2840 = vmatprep.subr.mxu0 0.0
    %2841 = vmatpush1.msra.mxu0 %v2794
    %2842 = vmatprep.subr.mxu0 0.0
    %2843 = vmatpush2.msra.mxu0 0.0
    %2844 = vmatprep.subr.mxu0 0.0
    %2845 = vmatpush2.msra.mxu0 0.0
    %2846 = vmatprep.subr.mxu0 0.0
    %2847 = vmatpush2.msra.mxu0 0.0
    %2848 = vmatprep.subr.mxu0 0.0
    %2849 = vmatpush2.msra.mxu0 0.0
    %2850 = vmatprep.subr.mxu0 0.0
    %2851 = vmatpush2.msra.mxu0 0.0
    %2852 = vmatprep.subr.mxu0 0.0
    %2853 = vmatpush2.msra.mxu0 0.0
    %2854 = vmatprep.subr.mxu0 0.0
    %2855 = vmatpush2.msra.mxu0 0.0
    %2856 = vmatprep.subr.mxu0 0.0
    %2857 = vmatpush2.msra.mxu0 0.0
    %2858 = vmatprep.subr.mxu0 0.0
    %2859 = vmatpush2.msra.mxu0 0.0
    %2860 = vmatprep.subr.mxu0 0.0
    %2861 = vmatpush2.msra.mxu0 0.0
    %2862 = vmatprep.subr.mxu0 0.0
    %2863 = vmatpush2.msra.mxu0 0.0
    %2864 = vmatprep.subr.mxu0 0.0
    %2865 = vmatpush2.msra.mxu0 0.0
    %2866 = vmatprep.subr.mxu0 0.0
    %2867 = vmatpush2.msra.mxu0 0.0
    %2868 = vmatprep.subr.mxu0 0.0
    %2869 = vmatpush2.msra.mxu0 0.0
    %2870 = vmatprep.subr.mxu0 0.0
    %2871 = vmatpush2.msra.mxu0 0.0
    %2872 = vmatprep.subr.mxu0 0.0
    %2873 = vmatpush2.msra.mxu0 0.0
    %2874 = vmatprep.mubr.f32.mxu0 0.0
    %2875 = vmatmul.mubr.f32.gmra.mxu0 %v1866
    %v2876 = vpop.f32.mrf.mxu0
    %v2877 = vadd.f32 0.0, %v2876
    %v2878 = vpop.f32.mrf.mxu0
    %2879 = vmatprep.mubr.f32.mxu0 0.0
    %2880 = vmatmul.mubr.f32.gmra.mxu0 %v1867
    %v2881 = vpop.f32.mrf.mxu0
    %v2882 = vadd.f32 0.0, %v2881
    %v2883 = vpop.f32.mrf.mxu0
    %2884 = vdwg.mxu0
    %v2886 = vsel %vm311, %v2791, 0
    %v2889 = vsel %vm311, %v2792, 0
    %2891 = vmatprep.subr.mxu0 0.0
    %2892 = vmatpush1.msra.mxu0 0.0
    %2893 = vmatprep.subr.mxu0 0.0
    %2894 = vmatpush1.msra.mxu0 0.0
    %2895 = vmatprep.subr.mxu0 0.0
    %2896 = vmatpush1.msra.mxu0 0.0
    %2897 = vmatprep.subr.mxu0 0.0
    %2898 = vmatpush1.msra.mxu0 0.0
    %2899 = vmatprep.subr.mxu0 0.0
    %2900 = vmatpush1.msra.mxu0 0.0
    %2901 = vmatprep.subr.mxu0 0.0
    %2902 = vmatpush1.msra.mxu0 0.0
    %2903 = vmatprep.subr.mxu0 0.0
    %2904 = vmatpush1.msra.mxu0 0.0
    %2905 = vmatprep.subr.mxu0 0.0
    %2906 = vmatpush1.msra.mxu0 0.0
    %2907 = vmatprep.subr.mxu0 0.0
    %2908 = vmatpush1.msra.mxu0 0.0
    %2909 = vmatprep.subr.mxu0 0.0
    %2910 = vmatpush1.msra.mxu0 0.0
    %2911 = vmatprep.subr.mxu0 0.0
    %2912 = vmatpush1.msra.mxu0 0.0
    %2913 = vmatprep.subr.mxu0 0.0
    %2914 = vmatpush1.msra.mxu0 0.0
    %2915 = vmatprep.subr.mxu0 0.0
    %2916 = vmatpush1.msra.mxu0 0.0
    %2917 = vmatprep.subr.mxu0 0.0
    %2918 = vmatpush1.msra.mxu0 0.0
    %2919 = vmatprep.subr.mxu0 0.0
    %2920 = vmatpush1.msra.mxu0 %v2882
    %2921 = vmatprep.subr.mxu0 0.0
    %2922 = vmatpush1.msra.mxu0 %v2877
    %2923 = vmatprep.subr.mxu0 0.0
    %2924 = vmatpush2.msra.mxu0 0.0
    %2925 = vmatprep.subr.mxu0 0.0
    %2926 = vmatpush2.msra.mxu0 0.0
    %2927 = vmatprep.subr.mxu0 0.0
    %2928 = vmatpush2.msra.mxu0 0.0
    %2929 = vmatprep.subr.mxu0 0.0
    %2930 = vmatpush2.msra.mxu0 0.0
    %2931 = vmatprep.subr.mxu0 0.0
    %2932 = vmatpush2.msra.mxu0 0.0
    %2933 = vmatprep.subr.mxu0 0.0
    %2934 = vmatpush2.msra.mxu0 0.0
    %2935 = vmatprep.subr.mxu0 0.0
    %2936 = vmatpush2.msra.mxu0 0.0
    %2937 = vmatprep.subr.mxu0 0.0
    %2938 = vmatpush2.msra.mxu0 0.0
    %2939 = vmatprep.subr.mxu0 0.0
    %2940 = vmatpush2.msra.mxu0 0.0
    %2941 = vmatprep.subr.mxu0 0.0
    %2942 = vmatpush2.msra.mxu0 0.0
    %2943 = vmatprep.subr.mxu0 0.0
    %2944 = vmatpush2.msra.mxu0 0.0
    %2945 = vmatprep.subr.mxu0 0.0
    %2946 = vmatpush2.msra.mxu0 0.0
    %2947 = vmatprep.subr.mxu0 0.0
    %2948 = vmatpush2.msra.mxu0 0.0
    %2949 = vmatprep.subr.mxu0 0.0
    %2950 = vmatpush2.msra.mxu0 0.0
    %2951 = vmatprep.subr.mxu0 0.0
    %2952 = vmatpush2.msra.mxu0 0.0
    %2953 = vmatprep.subr.mxu0 0.0
    %2954 = vmatpush2.msra.mxu0 0.0
    %2955 = vmatprep.mubr.f32.mxu0 0.0
    %2956 = vmatmul.mubr.f32.gmra.mxu0 %v2886
    %v2957 = vpop.f32.mrf.mxu0
    %v2958 = vadd.f32 0.0, %v2957
    %v2959 = vpop.f32.mrf.mxu0
    %2960 = vmatprep.mubr.f32.mxu0 0.0
    %2961 = vmatmul.mubr.f32.gmra.mxu0 %v2889
    %v2962 = vpop.f32.mrf.mxu0
    %v2963 = vadd.f32 0.0, %v2962
    %v2964 = vpop.f32.mrf.mxu0
    %2965 = vdwg.mxu0
    %v2966 = vadd.f32 %v2602, %v2958
    %v2967 = vadd.f32 %v2603, %v2963
    %s2968 = scalar_lea.vmem [#allocation2], 896
    %v2969 = vld [vmem:[%s2968] sm:$0xff]
    %v2970 = vld [vmem:[%s2968 + $0x8] sm:$0xff]
    %v2971 = vld [vmem:[%s2968 + $0x10] sm:$0xff]
    %v2972 = vld [vmem:[%s2968 + $0x18] sm:$0xff]
    %v2973 = vld [vmem:[%s2968 + $0x20] sm:$0xff]
    %v2974 = vld [vmem:[%s2968 + $0x28] sm:$0xff]
    %v2975 = vld [vmem:[%s2968 + $0x30] sm:$0xff]
    %v2976 = vld [vmem:[%s2968 + $0x38] sm:$0xff]
    %v2977 = vld [vmem:[%s2968 + $0x40] sm:$0xff]
    %v2978 = vld [vmem:[%s2968 + $0x48] sm:$0xff]
    %v2979 = vld [vmem:[%s2968 + $0x50] sm:$0xff]
    %v2980 = vld [vmem:[%s2968 + $0x58] sm:$0xff]
    %v2981 = vld [vmem:[%s2968 + $0x60] sm:$0xff]
    %v2982 = vld [vmem:[%s2968 + $0x68] sm:$0xff]
    %v2983 = vld [vmem:[%s2968 + $0x70] sm:$0xff]
    %v2984 = vld [vmem:[%s2968 + $0x78] sm:$0xff]
    %2985 = vmatprep.subr.mxu0 0.0
    %2986 = vmatpush1.msra.mxu0 %v2984
    %2987 = vmatprep.subr.mxu0 0.0
    %2988 = vmatpush1.msra.mxu0 %v2983
    %2989 = vmatprep.subr.mxu0 0.0
    %2990 = vmatpush1.msra.mxu0 %v2982
    %2991 = vmatprep.subr.mxu0 0.0
    %2992 = vmatpush1.msra.mxu0 %v2981
    %2993 = vmatprep.subr.mxu0 0.0
    %2994 = vmatpush1.msra.mxu0 %v2980
    %2995 = vmatprep.subr.mxu0 0.0
    %2996 = vmatpush1.msra.mxu0 %v2979
    %2997 = vmatprep.subr.mxu0 0.0
    %2998 = vmatpush1.msra.mxu0 %v2978
    %2999 = vmatprep.subr.mxu0 0.0
    %3000 = vmatpush1.msra.mxu0 %v2977
    %3001 = vmatprep.subr.mxu0 0.0
    %3002 = vmatpush1.msra.mxu0 %v2976
    %3003 = vmatprep.subr.mxu0 0.0
    %3004 = vmatpush1.msra.mxu0 %v2975
    %3005 = vmatprep.subr.mxu0 0.0
    %3006 = vmatpush1.msra.mxu0 %v2974
    %3007 = vmatprep.subr.mxu0 0.0
    %3008 = vmatpush1.msra.mxu0 %v2973
    %3009 = vmatprep.subr.mxu0 0.0
    %3010 = vmatpush1.msra.mxu0 %v2972
    %3011 = vmatprep.subr.mxu0 0.0
    %3012 = vmatpush1.msra.mxu0 %v2971
    %3013 = vmatprep.subr.mxu0 0.0
    %3014 = vmatpush1.msra.mxu0 %v2970
    %3015 = vmatprep.subr.mxu0 0.0
    %3016 = vmatpush1.msra.mxu0 %v2969
    %3017 = vmatprep.subr.mxu0 0.0
    %3018 = vmatpush2.msra.mxu0 0.0
    %3019 = vmatprep.subr.mxu0 0.0
    %3020 = vmatpush2.msra.mxu0 0.0
    %3021 = vmatprep.subr.mxu0 0.0
    %3022 = vmatpush2.msra.mxu0 0.0
    %3023 = vmatprep.subr.mxu0 0.0
    %3024 = vmatpush2.msra.mxu0 0.0
    %3025 = vmatprep.subr.mxu0 0.0
    %3026 = vmatpush2.msra.mxu0 0.0
    %3027 = vmatprep.subr.mxu0 0.0
    %3028 = vmatpush2.msra.mxu0 0.0
    %3029 = vmatprep.subr.mxu0 0.0
    %3030 = vmatpush2.msra.mxu0 0.0
    %3031 = vmatprep.subr.mxu0 0.0
    %3032 = vmatpush2.msra.mxu0 0.0
    %3033 = vmatprep.subr.mxu0 0.0
    %3034 = vmatpush2.msra.mxu0 0.0
    %3035 = vmatprep.subr.mxu0 0.0
    %3036 = vmatpush2.msra.mxu0 0.0
    %3037 = vmatprep.subr.mxu0 0.0
    %3038 = vmatpush2.msra.mxu0 0.0
    %3039 = vmatprep.subr.mxu0 0.0
    %3040 = vmatpush2.msra.mxu0 0.0
    %3041 = vmatprep.subr.mxu0 0.0
    %3042 = vmatpush2.msra.mxu0 0.0
    %3043 = vmatprep.subr.mxu0 0.0
    %3044 = vmatpush2.msra.mxu0 0.0
    %3045 = vmatprep.subr.mxu0 0.0
    %3046 = vmatpush2.msra.mxu0 0.0
    %3047 = vmatprep.subr.mxu0 0.0
    %3048 = vmatpush2.msra.mxu0 0.0
    %3049 = vmatprep.mubr.f32.mxu0 0.0
    %3050 = vmatmul.mubr.f32.gmra.mxu0 %v1870
    %v3051 = vpop.f32.mrf.mxu0
    %v3052 = vadd.f32 0.0, %v3051
    %v3053 = vpop.f32.mrf.mxu0
    %3054 = vmatprep.mubr.f32.mxu0 0.0
    %3055 = vmatmul.mubr.f32.gmra.mxu0 %v1871
    %v3056 = vpop.f32.mrf.mxu0
    %v3057 = vadd.f32 0.0, %v3056
    %v3058 = vpop.f32.mrf.mxu0
    %3059 = vdwg.mxu0
    %3060 = vmatprep.subr.mxu0 0.0
    %3061 = vmatpush1.xpose.msra.mxu0 0.0
    %3062 = vmatprep.subr.mxu0 0.0
    %3063 = vmatpush1.xpose.msra.mxu0 0.0
    %3064 = vmatprep.subr.mxu0 0.0
    %3065 = vmatpush1.xpose.msra.mxu0 0.0
    %3066 = vmatprep.subr.mxu0 0.0
    %3067 = vmatpush1.xpose.msra.mxu0 0.0
    %3068 = vmatprep.subr.mxu0 0.0
    %3069 = vmatpush1.xpose.msra.mxu0 0.0
    %3070 = vmatprep.subr.mxu0 0.0
    %3071 = vmatpush1.xpose.msra.mxu0 0.0
    %3072 = vmatprep.subr.mxu0 0.0
    %3073 = vmatpush1.xpose.msra.mxu0 0.0
    %3074 = vmatprep.subr.mxu0 0.0
    %3075 = vmatpush1.xpose.msra.mxu0 0.0
    %3076 = vmatprep.subr.mxu0 0.0
    %3077 = vmatpush1.xpose.msra.mxu0 0.0
    %3078 = vmatprep.subr.mxu0 0.0
    %3079 = vmatpush1.xpose.msra.mxu0 0.0
    %3080 = vmatprep.subr.mxu0 0.0
    %3081 = vmatpush1.xpose.msra.mxu0 0.0
    %3082 = vmatprep.subr.mxu0 0.0
    %3083 = vmatpush1.xpose.msra.mxu0 0.0
    %3084 = vmatprep.subr.mxu0 0.0
    %3085 = vmatpush1.xpose.msra.mxu0 0.0
    %3086 = vmatprep.subr.mxu0 0.0
    %3087 = vmatpush1.xpose.msra.mxu0 0.0
    %3088 = vmatprep.subr.mxu0 0.0
    %3089 = vmatpush1.xpose.msra.mxu0 %v1871
    %3090 = vmatprep.subr.mxu0 0.0
    %3091 = vmatpush1.xpose.msra.mxu0 %v1870
    %3092 = vmatprep.subr.mxu0 0.0
    %3093 = vmatpush2.xpose.msra.mxu0 0.0
    %3094 = vmatprep.subr.mxu0 0.0
    %3095 = vmatpush2.xpose.msra.mxu0 0.0
    %3096 = vmatprep.subr.mxu0 0.0
    %3097 = vmatpush2.xpose.msra.mxu0 0.0
    %3098 = vmatprep.subr.mxu0 0.0
    %3099 = vmatpush2.xpose.msra.mxu0 0.0
    %3100 = vmatprep.subr.mxu0 0.0
    %3101 = vmatpush2.xpose.msra.mxu0 0.0
    %3102 = vmatprep.subr.mxu0 0.0
    %3103 = vmatpush2.xpose.msra.mxu0 0.0
    %3104 = vmatprep.subr.mxu0 0.0
    %3105 = vmatpush2.xpose.msra.mxu0 0.0
    %3106 = vmatprep.subr.mxu0 0.0
    %3107 = vmatpush2.xpose.msra.mxu0 0.0
    %3108 = vmatprep.subr.mxu0 0.0
    %3109 = vmatpush2.xpose.msra.mxu0 0.0
    %3110 = vmatprep.subr.mxu0 0.0
    %3111 = vmatpush2.xpose.msra.mxu0 0.0
    %3112 = vmatprep.subr.mxu0 0.0
    %3113 = vmatpush2.xpose.msra.mxu0 0.0
    %3114 = vmatprep.subr.mxu0 0.0
    %3115 = vmatpush2.xpose.msra.mxu0 0.0
    %3116 = vmatprep.subr.mxu0 0.0
    %3117 = vmatpush2.xpose.msra.mxu0 0.0
    %3118 = vmatprep.subr.mxu0 0.0
    %3119 = vmatpush2.xpose.msra.mxu0 0.0
    %3120 = vmatprep.subr.mxu0 0.0
    %3121 = vmatpush2.xpose.msra.mxu0 0.0
    %3122 = vmatprep.subr.mxu0 0.0
    %3123 = vmatpush2.xpose.msra.mxu0 0.0
    %3124 = vmatprep.mubr.f32.mxu0 0.0
    %3125 = vmatmul.mubr.f32.gmra.mxu0 %v3052
    %v3126 = vpop.f32.mrf.mxu0
    %v3127 = vadd.f32 %v134, %v3126
    %v3128 = vpop.f32.mrf.mxu0
    %3129 = vmatprep.mubr.f32.mxu0 0.0
    %3130 = vmatmul.mubr.f32.gmra.mxu0 %v3057
    %v3131 = vpop.f32.mrf.mxu0
    %v3132 = vadd.f32 %v135, %v3131
    %v3133 = vpop.f32.mrf.mxu0
    %3134 = vdwg.mxu0
    %v3135 = vsel %vm311, %v3127, -inf
    %3136 = vmax.xlane.f32.xlu0 %v3135
    %v3137 = vpop.xlane.xlu0 %3136
    %v3138 = vsel %vm311, %v3132, -inf
    %3139 = vmax.xlane.f32.xlu0 %v3138
    %v3140 = vpop.xlane.xlu0 %3139
    %v3141 = vsub.f32 %v3127, %v3137
    %v3142 = vsub.f32 %v3132, %v3140
    %v3143 = vmul.f32 %v3141, 1.442695
    %v3144 = vpow.pop %v3143
    %v3145 = vmul.f32 %v3142, 1.442695
    %v3146 = vpow.pop %v3145
    %v3147 = vsel %vm311, %v3144, 0.0
    %3148 = vadd.xlane.f32.xlu0 %v3147
    %v3149 = vpop.xlane.xlu0 %3148
    %v3150 = vsel %vm311, %v3146, 0.0
    %3151 = vadd.xlane.f32.xlu0 %v3150
    %v3152 = vpop.xlane.xlu0 %3151
    %v3153 = vrcp.pop %v3149
    %v3154 = vrcp.pop %v3152
    %v3155 = vmul.f32 %v3144, %v3153
    %v3156 = vmul.f32 %v3146, %v3154
    %s3157 = scalar_lea.vmem [#allocation5], 896
    %v3158 = vld [vmem:[%s3157] sm:$0xff]
    %v3159 = vld [vmem:[%s3157 + $0x8] sm:$0xff]
    %v3160 = vld [vmem:[%s3157 + $0x10] sm:$0xff]
    %v3161 = vld [vmem:[%s3157 + $0x18] sm:$0xff]
    %v3162 = vld [vmem:[%s3157 + $0x20] sm:$0xff]
    %v3163 = vld [vmem:[%s3157 + $0x28] sm:$0xff]
    %v3164 = vld [vmem:[%s3157 + $0x30] sm:$0xff]
    %v3165 = vld [vmem:[%s3157 + $0x38] sm:$0xff]
    %v3166 = vld [vmem:[%s3157 + $0x40] sm:$0xff]
    %v3167 = vld [vmem:[%s3157 + $0x48] sm:$0xff]
    %v3168 = vld [vmem:[%s3157 + $0x50] sm:$0xff]
    %v3169 = vld [vmem:[%s3157 + $0x58] sm:$0xff]
    %v3170 = vld [vmem:[%s3157 + $0x60] sm:$0xff]
    %v3171 = vld [vmem:[%s3157 + $0x68] sm:$0xff]
    %v3172 = vld [vmem:[%s3157 + $0x70] sm:$0xff]
    %v3173 = vld [vmem:[%s3157 + $0x78] sm:$0xff]
    %3174 = vmatprep.subr.mxu0 0.0
    %3175 = vmatpush1.msra.mxu0 %v3173
    %3176 = vmatprep.subr.mxu0 0.0
    %3177 = vmatpush1.msra.mxu0 %v3172
    %3178 = vmatprep.subr.mxu0 0.0
    %3179 = vmatpush1.msra.mxu0 %v3171
    %3180 = vmatprep.subr.mxu0 0.0
    %3181 = vmatpush1.msra.mxu0 %v3170
    %3182 = vmatprep.subr.mxu0 0.0
    %3183 = vmatpush1.msra.mxu0 %v3169
    %3184 = vmatprep.subr.mxu0 0.0
    %3185 = vmatpush1.msra.mxu0 %v3168
    %3186 = vmatprep.subr.mxu0 0.0
    %3187 = vmatpush1.msra.mxu0 %v3167
    %3188 = vmatprep.subr.mxu0 0.0
    %3189 = vmatpush1.msra.mxu0 %v3166
    %3190 = vmatprep.subr.mxu0 0.0
    %3191 = vmatpush1.msra.mxu0 %v3165
    %3192 = vmatprep.subr.mxu0 0.0
    %3193 = vmatpush1.msra.mxu0 %v3164
    %3194 = vmatprep.subr.mxu0 0.0
    %3195 = vmatpush1.msra.mxu0 %v3163
    %3196 = vmatprep.subr.mxu0 0.0
    %3197 = vmatpush1.msra.mxu0 %v3162
    %3198 = vmatprep.subr.mxu0 0.0
    %3199 = vmatpush1.msra.mxu0 %v3161
    %3200 = vmatprep.subr.mxu0 0.0
    %3201 = vmatpush1.msra.mxu0 %v3160
    %3202 = vmatprep.subr.mxu0 0.0
    %3203 = vmatpush1.msra.mxu0 %v3159
    %3204 = vmatprep.subr.mxu0 0.0
    %3205 = vmatpush1.msra.mxu0 %v3158
    %3206 = vmatprep.subr.mxu0 0.0
    %3207 = vmatpush2.msra.mxu0 0.0
    %3208 = vmatprep.subr.mxu0 0.0
    %3209 = vmatpush2.msra.mxu0 0.0
    %3210 = vmatprep.subr.mxu0 0.0
    %3211 = vmatpush2.msra.mxu0 0.0
    %3212 = vmatprep.subr.mxu0 0.0
    %3213 = vmatpush2.msra.mxu0 0.0
    %3214 = vmatprep.subr.mxu0 0.0
    %3215 = vmatpush2.msra.mxu0 0.0
    %3216 = vmatprep.subr.mxu0 0.0
    %3217 = vmatpush2.msra.mxu0 0.0
    %3218 = vmatprep.subr.mxu0 0.0
    %3219 = vmatpush2.msra.mxu0 0.0
    %3220 = vmatprep.subr.mxu0 0.0
    %3221 = vmatpush2.msra.mxu0 0.0
    %3222 = vmatprep.subr.mxu0 0.0
    %3223 = vmatpush2.msra.mxu0 0.0
    %3224 = vmatprep.subr.mxu0 0.0
    %3225 = vmatpush2.msra.mxu0 0.0
    %3226 = vmatprep.subr.mxu0 0.0
    %3227 = vmatpush2.msra.mxu0 0.0
    %3228 = vmatprep.subr.mxu0 0.0
    %3229 = vmatpush2.msra.mxu0 0.0
    %3230 = vmatprep.subr.mxu0 0.0
    %3231 = vmatpush2.msra.mxu0 0.0
    %3232 = vmatprep.subr.mxu0 0.0
    %3233 = vmatpush2.msra.mxu0 0.0
    %3234 = vmatprep.subr.mxu0 0.0
    %3235 = vmatpush2.msra.mxu0 0.0
    %3236 = vmatprep.subr.mxu0 0.0
    %3237 = vmatpush2.msra.mxu0 0.0
    %3238 = vmatprep.mubr.f32.mxu0 0.0
    %3239 = vmatmul.mubr.f32.gmra.mxu0 %v1866
    %v3240 = vpop.f32.mrf.mxu0
    %v3241 = vadd.f32 0.0, %v3240
    %v3242 = vpop.f32.mrf.mxu0
    %3243 = vmatprep.mubr.f32.mxu0 0.0
    %3244 = vmatmul.mubr.f32.gmra.mxu0 %v1867
    %v3245 = vpop.f32.mrf.mxu0
    %v3246 = vadd.f32 0.0, %v3245
    %v3247 = vpop.f32.mrf.mxu0
    %3248 = vdwg.mxu0
    %v3250 = vsel %vm311, %v3155, 0
    %v3253 = vsel %vm311, %v3156, 0
    %3255 = vmatprep.subr.mxu0 0.0
    %3256 = vmatpush1.msra.mxu0 0.0
    %3257 = vmatprep.subr.mxu0 0.0
    %3258 = vmatpush1.msra.mxu0 0.0
    %3259 = vmatprep.subr.mxu0 0.0
    %3260 = vmatpush1.msra.mxu0 0.0
    %3261 = vmatprep.subr.mxu0 0.0
    %3262 = vmatpush1.msra.mxu0 0.0
    %3263 = vmatprep.subr.mxu0 0.0
    %3264 = vmatpush1.msra.mxu0 0.0
    %3265 = vmatprep.subr.mxu0 0.0
    %3266 = vmatpush1.msra.mxu0 0.0
    %3267 = vmatprep.subr.mxu0 0.0
    %3268 = vmatpush1.msra.mxu0 0.0
    %3269 = vmatprep.subr.mxu0 0.0
    %3270 = vmatpush1.msra.mxu0 0.0
    %3271 = vmatprep.subr.mxu0 0.0
    %3272 = vmatpush1.msra.mxu0 0.0
    %3273 = vmatprep.subr.mxu0 0.0
    %3274 = vmatpush1.msra.mxu0 0.0
    %3275 = vmatprep.subr.mxu0 0.0
    %3276 = vmatpush1.msra.mxu0 0.0
    %3277 = vmatprep.subr.mxu0 0.0
    %3278 = vmatpush1.msra.mxu0 0.0
    %3279 = vmatprep.subr.mxu0 0.0
    %3280 = vmatpush1.msra.mxu0 0.0
    %3281 = vmatprep.subr.mxu0 0.0
    %3282 = vmatpush1.msra.mxu0 0.0
    %3283 = vmatprep.subr.mxu0 0.0
    %3284 = vmatpush1.msra.mxu0 %v3246
    %3285 = vmatprep.subr.mxu0 0.0
    %3286 = vmatpush1.msra.mxu0 %v3241
    %3287 = vmatprep.subr.mxu0 0.0
    %3288 = vmatpush2.msra.mxu0 0.0
    %3289 = vmatprep.subr.mxu0 0.0
    %3290 = vmatpush2.msra.mxu0 0.0
    %3291 = vmatprep.subr.mxu0 0.0
    %3292 = vmatpush2.msra.mxu0 0.0
    %3293 = vmatprep.subr.mxu0 0.0
    %3294 = vmatpush2.msra.mxu0 0.0
    %3295 = vmatprep.subr.mxu0 0.0
    %3296 = vmatpush2.msra.mxu0 0.0
    %3297 = vmatprep.subr.mxu0 0.0
    %3298 = vmatpush2.msra.mxu0 0.0
    %3299 = vmatprep.subr.mxu0 0.0
    %3300 = vmatpush2.msra.mxu0 0.0
    %3301 = vmatprep.subr.mxu0 0.0
    %3302 = vmatpush2.msra.mxu0 0.0
    %3303 = vmatprep.subr.mxu0 0.0
    %3304 = vmatpush2.msra.mxu0 0.0
    %3305 = vmatprep.subr.mxu0 0.0
    %3306 = vmatpush2.msra.mxu0 0.0
    %3307 = vmatprep.subr.mxu0 0.0
    %3308 = vmatpush2.msra.mxu0 0.0
    %3309 = vmatprep.subr.mxu0 0.0
    %3310 = vmatpush2.msra.mxu0 0.0
    %3311 = vmatprep.subr.mxu0 0.0
    %3312 = vmatpush2.msra.mxu0 0.0
    %3313 = vmatprep.subr.mxu0 0.0
    %3314 = vmatpush2.msra.mxu0 0.0
    %3315 = vmatprep.subr.mxu0 0.0
    %3316 = vmatpush2.msra.mxu0 0.0
    %3317 = vmatprep.subr.mxu0 0.0
    %3318 = vmatpush2.msra.mxu0 0.0
    %3319 = vmatprep.mubr.f32.mxu0 0.0
    %3320 = vmatmul.mubr.f32.gmra.mxu0 %v3250
    %v3321 = vpop.f32.mrf.mxu0
    %v3322 = vadd.f32 0.0, %v3321
    %v3323 = vpop.f32.mrf.mxu0
    %3324 = vmatprep.mubr.f32.mxu0 0.0
    %3325 = vmatmul.mubr.f32.gmra.mxu0 %v3253
    %v3326 = vpop.f32.mrf.mxu0
    %v3327 = vadd.f32 0.0, %v3326
    %v3328 = vpop.f32.mrf.mxu0
    %3329 = vdwg.mxu0
    %v3330 = vadd.f32 %v2966, %v3322
    %v3331 = vadd.f32 %v2967, %v3327
    %v3332 = vadd.f32 %v1866, %v3330
    %v3333 = vadd.f32 %v1867, %v3331
    %v3334 = vmul.f32 %v3332, %v89
    %v3335 = vmul.f32 %v3333, %v89
    %3336 = vadd.xlane.f32.xlu0 %v3334
    %v3337 = vpop.xlane.xlu0 %3336
    %3338 = vadd.xlane.f32.xlu0 %v3335
    %v3339 = vpop.xlane.xlu0 %3338
    %v3340 = vmul.f32 %v3337, 0.03125
    %v3341 = vmul.f32 %v3339, 0.03125
    %v3342 = vsub.f32 %v3332, %v3340
    %v3343 = vsub.f32 %v3333, %v3341
    %v3344 = vmul.f32 %v3342, %v89
    %v3345 = vmul.f32 %v3343, %v89
    %v3346 = vmul.f32 %v3344, %v3344
    %v3347 = vmul.f32 %v3345, %v3345
    %3348 = vadd.xlane.f32.xlu0 %v3346
    %v3349 = vpop.xlane.xlu0 %3348
    %3350 = vadd.xlane.f32.xlu0 %v3347
    %v3351 = vpop.xlane.xlu0 %3350
    %v3352 = vmul.f32 %v3349, 0.03125
    %v3353 = vmul.f32 %v3351, 0.03125
    %v3354 = vadd.f32 %v3352, 1e-05
    %v3355 = vadd.f32 %v3353, 1e-05
    %v3356 = vrsqrt.pop %v3354
    %v3357 = vrsqrt.pop %v3355
    %v3358 = vmul.f32 %v3344, %v3356
    %v3359 = vmul.f32 %v3345, %v3357
    %v3360 = vlaneseq
    %v3361 = vshrl.u32 %v3360, 7
    %v3362 = vsub.s32 1, %v3361
    %v3363 = vrot.slane %v1869, %v3362
    %v3364 = vmul.f32 %v3358, %v3363
    %v3365 = vmul.f32 %v3359, %v3363
    %v3366 = vlaneseq
    %v3367 = vshrl.u32 %v3366, 7
    %v3368 = vsub.s32 2, %v3367
    %v3369 = vrot.slane %v1869, %v3368
    %v3370 = vadd.f32 %v3364, %v3369
    %v3371 = vadd.f32 %v3365, %v3369
    %s3372 = scalar_lea.vmem [#allocation7], 128
    %v3373 = vld [vmem:[%s3372] sm:$0xff]
    %v3374 = vld [vmem:[%s3372 + $0x8] sm:$0xff]
    %v3375 = vld [vmem:[%s3372 + $0x10] sm:$0xff]
    %v3376 = vld [vmem:[%s3372 + $0x18] sm:$0xff]
    %v3377 = vld [vmem:[%s3372 + $0x20] sm:$0xff]
    %v3378 = vld [vmem:[%s3372 + $0x28] sm:$0xff]
    %v3379 = vld [vmem:[%s3372 + $0x30] sm:$0xff]
    %v3380 = vld [vmem:[%s3372 + $0x38] sm:$0xff]
    %v3381 = vld [vmem:[%s3372 + $0x40] sm:$0xff]
    %v3382 = vld [vmem:[%s3372 + $0x48] sm:$0xff]
    %v3383 = vld [vmem:[%s3372 + $0x50] sm:$0xff]
    %v3384 = vld [vmem:[%s3372 + $0x58] sm:$0xff]
    %v3385 = vld [vmem:[%s3372 + $0x60] sm:$0xff]
    %v3386 = vld [vmem:[%s3372 + $0x68] sm:$0xff]
    %v3387 = vld [vmem:[%s3372 + $0x70] sm:$0xff]
    %v3388 = vld [vmem:[%s3372 + $0x78] sm:$0xff]
    %3389 = vmatprep.subr.mxu0 0.0
    %3390 = vmatpush1.msra.mxu0 %v3388
    %3391 = vmatprep.subr.mxu0 0.0
    %3392 = vmatpush1.msra.mxu0 %v3387
    %3393 = vmatprep.subr.mxu0 0.0
    %3394 = vmatpush1.msra.mxu0 %v3386
    %3395 = vmatprep.subr.mxu0 0.0
    %3396 = vmatpush1.msra.mxu0 %v3385
    %3397 = vmatprep.subr.mxu0 0.0
    %3398 = vmatpush1.msra.mxu0 %v3384
    %3399 = vmatprep.subr.mxu0 0.0
    %3400 = vmatpush1.msra.mxu0 %v3383
    %3401 = vmatprep.subr.mxu0 0.0
    %3402 = vmatpush1.msra.mxu0 %v3382
    %3403 = vmatprep.subr.mxu0 0.0
    %3404 = vmatpush1.msra.mxu0 %v3381
    %3405 = vmatprep.subr.mxu0 0.0
    %3406 = vmatpush1.msra.mxu0 %v3380
    %3407 = vmatprep.subr.mxu0 0.0
    %3408 = vmatpush1.msra.mxu0 %v3379
    %3409 = vmatprep.subr.mxu0 0.0
    %3410 = vmatpush1.msra.mxu0 %v3378
    %3411 = vmatprep.subr.mxu0 0.0
    %3412 = vmatpush1.msra.mxu0 %v3377
    %3413 = vmatprep.subr.mxu0 0.0
    %3414 = vmatpush1.msra.mxu0 %v3376
    %3415 = vmatprep.subr.mxu0 0.0
    %3416 = vmatpush1.msra.mxu0 %v3375
    %3417 = vmatprep.subr.mxu0 0.0
    %3418 = vmatpush1.msra.mxu0 %v3374
    %3419 = vmatprep.subr.mxu0 0.0
    %3420 = vmatpush1.msra.mxu0 %v3373
    %3421 = vmatprep.subr.mxu0 0.0
    %3422 = vmatpush2.msra.mxu0 0.0
    %3423 = vmatprep.subr.mxu0 0.0
    %3424 = vmatpush2.msra.mxu0 0.0
    %3425 = vmatprep.subr.mxu0 0.0
    %3426 = vmatpush2.msra.mxu0 0.0
    %3427 = vmatprep.subr.mxu0 0.0
    %3428 = vmatpush2.msra.mxu0 0.0
    %3429 = vmatprep.subr.mxu0 0.0
    %3430 = vmatpush2.msra.mxu0 0.0
    %3431 = vmatprep.subr.mxu0 0.0
    %3432 = vmatpush2.msra.mxu0 0.0
    %3433 = vmatprep.subr.mxu0 0.0
    %3434 = vmatpush2.msra.mxu0 0.0
    %3435 = vmatprep.subr.mxu0 0.0
    %3436 = vmatpush2.msra.mxu0 0.0
    %3437 = vmatprep.subr.mxu0 0.0
    %3438 = vmatpush2.msra.mxu0 0.0
    %3439 = vmatprep.subr.mxu0 0.0
    %3440 = vmatpush2.msra.mxu0 0.0
    %3441 = vmatprep.subr.mxu0 0.0
    %3442 = vmatpush2.msra.mxu0 0.0
    %3443 = vmatprep.subr.mxu0 0.0
    %3444 = vmatpush2.msra.mxu0 0.0
    %3445 = vmatprep.subr.mxu0 0.0
    %3446 = vmatpush2.msra.mxu0 0.0
    %3447 = vmatprep.subr.mxu0 0.0
    %3448 = vmatpush2.msra.mxu0 0.0
    %3449 = vmatprep.subr.mxu0 0.0
    %3450 = vmatpush2.msra.mxu0 0.0
    %3451 = vmatprep.subr.mxu0 0.0
    %3452 = vmatpush2.msra.mxu0 0.0
    %3453 = vmatprep.mubr.f32.mxu0 0.0
    %3454 = vmatmul.mubr.f32.gmra.mxu0 %v3370
    %v3455 = vpop.f32.mrf.mxu0
    %v3456 = vadd.f32 0.0, %v3455
    %v3457 = vpop.f32.mrf.mxu0
    %3458 = vmatprep.mubr.f32.mxu0 0.0
    %3459 = vmatmul.mubr.f32.gmra.mxu0 %v3371
    %v3460 = vpop.f32.mrf.mxu0
    %v3461 = vadd.f32 0.0, %v3460
    %v3462 = vpop.f32.mrf.mxu0
    %3463 = vdwg.mxu0
    %v3464 = vmax.f32 %v3456, 0.0
    %v3465 = vmax.f32 %v3461, 0.0
    %s3466 = scalar_lea.vmem [#allocation8], 128
    %v3467 = vld [vmem:[%s3466] sm:$0xff]
    %v3468 = vld [vmem:[%s3466 + $0x8] sm:$0xff]
    %v3469 = vld [vmem:[%s3466 + $0x10] sm:$0xff]
    %v3470 = vld [vmem:[%s3466 + $0x18] sm:$0xff]
    %v3471 = vld [vmem:[%s3466 + $0x20] sm:$0xff]
    %v3472 = vld [vmem:[%s3466 + $0x28] sm:$0xff]
    %v3473 = vld [vmem:[%s3466 + $0x30] sm:$0xff]
    %v3474 = vld [vmem:[%s3466 + $0x38] sm:$0xff]
    %v3475 = vld [vmem:[%s3466 + $0x40] sm:$0xff]
    %v3476 = vld [vmem:[%s3466 + $0x48] sm:$0xff]
    %v3477 = vld [vmem:[%s3466 + $0x50] sm:$0xff]
    %v3478 = vld [vmem:[%s3466 + $0x58] sm:$0xff]
    %v3479 = vld [vmem:[%s3466 + $0x60] sm:$0xff]
    %v3480 = vld [vmem:[%s3466 + $0x68] sm:$0xff]
    %v3481 = vld [vmem:[%s3466 + $0x70] sm:$0xff]
    %v3482 = vld [vmem:[%s3466 + $0x78] sm:$0xff]
    %3483 = vmatprep.subr.mxu0 0.0
    %3484 = vmatpush1.msra.mxu0 %v3482
    %3485 = vmatprep.subr.mxu0 0.0
    %3486 = vmatpush1.msra.mxu0 %v3481
    %3487 = vmatprep.subr.mxu0 0.0
    %3488 = vmatpush1.msra.mxu0 %v3480
    %3489 = vmatprep.subr.mxu0 0.0
    %3490 = vmatpush1.msra.mxu0 %v3479
    %3491 = vmatprep.subr.mxu0 0.0
    %3492 = vmatpush1.msra.mxu0 %v3478
    %3493 = vmatprep.subr.mxu0 0.0
    %3494 = vmatpush1.msra.mxu0 %v3477
    %3495 = vmatprep.subr.mxu0 0.0
    %3496 = vmatpush1.msra.mxu0 %v3476
    %3497 = vmatprep.subr.mxu0 0.0
    %3498 = vmatpush1.msra.mxu0 %v3475
    %3499 = vmatprep.subr.mxu0 0.0
    %3500 = vmatpush1.msra.mxu0 %v3474
    %3501 = vmatprep.subr.mxu0 0.0
    %3502 = vmatpush1.msra.mxu0 %v3473
    %3503 = vmatprep.subr.mxu0 0.0
    %3504 = vmatpush1.msra.mxu0 %v3472
    %3505 = vmatprep.subr.mxu0 0.0
    %3506 = vmatpush1.msra.mxu0 %v3471
    %3507 = vmatprep.subr.mxu0 0.0
    %3508 = vmatpush1.msra.mxu0 %v3470
    %3509 = vmatprep.subr.mxu0 0.0
    %3510 = vmatpush1.msra.mxu0 %v3469
    %3511 = vmatprep.subr.mxu0 0.0
    %3512 = vmatpush1.msra.mxu0 %v3468
    %3513 = vmatprep.subr.mxu0 0.0
    %3514 = vmatpush1.msra.mxu0 %v3467
    %3515 = vmatprep.subr.mxu0 0.0
    %3516 = vmatpush2.msra.mxu0 0.0
    %3517 = vmatprep.subr.mxu0 0.0
    %3518 = vmatpush2.msra.mxu0 0.0
    %3519 = vmatprep.subr.mxu0 0.0
    %3520 = vmatpush2.msra.mxu0 0.0
    %3521 = vmatprep.subr.mxu0 0.0
    %3522 = vmatpush2.msra.mxu0 0.0
    %3523 = vmatprep.subr.mxu0 0.0
    %3524 = vmatpush2.msra.mxu0 0.0
    %3525 = vmatprep.subr.mxu0 0.0
    %3526 = vmatpush2.msra.mxu0 0.0
    %3527 = vmatprep.subr.mxu0 0.0
    %3528 = vmatpush2.msra.mxu0 0.0
    %3529 = vmatprep.subr.mxu0 0.0
    %3530 = vmatpush2.msra.mxu0 0.0
    %3531 = vmatprep.subr.mxu0 0.0
    %3532 = vmatpush2.msra.mxu0 0.0
    %3533 = vmatprep.subr.mxu0 0.0
    %3534 = vmatpush2.msra.mxu0 0.0
    %3535 = vmatprep.subr.mxu0 0.0
    %3536 = vmatpush2.msra.mxu0 0.0
    %3537 = vmatprep.subr.mxu0 0.0
    %3538 = vmatpush2.msra.mxu0 0.0
    %3539 = vmatprep.subr.mxu0 0.0
    %3540 = vmatpush2.msra.mxu0 0.0
    %3541 = vmatprep.subr.mxu0 0.0
    %3542 = vmatpush2.msra.mxu0 0.0
    %3543 = vmatprep.subr.mxu0 0.0
    %3544 = vmatpush2.msra.mxu0 0.0
    %3545 = vmatprep.subr.mxu0 0.0
    %3546 = vmatpush2.msra.mxu0 0.0
    %3547 = vmatprep.mubr.f32.mxu0 0.0
    %3548 = vmatmul.mubr.f32.gmra.mxu0 %v3464
    %v3549 = vpop.f32.mrf.mxu0
    %v3550 = vadd.f32 0.0, %v3549
    %v3551 = vpop.f32.mrf.mxu0
    %3552 = vmatprep.mubr.f32.mxu0 0.0
    %3553 = vmatmul.mubr.f32.gmra.mxu0 %v3465
    %v3554 = vpop.f32.mrf.mxu0
    %v3555 = vadd.f32 0.0, %v3554
    %v3556 = vpop.f32.mrf.mxu0
    %3557 = vdwg.mxu0
    %v3558 = vadd.f32 %v3370, %v3550
    %v3559 = vadd.f32 %v3371, %v3555
    %v3560 = vmul.f32 %v3558, %v89
    %v3561 = vmul.f32 %v3559, %v89
    %3562 = vadd.xlane.f32.xlu0 %v3560
    %v3563 = vpop.xlane.xlu0 %3562
    %3564 = vadd.xlane.f32.xlu0 %v3561
    %v3565 = vpop.xlane.xlu0 %3564
    %v3566 = vmul.f32 %v3563, 0.03125
    %v3567 = vmul.f32 %v3565, 0.03125
    %v3568 = vsub.f32 %v3558, %v3566
    %v3569 = vsub.f32 %v3559, %v3567
    %v3570 = vmul.f32 %v3568, %v89
    %v3571 = vmul.f32 %v3569, %v89
    %v3572 = vmul.f32 %v3570, %v3570
    %v3573 = vmul.f32 %v3571, %v3571
    %3574 = vadd.xlane.f32.xlu0 %v3572
    %v3575 = vpop.xlane.xlu0 %3574
    %3576 = vadd.xlane.f32.xlu0 %v3573
    %v3577 = vpop.xlane.xlu0 %3576
    %v3578 = vmul.f32 %v3575, 0.03125
    %v3579 = vmul.f32 %v3577, 0.03125
    %v3580 = vadd.f32 %v3578, 1e-05
    %v3581 = vadd.f32 %v3579, 1e-05
    %v3582 = vrsqrt.pop %v3580
    %v3583 = vrsqrt.pop %v3581
    %v3584 = vmul.f32 %v3570, %v3582
    %v3585 = vmul.f32 %v3571, %v3583
    %v3586 = vlaneseq
    %v3587 = vshrl.u32 %v3586, 7
    %v3588 = vsub.s32 3, %v3587
    %v3589 = vrot.slane %v1869, %v3588
    %v3590 = vmul.f32 %v3584, %v3589
    %v3591 = vmul.f32 %v3585, %v3589
    %v3592 = vlaneseq
    %v3593 = vshrl.u32 %v3592, 7
    %v3594 = vsub.s32 4, %v3593
    %v3595 = vrot.slane %v1869, %v3594
    %v3596 = vadd.f32 %v3590, %v3595
    %v3597 = vadd.f32 %v3591, %v3595
    %v3598 = vld [vmem:[%s7] sm:$0x1]
    %v3599 = vld [vmem:[%s7 + $0x1] sm:$0x1]
    %v3600 = vmul.f32 %v3596, %v89
    %v3601 = vmul.f32 %v3597, %v89
    %3602 = vadd.xlane.f32.xlu0 %v3600
    %v3603 = vpop.xlane.xlu0 %3602
    %3604 = vadd.xlane.f32.xlu0 %v3601
    %v3605 = vpop.xlane.xlu0 %3604
    %v3606 = vmul.f32 %v3603, 0.03125
    %v3607 = vmul.f32 %v3605, 0.03125
    %v3608 = vsub.f32 %v3596, %v3606
    %v3609 = vsub.f32 %v3597, %v3607
    %v3610 = vmul.f32 %v3608, %v89
    %v3611 = vmul.f32 %v3609, %v89
    %v3612 = vmul.f32 %v3610, %v3610
    %v3613 = vmul.f32 %v3611, %v3611
    %3614 = vadd.xlane.f32.xlu0 %v3612
    %v3615 = vpop.xlane.xlu0 %3614
    %3616 = vadd.xlane.f32.xlu0 %v3613
    %v3617 = vpop.xlane.xlu0 %3616
    %v3618 = vmul.f32 %v3615, 0.03125
    %v3619 = vmul.f32 %v3617, 0.03125
    %v3620 = vadd.f32 %v3618, 1e-05
    %v3621 = vadd.f32 %v3619, 1e-05
    %v3622 = vrsqrt.pop %v3620
    %v3623 = vrsqrt.pop %v3621
    %v3624 = vmul.f32 %v3610, %v3622
    %v3625 = vmul.f32 %v3611, %v3623
    %v3626 = vlaneseq
    %v3627 = vshrl.u32 %v3626, 7
    %v3628 = vsub.s32 0, %v3627
    %v3629 = vrot.slane %v3598, %v3628
    %v3630 = vmul.f32 %v3624, %v3629
    %v3631 = vmul.f32 %v3625, %v3629
    %v3632 = vlaneseq
    %v3633 = vshrl.u32 %v3632, 7
    %v3634 = vsub.s32 0, %v3633
    %v3635 = vrot.slane %v3599, %v3634
    %v3636 = vadd.f32 %v3630, %v3635
    %v3637 = vadd.f32 %v3631, %v3635
    %3638 = vst [vmem:[#allocation10] sm:$0xff] %v3636
    %3639 = vst [vmem:[#allocation10 + $0x8] sm:$0xff] %v3637
    // Predicated region
    $region50: #{_encoder_jit.1} parent=1 // pred_check
      _
    $region51: #{_encoder_jit.1} parent=1 // pred_check_branch
      %3641 = sbr.rel (0) target = $region53
    $region52: #{_encoder_jit.1} parent=1 // pred_region
      %s3643 = ssub.s32 256, 256
      %3644 = vsyncadd [#allocation4], %s3643
      %s3645 = sshll.u32 [#allocation10], 4
      %s3646 = int_to_ptr.vmem [resolvable:$true] %s3645
      %3651 = dma.vmem_to_hbm [thread:$0]  %s3646, 256, %s8, [#allocation4], 128, 128, 8
    $region53: #{_encoder_jit.1} parent=1 // pred_fallthru
      _
    // Predicated region
    $region54: #{_encoder_jit.1} parent=1 // pred_check
      _
    $region55: #{_encoder_jit.1} parent=1 // pred_check_branch
      %3653 = sbr.rel (0) target = $region57
    $region56: #{_encoder_jit.1} parent=1 // pred_region
      %3654 = dma.done [#allocation4], 256
    $region57: #{_encoder_jit.1} parent=1 // pred_fallthru
      _
    %3655 = vsyncpa [#allocation3], 1
    %3656 = vsyncpa [#allocation6], 1
    %3657 = vsyncpa [#allocation9], 1
    %3658 = vsyncpa [#allocation4], 1

</llo_original>
